<compile_context>
chip_gen: v7x
topology: tpu7x:2x2x1
jax: 0.10.0
libtpu: 0.0.40
codegen_flags: <defaults>
</compile_context>

<pallas_src>
import functools
import math

import jax
import jax.numpy as jnp
from jax.experimental import pallas as pl
from jax.experimental.pallas import tpu as pltpu


def _round_up(x, m):
    return (x + m - 1) // m * m


def _choose_row_tile(m):
    for tm in (256, 128, 64, 32, 16, 8):
        if m % tm == 0 and m // tm >= 2:
            return tm
    return m


# ----------------------------- Pallas kernels ------------------------------

def _matmul_bias_kernel(x_ref, w_ref, b_ref, o_ref):
    # x: (tm, K) f32, w: (K, Dp) bf16, b: (1, Dp) f32 -> o: (tm, Dp) f32
    o_ref[...] = (jnp.dot(x_ref[...].astype(jnp.bfloat16), w_ref[...],
                          preferred_element_type=jnp.float32)
                  + b_ref[...]).astype(o_ref.dtype)


def patch_embed_matmul(patches, w, b):
    # Conv2d(kernel=stride=P) as im2col @ W, row-tiled over M = B*ph*pw.
    M, K = patches.shape
    Dp = w.shape[1]
    tm = _choose_row_tile(M)
    return pl.pallas_call(
        _matmul_bias_kernel,
        out_shape=jax.ShapeDtypeStruct((M, Dp), jnp.float32),
        grid=(M // tm,),
        in_specs=[pl.BlockSpec((tm, K), lambda i: (i, 0)),
                  pl.BlockSpec((K, Dp), lambda i: (0, 0)),
                  pl.BlockSpec((1, Dp), lambda i: (0, 0))],
        out_specs=pl.BlockSpec((tm, Dp), lambda i: (i, 0)),
        compiler_params=pltpu.CompilerParams(dimension_semantics=("parallel",)),
    )(patches, w, b)


def _masked_layer_norm(x, g, b, d_real, eps):
    # x: (S_pad, Dp) with lanes >= d_real exactly zero; g/b zero-padded.
    lane = jax.lax.broadcasted_iota(jnp.int32, x.shape, dimension=1)
    mask = (lane < d_real).astype(x.dtype)
    inv_d = 1.0 / d_real
    mu = jnp.sum(x, axis=-1, keepdims=True) * inv_d
    xc = (x - mu) * mask
    var = jnp.sum(xc * xc, axis=-1, keepdims=True) * inv_d
    return xc * jax.lax.rsqrt(var + eps) * g + b


def _encoder_stack_kernel(x_ref, ln1g_ref, ln1b_ref, wqkv_ref, bqkv_ref,
                          wo_ref, bo_ref, ln2g_ref, ln2b_ref,
                          w1_ref, b1_ref, w2_ref, b2_ref,
                          fg_ref, fb_ref, o_ref,
                          *, num_heads, hd_pad, d_real, s_real, scale, eps):
    l = pl.program_id(1)
    n_layers = pl.num_programs(1)

    @pl.when(l == 0)
    def _():                                   # load residual stream into VMEM
        o_ref[0] = x_ref[0]

    x = o_ref[0]                               # (S_pad, Dp) f32, VMEM-resident
    s_pad, d_pad = x.shape

    # ---------------- multi-head self-attention (pre-norm) -----------------
    h = _masked_layer_norm(x, ln1g_ref[0], ln1b_ref[0], d_real, eps)
    qkv = (jnp.dot(h.astype(jnp.bfloat16), wqkv_ref[0],
                   preferred_element_type=jnp.float32) + bqkv_ref[0])

    # mask out the padded key tokens (columns >= s_real)
    key_bias = jnp.where(
        jax.lax.broadcasted_iota(jnp.int32, (s_pad, s_pad), 1) < s_real,
        0.0, -1e30)

    heads = []
    for hh in range(num_heads):                # static unrolled head loop
        q_h = qkv[:, hh * hd_pad:(hh + 1) * hd_pad]
        k_h = qkv[:, d_pad + hh * hd_pad:d_pad + (hh + 1) * hd_pad]
        v_h = qkv[:, 2 * d_pad + hh * hd_pad:2 * d_pad + (hh + 1) * hd_pad]
        s = jnp.dot(q_h.astype(jnp.bfloat16), k_h.astype(jnp.bfloat16).T,
                    preferred_element_type=jnp.float32) * scale + key_bias
        s = s - jnp.max(s, axis=-1, keepdims=True)
        p = jnp.exp(s)
        p = p * pl.reciprocal(jnp.sum(p, axis=-1, keepdims=True), approx=True)
        heads.append(jnp.dot(p.astype(jnp.bfloat16), v_h.astype(jnp.bfloat16),
                             preferred_element_type=jnp.float32))
    attn = jnp.concatenate(heads, axis=-1)
    attn = (jnp.dot(attn.astype(jnp.bfloat16), wo_ref[0],
                    preferred_element_type=jnp.float32) + bo_ref[0])
    x = x + attn

    # ------------------------------ MLP (pre-norm) --------------------------
    h2 = _masked_layer_norm(x, ln2g_ref[0], ln2b_ref[0], d_real, eps)
    m = (jnp.dot(h2.astype(jnp.bfloat16), w1_ref[0],
                 preferred_element_type=jnp.float32) + b1_ref[0])
    # TODO(synk): PyTorch nn.GELU defaults to the exact erf GELU; the tanh
    # approximation is used here for robust Mosaic lowering.
    m = jax.nn.gelu(m, approximate=True)
    m = (jnp.dot(m.astype(jnp.bfloat16), w2_ref[0],
                 preferred_element_type=jnp.float32) + b2_ref[0])
    x = x + m

    o_ref[0] = x                               # carry residual across layers

    @pl.when(l == n_layers - 1)
    def _():                                   # fused final LayerNorm
        o_ref[0] = _masked_layer_norm(x, fg_ref[0], fb_ref[0], d_real, eps)


def encoder_stack(x, lp, fin_g, fin_b, *, num_heads, d_real, s_real):
    B, S_pad, Dp = x.shape
    L = lp["wqkv"].shape[0]
    Mp = lp["w1"].shape[-1]
    hd_pad = Dp // num_heads
    scale = 1.0 / math.sqrt(d_real // num_heads)
    # eps=1e-6 matches the ViT reference (its LayerNorms use eps=1e-6).
    kernel = functools.partial(_encoder_stack_kernel, num_heads=num_heads,
                               hd_pad=hd_pad, d_real=d_real, s_real=s_real,
                               scale=scale, eps=1e-6)

    def per_layer(d1, d2):
        return pl.BlockSpec((1, d1, d2), lambda b, l: (l, 0, 0))

    in_specs = [
        pl.BlockSpec((1, S_pad, Dp), lambda b, l: (b, 0, 0)),     # x
        per_layer(1, Dp), per_layer(1, Dp),                       # ln1 g/b
        per_layer(Dp, 3 * Dp), per_layer(1, 3 * Dp),              # Wqkv, bqkv
        per_layer(Dp, Dp), per_layer(1, Dp),                      # Wo, bo
        per_layer(1, Dp), per_layer(1, Dp),                       # ln2 g/b
        per_layer(Dp, Mp), per_layer(1, Mp),                      # W1, b1
        per_layer(Mp, Dp), per_layer(1, Dp),                      # W2, b2
        pl.BlockSpec((1, 1, Dp), lambda b, l: (0, 0, 0)),         # final gamma
        pl.BlockSpec((1, 1, Dp), lambda b, l: (0, 0, 0)),         # final beta
    ]
    return pl.pallas_call(
        kernel,
        out_shape=jax.ShapeDtypeStruct((B, S_pad, Dp), jnp.float32),
        grid=(B, L),
        in_specs=in_specs,
        out_specs=pl.BlockSpec((1, S_pad, Dp), lambda b, l: (b, 0, 0)),
        compiler_params=pltpu.CompilerParams(
            dimension_semantics=("parallel", "arbitrary")),
    )(x, lp["ln1_g"], lp["ln1_b"], lp["wqkv"], lp["bqkv"], lp["wo"], lp["bo"],
      lp["ln2_g"], lp["ln2_b"], lp["w1"], lp["b1"], lp["w2"], lp["b2"],
      fin_g, fin_b)


# --------------------------- parameters & forward ---------------------------

def init_params(key, *, img_h, img_w, patch_size, ft_dim, mlp_dim,
                num_layers, num_heads, in_ch=3):
    ph, pw = img_h // patch_size, img_w // patch_size
    S = ph * pw + 1
    keys = jax.random.split(key, 2 + num_layers)
    conv_w = 0.02 * jax.random.normal(
        keys[0], (ft_dim, in_ch, patch_size, patch_size), jnp.float32)
    params = {
        # Conv2d weight (D, C, P, P) flattened to (C*P*P, D): im2col @ W == conv.
        "embed_w": conv_w.reshape(ft_dim, in_ch * patch_size * patch_size).T,
        "embed_b": jnp.zeros((ft_dim,), jnp.float32),
        "cls_token": jnp.zeros((1, 1, ft_dim), jnp.float32),  # zeros, as in module
        "pos_emb": 0.02 * jax.random.normal(keys[1], (1, S, ft_dim), jnp.float32),
        "final_g": jnp.ones((ft_dim,), jnp.float32),
        "final_b": jnp.zeros((ft_dim,), jnp.float32),
        "layers": [],
    }

    def w(k, shape):
        return 0.02 * jax.random.normal(k, shape, jnp.float32)

    for li in range(num_layers):
        lk = jax.random.split(keys[2 + li], 6)
        params["layers"].append({
            "ln1_g": jnp.ones((ft_dim,), jnp.float32),
            "ln1_b": jnp.zeros((ft_dim,), jnp.float32),
            "wq": w(lk[0], (ft_dim, ft_dim)), "bq": jnp.zeros((ft_dim,), jnp.float32),
            "wk": w(lk[1], (ft_dim, ft_dim)), "bk": jnp.zeros((ft_dim,), jnp.float32),
            "wv": w(lk[2], (ft_dim, ft_dim)), "bv": jnp.zeros((ft_dim,), jnp.float32),
            "wo": w(lk[3], (ft_dim, ft_dim)), "bo": jnp.zeros((ft_dim,), jnp.float32),
            "ln2_g": jnp.ones((ft_dim,), jnp.float32),
            "ln2_b": jnp.zeros((ft_dim,), jnp.float32),
            "w1": w(lk[4], (ft_dim, mlp_dim)), "b1": jnp.zeros((mlp_dim,), jnp.float32),
            "w2": w(lk[5], (mlp_dim, ft_dim)), "b2": jnp.zeros((ft_dim,), jnp.float32),
        })
    return params


def prepare_params(params, *, num_heads, ft_dim, mlp_dim):
    """Pad to lane/sublane-friendly shapes, stack per-layer weights, cast the
    matmul weights to bf16.  Head dims are padded inside their head slot so the
    per-head attention math is identical to the unpadded module."""
    Dp = _round_up(max(ft_dim, 128), 128)
    Mp = _round_up(max(mlp_dim, 128), 128)
    assert ft_dim % num_heads == 0 and Dp % num_heads == 0
    hd, hd_p = ft_dim // num_heads, Dp // num_heads
    K = params["embed_w"].shape[0]
    layers = params["layers"]

    def pad_mat(w, r, c):
        return jnp.pad(w, ((0, r - w.shape[0]), (0, c - w.shape[1])))

    def pad_vec(v, n):
        return jnp.pad(v, (0, n - v.shape[0]))

    def pad_head_cols(w):      # (D,D) -> (Dp,Dp), output cols head-interleaved
        w3 = w.reshape(ft_dim, num_heads, hd)
        return jnp.pad(w3, ((0, Dp - ft_dim), (0, 0), (0, hd_p - hd))).reshape(Dp, Dp)

    def pad_head_rows(w):      # (D,D) -> (Dp,Dp), input rows head-interleaved
        w3 = w.reshape(num_heads, hd, ft_dim)
        return jnp.pad(w3, ((0, 0), (0, hd_p - hd), (0, Dp - ft_dim))).reshape(Dp, Dp)

    def pad_head_vec(v):
        return jnp.pad(v.reshape(num_heads, hd), ((0, 0), (0, hd_p - hd))).reshape(Dp)

    stacked = {
        "ln1_g": jnp.stack([pad_vec(l["ln1_g"], Dp) for l in layers])[:, None, :],
        "ln1_b": jnp.stack([pad_vec(l["ln1_b"], Dp) for l in layers])[:, None, :],
        "wqkv": jnp.stack([jnp.concatenate(
            [pad_head_cols(l["wq"]), pad_head_cols(l["wk"]), pad_head_cols(l["wv"])],
            axis=1) for l in layers]).astype(jnp.bfloat16),
        "bqkv": jnp.stack([jnp.concatenate(
            [pad_head_vec(l["bq"]), pad_head_vec(l["bk"]), pad_head_vec(l["bv"])])
            for l in layers])[:, None, :],
        "wo": jnp.stack([pad_head_rows(l["wo"]) for l in layers]).astype(jnp.bfloat16),
        "bo": jnp.stack([pad_vec(l["bo"], Dp) for l in layers])[:, None, :],
        "ln2_g": jnp.stack([pad_vec(l["ln2_g"], Dp) for l in layers])[:, None, :],
        "ln2_b": jnp.stack([pad_vec(l["ln2_b"], Dp) for l in layers])[:, None, :],
        "w1": jnp.stack([pad_mat(l["w1"], Dp, Mp) for l in layers]).astype(jnp.bfloat16),
        "b1": jnp.stack([pad_vec(l["b1"], Mp) for l in layers])[:, None, :],
        "w2": jnp.stack([pad_mat(l["w2"], Mp, Dp) for l in layers]).astype(jnp.bfloat16),
        "b2": jnp.stack([pad_vec(l["b2"], Dp) for l in layers])[:, None, :],
    }
    return {
        "embed_w": pad_mat(params["embed_w"], K, Dp).astype(jnp.bfloat16),
        "embed_b": pad_vec(params["embed_b"], Dp)[None, :],
        "cls_token": jnp.pad(params["cls_token"], ((0, 0), (0, 0), (0, Dp - ft_dim))),
        "pos_emb": jnp.pad(params["pos_emb"], ((0, 0), (0, 0), (0, Dp - ft_dim))),
        "final_g": pad_vec(params["final_g"], Dp)[None, None, :],
        "final_b": pad_vec(params["final_b"], Dp)[None, None, :],
        "layers": stacked,
    }


def detr_encoder_forward(img, prepared, *, patch_size, num_heads, ft_dim):
    B, C, H, W = img.shape
    P = patch_size
    ph, pw = H // P, W // P
    Dp = prepared["embed_w"].shape[1]
    S_real = ph * pw + 1
    S_pad = _round_up(S_real, 8)

    # Patch embedding: im2col (each patch flattened in (c, kh, kw) order) + matmul.
    patches = img.reshape(B, C, ph, P, pw, P).transpose(0, 2, 4, 1, 3, 5)
    patches = patches.reshape(B * ph * pw, C * P * P)
    emb = patch_embed_matmul(patches, prepared["embed_w"], prepared["embed_b"])
    emb = emb.reshape(B, ph * pw, Dp)            # == permute(0,2,3,1).reshape(b,h*w,c)

    # cls token + positional embedding, then pad the sequence to a sublane multiple.
    cls = jnp.broadcast_to(prepared["cls_token"], (B, 1, Dp))
    x = jnp.concatenate([cls, emb], axis=1) + prepared["pos_emb"]
    x = jnp.pad(x, ((0, 0), (0, S_pad - S_real), (0, 0)))

    # Fused encoder stack (all layers + final LayerNorm) in one pallas_call.
    y = encoder_stack(x, prepared["layers"], prepared["final_g"], prepared["final_b"],
                      num_heads=num_heads, d_real=ft_dim, s_real=S_real)

    tokens = y[:, 1:1 + ph * pw, :ft_dim]        # drop cls token + padding
    out = jnp.transpose(tokens, (0, 2, 1)).reshape(B, ft_dim, ph, pw)
    # single broadcast+reshape == repeat_interleave(P, dim=2) then (P, dim=3)
    out = jnp.broadcast_to(out[:, :, :, None, :, None], (B, ft_dim, ph, P, pw, P))
    return out.reshape(B, ft_dim, H, W)


# ----------------------------------- main -----------------------------------

if __name__ == "__main__":
    img_h = img_w = 32
    patch_size = 8
    ft_dim = 32
    mlp_dim = 64
    num_layers = 2          # ViT-B_16 uses 12 layers / 12 heads; reduced synthetic run
    num_heads = 4

    key = jax.random.PRNGKey(0)
    pkey, xkey = jax.random.split(key)
    params = init_params(pkey, img_h=img_h, img_w=img_w, patch_size=patch_size,
                         ft_dim=ft_dim, mlp_dim=mlp_dim,
                         num_layers=num_layers, num_heads=num_heads)
    prepared = prepare_params(params, num_heads=num_heads,
                              ft_dim=ft_dim, mlp_dim=mlp_dim)
    img = jax.random.normal(xkey, (2, 3, img_h, img_w), jnp.float32)

    fwd = jax.jit(functools.partial(detr_encoder_forward, patch_size=patch_size,
                                    num_heads=num_heads, ft_dim=ft_dim))
    out = fwd(img, prepared)
    out = jax.block_until_ready(out)
    assert out.shape == (2, ft_dim, img_h, img_w), out.shape
    print("KERNEL_OK")
</pallas_src>

<mosaic_0001>
module attributes {stable_mosaic.version = 11 : i64} {
  func.func @_matmul_bias_kernel(%arg0: i32, %arg1: memref<16x192xf32, #tpu.memory_space<vmem>>, %arg2: memref<192x128xbf16, #tpu.memory_space<vmem>>, %arg3: memref<1x128xf32, #tpu.memory_space<vmem>>, %arg4: memref<16x128xf32, #tpu.memory_space<vmem>>) attributes {dimension_semantics = [#tpu.dimension_semantics<parallel>], iteration_bounds = array<i64: 2>, scalar_prefetch = 0 : i64, scratch_operands = 0 : i64, tpu.core_type = #tpu.core_type<tc>, window_params = [{transform_indices = @transform_0, window_bounds = array<i64: 16, 192>}, {pipeline_mode = #tpu.pipeline_mode<synchronous>, transform_indices = @transform_1, window_bounds = array<i64: 192, 128>}, {pipeline_mode = #tpu.pipeline_mode<synchronous>, transform_indices = @transform_2, window_bounds = array<i64: 1, 128>}, {transform_indices = @transform_3, window_bounds = array<i64: 16, 128>}]} {
    %c0 = arith.constant 0 : index
    %c0_0 = arith.constant 0 : index
    %0 = vector.load %arg1[%c0, %c0_0] : memref<16x192xf32, #tpu.memory_space<vmem>>, vector<16x192xf32>
    %1 = arith.truncf %0 : vector<16x192xf32> to vector<16x192xbf16>
    %c0_1 = arith.constant 0 : index
    %c0_2 = arith.constant 0 : index
    %2 = vector.load %arg2[%c0_1, %c0_2] : memref<192x128xbf16, #tpu.memory_space<vmem>>, vector<192x128xbf16>
    %cst = arith.constant dense<0.000000e+00> : vector<16x128xf32>
    %3 = tpu.matmul %1, %2, %cst {dimension_numbers = #tpu.dot_dimension_numbers<[1], [0], [0], [1], [0, 0, 1, 1], [], []>} : vector<16x192xbf16>, vector<192x128xbf16>, vector<16x128xf32> -> vector<16x128xf32>
    %c0_3 = arith.constant 0 : index
    %c0_4 = arith.constant 0 : index
    %4 = vector.load %arg3[%c0_3, %c0_4] : memref<1x128xf32, #tpu.memory_space<vmem>>, vector<1x128xf32>
    %5 = vector.broadcast %4 : vector<1x128xf32> to vector<16x128xf32>
    %6 = arith.addf %3, %5 : vector<16x128xf32>
    %c0_5 = arith.constant 0 : index
    %c0_6 = arith.constant 0 : index
    %7 = vector.load %arg4[%c0_5, %c0_6] : memref<16x128xf32, #tpu.memory_space<vmem>>, vector<16x128xf32>
    tpu.vector_store %arg4[%c0_5, %c0_6], %6 {strides = array<i32>} : memref<16x128xf32, #tpu.memory_space<vmem>>, vector<16x128xf32>,
    return
  }
  func.func @transform_0(%arg0: i32) -> (i32, i32) {
    %c0_i32 = arith.constant 0 : i32
    %c0_i32_0 = arith.constant 0 : i32
    return %arg0, %c0_i32 : i32, i32
  }
  func.func @transform_1(%arg0: i32) -> (i32, i32) {
    %c0_i32 = arith.constant 0 : i32
    %c0_i32_0 = arith.constant 0 : i32
    %c0_i32_1 = arith.constant 0 : i32
    return %c0_i32, %c0_i32_0 : i32, i32
  }
  func.func @transform_2(%arg0: i32) -> (i32, i32) {
    %c0_i32 = arith.constant 0 : i32
    %c0_i32_0 = arith.constant 0 : i32
    %c0_i32_1 = arith.constant 0 : i32
    return %c0_i32, %c0_i32_0 : i32, i32
  }
  func.func @transform_3(%arg0: i32) -> (i32, i32) {
    %c0_i32 = arith.constant 0 : i32
    %c0_i32_0 = arith.constant 0 : i32
    return %arg0, %c0_i32 : i32, i32
  }
}

module attributes {stable_mosaic.version = 11 : i64} {
  func.func @_encoder_stack_kernel(%arg0: i32, %arg1: i32, %arg2: memref<1x24x128xf32, #tpu.memory_space<vmem>>, %arg3: memref<1x1x128xf32, #tpu.memory_space<vmem>>, %arg4: memref<1x1x128xf32, #tpu.memory_space<vmem>>, %arg5: memref<1x128x384xbf16, #tpu.memory_space<vmem>>, %arg6: memref<1x1x384xf32, #tpu.memory_space<vmem>>, %arg7: memref<1x128x128xbf16, #tpu.memory_space<vmem>>, %arg8: memref<1x1x128xf32, #tpu.memory_space<vmem>>, %arg9: memref<1x1x128xf32, #tpu.memory_space<vmem>>, %arg10: memref<1x1x128xf32, #tpu.memory_space<vmem>>, %arg11: memref<1x128x128xbf16, #tpu.memory_space<vmem>>, %arg12: memref<1x1x128xf32, #tpu.memory_space<vmem>>, %arg13: memref<1x128x128xbf16, #tpu.memory_space<vmem>>, %arg14: memref<1x1x128xf32, #tpu.memory_space<vmem>>, %arg15: memref<1x1x128xf32, #tpu.memory_space<vmem>>, %arg16: memref<1x1x128xf32, #tpu.memory_space<vmem>>, %arg17: memref<1x24x128xf32, #tpu.memory_space<vmem>>) attributes {dimension_semantics = [#tpu.dimension_semantics<parallel>, #tpu.dimension_semantics<arbitrary>], iteration_bounds = array<i64: 2, 2>, scalar_prefetch = 0 : i64, scratch_operands = 0 : i64, tpu.core_type = #tpu.core_type<tc>, window_params = [{transform_indices = @transform_0, window_bounds = array<i64: 1, 24, 128>}, {transform_indices = @transform_1, window_bounds = array<i64: 1, 1, 128>}, {transform_indices = @transform_2, window_bounds = array<i64: 1, 1, 128>}, {transform_indices = @transform_3, window_bounds = array<i64: 1, 128, 384>}, {transform_indices = @transform_4, window_bounds = array<i64: 1, 1, 384>}, {transform_indices = @transform_5, window_bounds = array<i64: 1, 128, 128>}, {transform_indices = @transform_6, window_bounds = array<i64: 1, 1, 128>}, {transform_indices = @transform_7, window_bounds = array<i64: 1, 1, 128>}, {transform_indices = @transform_8, window_bounds = array<i64: 1, 1, 128>}, {transform_indices = @transform_9, window_bounds = array<i64: 1, 128, 128>}, {transform_indices = @transform_10, window_bounds = array<i64: 1, 1, 128>}, {transform_indices = @transform_11, window_bounds = array<i64: 1, 128, 128>}, {transform_indices = @transform_12, window_bounds = array<i64: 1, 1, 128>}, {pipeline_mode = #tpu.pipeline_mode<synchronous>, transform_indices = @transform_13, window_bounds = array<i64: 1, 1, 128>}, {pipeline_mode = #tpu.pipeline_mode<synchronous>, transform_indices = @transform_14, window_bounds = array<i64: 1, 1, 128>}, {transform_indices = @transform_15, window_bounds = array<i64: 1, 24, 128>}]} {
    %c0_i32 = arith.constant 0 : i32
    %0 = arith.cmpi eq, %arg1, %c0_i32 : i32
    %1 = arith.extui %0 : i1 to i32
    %c0_i32_0 = arith.constant 0 : i32
    %2 = arith.cmpi ne, %1, %c0_i32_0 : i32
    scf.if %2 {
      %c0_83 = arith.constant 0 : index
      %c0_84 = arith.constant 0 : index
      %c0_85 = arith.constant 0 : index
      %217 = vector.load %arg2[%c0_83, %c0_84, %c0_85] : memref<1x24x128xf32, #tpu.memory_space<vmem>>, vector<1x24x128xf32>
      %218 = vector.shape_cast %217 : vector<1x24x128xf32> to vector<24x128xf32>
      %c0_86 = arith.constant 0 : index
      %c0_87 = arith.constant 0 : index
      %c0_88 = arith.constant 0 : index
      %219 = vector.load %arg17[%c0_86, %c0_87, %c0_88] : memref<1x24x128xf32, #tpu.memory_space<vmem>>, vector<1x24x128xf32>
      %220 = vector.shape_cast %219 : vector<1x24x128xf32> to vector<24x128xf32>
      %221 = vector.shape_cast %218 : vector<24x128xf32> to vector<1x24x128xf32>
      tpu.vector_store %arg17[%c0_86, %c0_87, %c0_88], %221 {strides = array<i32>} : memref<1x24x128xf32, #tpu.memory_space<vmem>>, vector<1x24x128xf32>,
    } else {
    }
    %c0 = arith.constant 0 : index
    %c0_1 = arith.constant 0 : index
    %c0_2 = arith.constant 0 : index
    %3 = vector.load %arg17[%c0, %c0_1, %c0_2] : memref<1x24x128xf32, #tpu.memory_space<vmem>>, vector<1x24x128xf32>
    %4 = vector.shape_cast %3 : vector<1x24x128xf32> to vector<24x128xf32>
    %c0_3 = arith.constant 0 : index
    %c0_4 = arith.constant 0 : index
    %c0_5 = arith.constant 0 : index
    %5 = vector.load %arg3[%c0_3, %c0_4, %c0_5] : memref<1x1x128xf32, #tpu.memory_space<vmem>>, vector<1x1x128xf32>
    %6 = vector.shape_cast %5 : vector<1x1x128xf32> to vector<1x128xf32>
    %c0_6 = arith.constant 0 : index
    %c0_7 = arith.constant 0 : index
    %c0_8 = arith.constant 0 : index
    %7 = vector.load %arg4[%c0_6, %c0_7, %c0_8] : memref<1x1x128xf32, #tpu.memory_space<vmem>>, vector<1x1x128xf32>
    %8 = vector.shape_cast %7 : vector<1x1x128xf32> to vector<1x128xf32>
    %9 = tpu.iota {dimensions = array<i32: 1>} : vector<24x128xi32>
    %c32_i32 = arith.constant 32 : i32
    %10 = vector.broadcast %c32_i32 : i32 to vector<24x128xi32>
    %11 = arith.cmpi slt, %9, %10 : vector<24x128xi32>
    %12 = arith.extui %11 : vector<24x128xi1> to vector<24x128xi32>
    %13 = arith.sitofp %12 : vector<24x128xi32> to vector<24x128xf32>
    %cst = arith.constant dense<0.000000e+00> : vector<24xf32>
    %14 = vector.multi_reduction <add>, %4, %cst [1] : vector<24x128xf32> to vector<24xf32>
    %15 = vector.shape_cast %14 : vector<24xf32> to vector<24x1xf32>
    %cst_9 = arith.constant 3.125000e-02 : f32
    %16 = vector.broadcast %cst_9 : f32 to vector<24x1xf32>
    %17 = arith.mulf %15, %16 : vector<24x1xf32>
    %18 = vector.broadcast %17 : vector<24x1xf32> to vector<24x128xf32>
    %19 = arith.subf %4, %18 : vector<24x128xf32>
    %20 = arith.mulf %19, %13 : vector<24x128xf32>
    %21 = arith.mulf %20, %20 : vector<24x128xf32>
    %cst_10 = arith.constant dense<0.000000e+00> : vector<24xf32>
    %22 = vector.multi_reduction <add>, %21, %cst_10 [1] : vector<24x128xf32> to vector<24xf32>
    %23 = vector.shape_cast %22 : vector<24xf32> to vector<24x1xf32>
    %cst_11 = arith.constant 3.125000e-02 : f32
    %24 = vector.broadcast %cst_11 : f32 to vector<24x1xf32>
    %25 = arith.mulf %23, %24 : vector<24x1xf32>
    %cst_12 = arith.constant 9.99999997E-7 : f32
    %26 = vector.broadcast %cst_12 : f32 to vector<24x1xf32>
    %27 = arith.addf %25, %26 : vector<24x1xf32>
    %28 = math.rsqrt %27 : vector<24x1xf32>
    %29 = vector.broadcast %28 : vector<24x1xf32> to vector<24x128xf32>
    %30 = arith.mulf %20, %29 : vector<24x128xf32>
    %31 = vector.broadcast %6 : vector<1x128xf32> to vector<24x128xf32>
    %32 = arith.mulf %30, %31 : vector<24x128xf32>
    %33 = vector.broadcast %8 : vector<1x128xf32> to vector<24x128xf32>
    %34 = arith.addf %32, %33 : vector<24x128xf32>
    %35 = arith.truncf %34 : vector<24x128xf32> to vector<24x128xbf16>
    %c0_13 = arith.constant 0 : index
    %c0_14 = arith.constant 0 : index
    %c0_15 = arith.constant 0 : index
    %36 = vector.load %arg5[%c0_13, %c0_14, %c0_15] : memref<1x128x384xbf16, #tpu.memory_space<vmem>>, vector<1x128x384xbf16>
    %37 = vector.shape_cast %36 : vector<1x128x384xbf16> to vector<128x384xbf16>
    %cst_16 = arith.constant dense<0.000000e+00> : vector<24x384xf32>
    %38 = tpu.matmul %35, %37, %cst_16 {dimension_numbers = #tpu.dot_dimension_numbers<[1], [0], [0], [1], [0, 0, 1, 1], [], []>} : vector<24x128xbf16>, vector<128x384xbf16>, vector<24x384xf32> -> vector<24x384xf32>
    %c0_17 = arith.constant 0 : index
    %c0_18 = arith.constant 0 : index
    %c0_19 = arith.constant 0 : index
    %39 = vector.load %arg6[%c0_17, %c0_18, %c0_19] : memref<1x1x384xf32, #tpu.memory_space<vmem>>, vector<1x1x384xf32>
    %40 = vector.shape_cast %39 : vector<1x1x384xf32> to vector<1x384xf32>
    %41 = vector.broadcast %40 : vector<1x384xf32> to vector<24x384xf32>
    %42 = arith.addf %38, %41 : vector<24x384xf32>
    %43 = tpu.iota {dimensions = array<i32: 1>} : vector<24x24xi32>
    %c17_i32 = arith.constant 17 : i32
    %44 = vector.broadcast %c17_i32 : i32 to vector<24x24xi32>
    %45 = arith.cmpi slt, %43, %44 : vector<24x24xi32>
    %cst_20 = arith.constant 0.000000e+00 : f32
    %cst_21 = arith.constant -1.000000e+30 : f32
    %46 = vector.broadcast %cst_20 : f32 to vector<24x24xf32>
    %47 = vector.broadcast %cst_21 : f32 to vector<24x24xf32>
    %48 = arith.select %45, %46, %47 : vector<24x24xi1>, vector<24x24xf32>
    %49 = vector.extract_strided_slice %42 {offsets = [0, 0], sizes = [24, 32], strides = [1, 1]} : vector<24x384xf32> to vector<24x32xf32>
    %50 = vector.extract_strided_slice %42 {offsets = [0, 128], sizes = [24, 32], strides = [1, 1]} : vector<24x384xf32> to vector<24x32xf32>
    %51 = vector.extract_strided_slice %42 {offsets = [0, 256], sizes = [24, 32], strides = [1, 1]} : vector<24x384xf32> to vector<24x32xf32>
    %52 = arith.truncf %49 : vector<24x32xf32> to vector<24x32xbf16>
    %53 = arith.truncf %50 : vector<24x32xf32> to vector<24x32xbf16>
    %54 = tpu.transpose %53, [1, 0] : vector<24x32xbf16> -> vector<32x24xbf16>
    %cst_22 = arith.constant dense<0.000000e+00> : vector<24x24xf32>
    %55 = tpu.matmul %52, %54, %cst_22 {dimension_numbers = #tpu.dot_dimension_numbers<[1], [0], [0], [1], [0, 0, 1, 1], [], []>} : vector<24x32xbf16>, vector<32x24xbf16>, vector<24x24xf32> -> vector<24x24xf32>
    %cst_23 = arith.constant 0.353553385 : f32
    %56 = vector.broadcast %cst_23 : f32 to vector<24x24xf32>
    %57 = arith.mulf %55, %56 : vector<24x24xf32>
    %58 = arith.addf %57, %48 : vector<24x24xf32>
    %cst_24 = arith.constant dense<0xFF800000> : vector<24xf32>
    %59 = vector.multi_reduction <maximumf>, %58, %cst_24 [1] : vector<24x24xf32> to vector<24xf32>
    %60 = vector.shape_cast %59 : vector<24xf32> to vector<24x1xf32>
    %61 = vector.broadcast %60 : vector<24x1xf32> to vector<24x24xf32>
    %62 = arith.subf %58, %61 : vector<24x24xf32>
    %63 = math.exp %62 : vector<24x24xf32>
    %cst_25 = arith.constant dense<0.000000e+00> : vector<24xf32>
    %64 = vector.multi_reduction <add>, %63, %cst_25 [1] : vector<24x24xf32> to vector<24xf32>
    %65 = vector.shape_cast %64 : vector<24xf32> to vector<24x1xf32>
    %66 = tpu.reciprocal %65 {approx = true} : vector<24x1xf32> -> vector<24x1xf32>
    %67 = vector.broadcast %66 : vector<24x1xf32> to vector<24x24xf32>
    %68 = arith.mulf %63, %67 : vector<24x24xf32>
    %69 = arith.truncf %68 : vector<24x24xf32> to vector<24x24xbf16>
    %70 = arith.truncf %51 : vector<24x32xf32> to vector<24x32xbf16>
    %cst_26 = arith.constant dense<0.000000e+00> : vector<24x32xf32>
    %71 = tpu.matmul %69, %70, %cst_26 {dimension_numbers = #tpu.dot_dimension_numbers<[1], [0], [0], [1], [0, 0, 1, 1], [], []>} : vector<24x24xbf16>, vector<24x32xbf16>, vector<24x32xf32> -> vector<24x32xf32>
    %72 = vector.extract_strided_slice %42 {offsets = [0, 32], sizes = [24, 32], strides = [1, 1]} : vector<24x384xf32> to vector<24x32xf32>
    %73 = vector.extract_strided_slice %42 {offsets = [0, 160], sizes = [24, 32], strides = [1, 1]} : vector<24x384xf32> to vector<24x32xf32>
    %74 = vector.extract_strided_slice %42 {offsets = [0, 288], sizes = [24, 32], strides = [1, 1]} : vector<24x384xf32> to vector<24x32xf32>
    %75 = arith.truncf %72 : vector<24x32xf32> to vector<24x32xbf16>
    %76 = arith.truncf %73 : vector<24x32xf32> to vector<24x32xbf16>
    %77 = tpu.transpose %76, [1, 0] : vector<24x32xbf16> -> vector<32x24xbf16>
    %cst_27 = arith.constant dense<0.000000e+00> : vector<24x24xf32>
    %78 = tpu.matmul %75, %77, %cst_27 {dimension_numbers = #tpu.dot_dimension_numbers<[1], [0], [0], [1], [0, 0, 1, 1], [], []>} : vector<24x32xbf16>, vector<32x24xbf16>, vector<24x24xf32> -> vector<24x24xf32>
    %cst_28 = arith.constant 0.353553385 : f32
    %79 = vector.broadcast %cst_28 : f32 to vector<24x24xf32>
    %80 = arith.mulf %78, %79 : vector<24x24xf32>
    %81 = arith.addf %80, %48 : vector<24x24xf32>
    %cst_29 = arith.constant dense<0xFF800000> : vector<24xf32>
    %82 = vector.multi_reduction <maximumf>, %81, %cst_29 [1] : vector<24x24xf32> to vector<24xf32>
    %83 = vector.shape_cast %82 : vector<24xf32> to vector<24x1xf32>
    %84 = vector.broadcast %83 : vector<24x1xf32> to vector<24x24xf32>
    %85 = arith.subf %81, %84 : vector<24x24xf32>
    %86 = math.exp %85 : vector<24x24xf32>
    %cst_30 = arith.constant dense<0.000000e+00> : vector<24xf32>
    %87 = vector.multi_reduction <add>, %86, %cst_30 [1] : vector<24x24xf32> to vector<24xf32>
    %88 = vector.shape_cast %87 : vector<24xf32> to vector<24x1xf32>
    %89 = tpu.reciprocal %88 {approx = true} : vector<24x1xf32> -> vector<24x1xf32>
    %90 = vector.broadcast %89 : vector<24x1xf32> to vector<24x24xf32>
    %91 = arith.mulf %86, %90 : vector<24x24xf32>
    %92 = arith.truncf %91 : vector<24x24xf32> to vector<24x24xbf16>
    %93 = arith.truncf %74 : vector<24x32xf32> to vector<24x32xbf16>
    %cst_31 = arith.constant dense<0.000000e+00> : vector<24x32xf32>
    %94 = tpu.matmul %92, %93, %cst_31 {dimension_numbers = #tpu.dot_dimension_numbers<[1], [0], [0], [1], [0, 0, 1, 1], [], []>} : vector<24x24xbf16>, vector<24x32xbf16>, vector<24x32xf32> -> vector<24x32xf32>
    %95 = vector.extract_strided_slice %42 {offsets = [0, 64], sizes = [24, 32], strides = [1, 1]} : vector<24x384xf32> to vector<24x32xf32>
    %96 = vector.extract_strided_slice %42 {offsets = [0, 192], sizes = [24, 32], strides = [1, 1]} : vector<24x384xf32> to vector<24x32xf32>
    %97 = vector.extract_strided_slice %42 {offsets = [0, 320], sizes = [24, 32], strides = [1, 1]} : vector<24x384xf32> to vector<24x32xf32>
    %98 = arith.truncf %95 : vector<24x32xf32> to vector<24x32xbf16>
    %99 = arith.truncf %96 : vector<24x32xf32> to vector<24x32xbf16>
    %100 = tpu.transpose %99, [1, 0] : vector<24x32xbf16> -> vector<32x24xbf16>
    %cst_32 = arith.constant dense<0.000000e+00> : vector<24x24xf32>
    %101 = tpu.matmul %98, %100, %cst_32 {dimension_numbers = #tpu.dot_dimension_numbers<[1], [0], [0], [1], [0, 0, 1, 1], [], []>} : vector<24x32xbf16>, vector<32x24xbf16>, vector<24x24xf32> -> vector<24x24xf32>
    %cst_33 = arith.constant 0.353553385 : f32
    %102 = vector.broadcast %cst_33 : f32 to vector<24x24xf32>
    %103 = arith.mulf %101, %102 : vector<24x24xf32>
    %104 = arith.addf %103, %48 : vector<24x24xf32>
    %cst_34 = arith.constant dense<0xFF800000> : vector<24xf32>
    %105 = vector.multi_reduction <maximumf>, %104, %cst_34 [1] : vector<24x24xf32> to vector<24xf32>
    %106 = vector.shape_cast %105 : vector<24xf32> to vector<24x1xf32>
    %107 = vector.broadcast %106 : vector<24x1xf32> to vector<24x24xf32>
    %108 = arith.subf %104, %107 : vector<24x24xf32>
    %109 = math.exp %108 : vector<24x24xf32>
    %cst_35 = arith.constant dense<0.000000e+00> : vector<24xf32>
    %110 = vector.multi_reduction <add>, %109, %cst_35 [1] : vector<24x24xf32> to vector<24xf32>
    %111 = vector.shape_cast %110 : vector<24xf32> to vector<24x1xf32>
    %112 = tpu.reciprocal %111 {approx = true} : vector<24x1xf32> -> vector<24x1xf32>
    %113 = vector.broadcast %112 : vector<24x1xf32> to vector<24x24xf32>
    %114 = arith.mulf %109, %113 : vector<24x24xf32>
    %115 = arith.truncf %114 : vector<24x24xf32> to vector<24x24xbf16>
    %116 = arith.truncf %97 : vector<24x32xf32> to vector<24x32xbf16>
    %cst_36 = arith.constant dense<0.000000e+00> : vector<24x32xf32>
    %117 = tpu.matmul %115, %116, %cst_36 {dimension_numbers = #tpu.dot_dimension_numbers<[1], [0], [0], [1], [0, 0, 1, 1], [], []>} : vector<24x24xbf16>, vector<24x32xbf16>, vector<24x32xf32> -> vector<24x32xf32>
    %118 = vector.extract_strided_slice %42 {offsets = [0, 96], sizes = [24, 32], strides = [1, 1]} : vector<24x384xf32> to vector<24x32xf32>
    %119 = vector.extract_strided_slice %42 {offsets = [0, 224], sizes = [24, 32], strides = [1, 1]} : vector<24x384xf32> to vector<24x32xf32>
    %120 = vector.extract_strided_slice %42 {offsets = [0, 352], sizes = [24, 32], strides = [1, 1]} : vector<24x384xf32> to vector<24x32xf32>
    %121 = arith.truncf %118 : vector<24x32xf32> to vector<24x32xbf16>
    %122 = arith.truncf %119 : vector<24x32xf32> to vector<24x32xbf16>
    %123 = tpu.transpose %122, [1, 0] : vector<24x32xbf16> -> vector<32x24xbf16>
    %cst_37 = arith.constant dense<0.000000e+00> : vector<24x24xf32>
    %124 = tpu.matmul %121, %123, %cst_37 {dimension_numbers = #tpu.dot_dimension_numbers<[1], [0], [0], [1], [0, 0, 1, 1], [], []>} : vector<24x32xbf16>, vector<32x24xbf16>, vector<24x24xf32> -> vector<24x24xf32>
    %cst_38 = arith.constant 0.353553385 : f32
    %125 = vector.broadcast %cst_38 : f32 to vector<24x24xf32>
    %126 = arith.mulf %124, %125 : vector<24x24xf32>
    %127 = arith.addf %126, %48 : vector<24x24xf32>
    %cst_39 = arith.constant dense<0xFF800000> : vector<24xf32>
    %128 = vector.multi_reduction <maximumf>, %127, %cst_39 [1] : vector<24x24xf32> to vector<24xf32>
    %129 = vector.shape_cast %128 : vector<24xf32> to vector<24x1xf32>
    %130 = vector.broadcast %129 : vector<24x1xf32> to vector<24x24xf32>
    %131 = arith.subf %127, %130 : vector<24x24xf32>
    %132 = math.exp %131 : vector<24x24xf32>
    %cst_40 = arith.constant dense<0.000000e+00> : vector<24xf32>
    %133 = vector.multi_reduction <add>, %132, %cst_40 [1] : vector<24x24xf32> to vector<24xf32>
    %134 = vector.shape_cast %133 : vector<24xf32> to vector<24x1xf32>
    %135 = tpu.reciprocal %134 {approx = true} : vector<24x1xf32> -> vector<24x1xf32>
    %136 = vector.broadcast %135 : vector<24x1xf32> to vector<24x24xf32>
    %137 = arith.mulf %132, %136 : vector<24x24xf32>
    %138 = arith.truncf %137 : vector<24x24xf32> to vector<24x24xbf16>
    %139 = arith.truncf %120 : vector<24x32xf32> to vector<24x32xbf16>
    %cst_41 = arith.constant dense<0.000000e+00> : vector<24x32xf32>
    %140 = tpu.matmul %138, %139, %cst_41 {dimension_numbers = #tpu.dot_dimension_numbers<[1], [0], [0], [1], [0, 0, 1, 1], [], []>} : vector<24x24xbf16>, vector<24x32xbf16>, vector<24x32xf32> -> vector<24x32xf32>
    %141 = tpu.concatenate %71, %94, %117, %140 in 1 : vector<24x32xf32>, vector<24x32xf32>, vector<24x32xf32>, vector<24x32xf32> -> vector<24x128xf32>
    %142 = arith.truncf %141 : vector<24x128xf32> to vector<24x128xbf16>
    %c0_42 = arith.constant 0 : index
    %c0_43 = arith.constant 0 : index
    %c0_44 = arith.constant 0 : index
    %143 = vector.load %arg7[%c0_42, %c0_43, %c0_44] : memref<1x128x128xbf16, #tpu.memory_space<vmem>>, vector<1x128x128xbf16>
    %144 = vector.shape_cast %143 : vector<1x128x128xbf16> to vector<128x128xbf16>
    %cst_45 = arith.constant dense<0.000000e+00> : vector<24x128xf32>
    %145 = tpu.matmul %142, %144, %cst_45 {dimension_numbers = #tpu.dot_dimension_numbers<[1], [0], [0], [1], [0, 0, 1, 1], [], []>} : vector<24x128xbf16>, vector<128x128xbf16>, vector<24x128xf32> -> vector<24x128xf32>
    %c0_46 = arith.constant 0 : index
    %c0_47 = arith.constant 0 : index
    %c0_48 = arith.constant 0 : index
    %146 = vector.load %arg8[%c0_46, %c0_47, %c0_48] : memref<1x1x128xf32, #tpu.memory_space<vmem>>, vector<1x1x128xf32>
    %147 = vector.shape_cast %146 : vector<1x1x128xf32> to vector<1x128xf32>
    %148 = vector.broadcast %147 : vector<1x128xf32> to vector<24x128xf32>
    %149 = arith.addf %145, %148 : vector<24x128xf32>
    %150 = arith.addf %4, %149 : vector<24x128xf32>
    %c0_49 = arith.constant 0 : index
    %c0_50 = arith.constant 0 : index
    %c0_51 = arith.constant 0 : index
    %151 = vector.load %arg9[%c0_49, %c0_50, %c0_51] : memref<1x1x128xf32, #tpu.memory_space<vmem>>, vector<1x1x128xf32>
    %152 = vector.shape_cast %151 : vector<1x1x128xf32> to vector<1x128xf32>
    %c0_52 = arith.constant 0 : index
    %c0_53 = arith.constant 0 : index
    %c0_54 = arith.constant 0 : index
    %153 = vector.load %arg10[%c0_52, %c0_53, %c0_54] : memref<1x1x128xf32, #tpu.memory_space<vmem>>, vector<1x1x128xf32>
    %154 = vector.shape_cast %153 : vector<1x1x128xf32> to vector<1x128xf32>
    %155 = tpu.iota {dimensions = array<i32: 1>} : vector<24x128xi32>
    %c32_i32_55 = arith.constant 32 : i32
    %156 = vector.broadcast %c32_i32_55 : i32 to vector<24x128xi32>
    %157 = arith.cmpi slt, %155, %156 : vector<24x128xi32>
    %158 = arith.extui %157 : vector<24x128xi1> to vector<24x128xi32>
    %159 = arith.sitofp %158 : vector<24x128xi32> to vector<24x128xf32>
    %cst_56 = arith.constant dense<0.000000e+00> : vector<24xf32>
    %160 = vector.multi_reduction <add>, %150, %cst_56 [1] : vector<24x128xf32> to vector<24xf32>
    %161 = vector.shape_cast %160 : vector<24xf32> to vector<24x1xf32>
    %cst_57 = arith.constant 3.125000e-02 : f32
    %162 = vector.broadcast %cst_57 : f32 to vector<24x1xf32>
    %163 = arith.mulf %161, %162 : vector<24x1xf32>
    %164 = vector.broadcast %163 : vector<24x1xf32> to vector<24x128xf32>
    %165 = arith.subf %150, %164 : vector<24x128xf32>
    %166 = arith.mulf %165, %159 : vector<24x128xf32>
    %167 = arith.mulf %166, %166 : vector<24x128xf32>
    %cst_58 = arith.constant dense<0.000000e+00> : vector<24xf32>
    %168 = vector.multi_reduction <add>, %167, %cst_58 [1] : vector<24x128xf32> to vector<24xf32>
    %169 = vector.shape_cast %168 : vector<24xf32> to vector<24x1xf32>
    %cst_59 = arith.constant 3.125000e-02 : f32
    %170 = vector.broadcast %cst_59 : f32 to vector<24x1xf32>
    %171 = arith.mulf %169, %170 : vector<24x1xf32>
    %cst_60 = arith.constant 9.99999997E-7 : f32
    %172 = vector.broadcast %cst_60 : f32 to vector<24x1xf32>
    %173 = arith.addf %171, %172 : vector<24x1xf32>
    %174 = math.rsqrt %173 : vector<24x1xf32>
    %175 = vector.broadcast %174 : vector<24x1xf32> to vector<24x128xf32>
    %176 = arith.mulf %166, %175 : vector<24x128xf32>
    %177 = vector.broadcast %152 : vector<1x128xf32> to vector<24x128xf32>
    %178 = arith.mulf %176, %177 : vector<24x128xf32>
    %179 = vector.broadcast %154 : vector<1x128xf32> to vector<24x128xf32>
    %180 = arith.addf %178, %179 : vector<24x128xf32>
    %181 = arith.truncf %180 : vector<24x128xf32> to vector<24x128xbf16>
    %c0_61 = arith.constant 0 : index
    %c0_62 = arith.constant 0 : index
    %c0_63 = arith.constant 0 : index
    %182 = vector.load %arg11[%c0_61, %c0_62, %c0_63] : memref<1x128x128xbf16, #tpu.memory_space<vmem>>, vector<1x128x128xbf16>
    %183 = vector.shape_cast %182 : vector<1x128x128xbf16> to vector<128x128xbf16>
    %cst_64 = arith.constant dense<0.000000e+00> : vector<24x128xf32>
    %184 = tpu.matmul %181, %183, %cst_64 {dimension_numbers = #tpu.dot_dimension_numbers<[1], [0], [0], [1], [0, 0, 1, 1], [], []>} : vector<24x128xbf16>, vector<128x128xbf16>, vector<24x128xf32> -> vector<24x128xf32>
    %c0_65 = arith.constant 0 : index
    %c0_66 = arith.constant 0 : index
    %c0_67 = arith.constant 0 : index
    %185 = vector.load %arg12[%c0_65, %c0_66, %c0_67] : memref<1x1x128xf32, #tpu.memory_space<vmem>>, vector<1x1x128xf32>
    %186 = vector.shape_cast %185 : vector<1x1x128xf32> to vector<1x128xf32>
    %187 = vector.broadcast %186 : vector<1x128xf32> to vector<24x128xf32>
    %188 = arith.addf %184, %187 : vector<24x128xf32>
    %189 = arith.mulf %188, %188 : vector<24x128xf32>
    %190 = arith.mulf %188, %189 : vector<24x128xf32>
    %cst_68 = arith.constant 4.471500e-02 : f32
    %191 = vector.broadcast %cst_68 : f32 to vector<24x128xf32>
    %192 = arith.mulf %191, %190 : vector<24x128xf32>
    %193 = arith.addf %188, %192 : vector<24x128xf32>
    %cst_69 = arith.constant 0.797884583 : f32
    %194 = vector.broadcast %cst_69 : f32 to vector<24x128xf32>
    %195 = arith.mulf %194, %193 : vector<24x128xf32>
    %196 = math.tanh %195 : vector<24x128xf32>
    %cst_70 = arith.constant 1.000000e+00 : f32
    %197 = vector.broadcast %cst_70 : f32 to vector<24x128xf32>
    %198 = arith.addf %197, %196 : vector<24x128xf32>
    %cst_71 = arith.constant 5.000000e-01 : f32
    %199 = vector.broadcast %cst_71 : f32 to vector<24x128xf32>
    %200 = arith.mulf %199, %198 : vector<24x128xf32>
    %201 = arith.mulf %188, %200 : vector<24x128xf32>
    %202 = arith.truncf %201 : vector<24x128xf32> to vector<24x128xbf16>
    %c0_72 = arith.constant 0 : index
    %c0_73 = arith.constant 0 : index
    %c0_74 = arith.constant 0 : index
    %203 = vector.load %arg13[%c0_72, %c0_73, %c0_74] : memref<1x128x128xbf16, #tpu.memory_space<vmem>>, vector<1x128x128xbf16>
    %204 = vector.shape_cast %203 : vector<1x128x128xbf16> to vector<128x128xbf16>
    %cst_75 = arith.constant dense<0.000000e+00> : vector<24x128xf32>
    %205 = tpu.matmul %202, %204, %cst_75 {dimension_numbers = #tpu.dot_dimension_numbers<[1], [0], [0], [1], [0, 0, 1, 1], [], []>} : vector<24x128xbf16>, vector<128x128xbf16>, vector<24x128xf32> -> vector<24x128xf32>
    %c0_76 = arith.constant 0 : index
    %c0_77 = arith.constant 0 : index
    %c0_78 = arith.constant 0 : index
    %206 = vector.load %arg14[%c0_76, %c0_77, %c0_78] : memref<1x1x128xf32, #tpu.memory_space<vmem>>, vector<1x1x128xf32>
    %207 = vector.shape_cast %206 : vector<1x1x128xf32> to vector<1x128xf32>
    %208 = vector.broadcast %207 : vector<1x128xf32> to vector<24x128xf32>
    %209 = arith.addf %205, %208 : vector<24x128xf32>
    %210 = arith.addf %150, %209 : vector<24x128xf32>
    %c0_79 = arith.constant 0 : index
    %c0_80 = arith.constant 0 : index
    %c0_81 = arith.constant 0 : index
    %211 = vector.load %arg17[%c0_79, %c0_80, %c0_81] : memref<1x24x128xf32, #tpu.memory_space<vmem>>, vector<1x24x128xf32>
    %212 = vector.shape_cast %211 : vector<1x24x128xf32> to vector<24x128xf32>
    %213 = vector.shape_cast %210 : vector<24x128xf32> to vector<1x24x128xf32>
    tpu.vector_store %arg17[%c0_79, %c0_80, %c0_81], %213 {strides = array<i32>} : memref<1x24x128xf32, #tpu.memory_space<vmem>>, vector<1x24x128xf32>,
    %c1_i32 = arith.constant 1 : i32
    %214 = arith.cmpi eq, %arg1, %c1_i32 : i32
    %215 = arith.extui %214 : i1 to i32
    %c0_i32_82 = arith.constant 0 : i32
    %216 = arith.cmpi ne, %215, %c0_i32_82 : i32
    scf.if %216 {
      %c0_83 = arith.constant 0 : index
      %c0_84 = arith.constant 0 : index
      %c0_85 = arith.constant 0 : index
      %217 = vector.load %arg15[%c0_83, %c0_84, %c0_85] : memref<1x1x128xf32, #tpu.memory_space<vmem>>, vector<1x1x128xf32>
      %218 = vector.shape_cast %217 : vector<1x1x128xf32> to vector<1x128xf32>
      %c0_86 = arith.constant 0 : index
      %c0_87 = arith.constant 0 : index
      %c0_88 = arith.constant 0 : index
      %219 = vector.load %arg16[%c0_86, %c0_87, %c0_88] : memref<1x1x128xf32, #tpu.memory_space<vmem>>, vector<1x1x128xf32>
      %220 = vector.shape_cast %219 : vector<1x1x128xf32> to vector<1x128xf32>
      %221 = tpu.iota {dimensions = array<i32: 1>} : vector<24x128xi32>
      %c32_i32_89 = arith.constant 32 : i32
      %222 = vector.broadcast %c32_i32_89 : i32 to vector<24x128xi32>
      %223 = arith.cmpi slt, %221, %222 : vector<24x128xi32>
      %224 = arith.extui %223 : vector<24x128xi1> to vector<24x128xi32>
      %225 = arith.sitofp %224 : vector<24x128xi32> to vector<24x128xf32>
      %cst_90 = arith.constant dense<0.000000e+00> : vector<24xf32>
      %226 = vector.multi_reduction <add>, %210, %cst_90 [1] : vector<24x128xf32> to vector<24xf32>
      %227 = vector.shape_cast %226 : vector<24xf32> to vector<24x1xf32>
      %cst_91 = arith.constant 3.125000e-02 : f32
      %228 = vector.broadcast %cst_91 : f32 to vector<24x1xf32>
      %229 = arith.mulf %227, %228 : vector<24x1xf32>
      %230 = vector.broadcast %229 : vector<24x1xf32> to vector<24x128xf32>
      %231 = arith.subf %210, %230 : vector<24x128xf32>
      %232 = arith.mulf %231, %225 : vector<24x128xf32>
      %233 = arith.mulf %232, %232 : vector<24x128xf32>
      %cst_92 = arith.constant dense<0.000000e+00> : vector<24xf32>
      %234 = vector.multi_reduction <add>, %233, %cst_92 [1] : vector<24x128xf32> to vector<24xf32>
      %235 = vector.shape_cast %234 : vector<24xf32> to vector<24x1xf32>
      %cst_93 = arith.constant 3.125000e-02 : f32
      %236 = vector.broadcast %cst_93 : f32 to vector<24x1xf32>
      %237 = arith.mulf %235, %236 : vector<24x1xf32>
      %cst_94 = arith.constant 9.99999997E-7 : f32
      %238 = vector.broadcast %cst_94 : f32 to vector<24x1xf32>
      %239 = arith.addf %237, %238 : vector<24x1xf32>
      %240 = math.rsqrt %239 : vector<24x1xf32>
      %241 = vector.broadcast %240 : vector<24x1xf32> to vector<24x128xf32>
      %242 = arith.mulf %232, %241 : vector<24x128xf32>
      %243 = vector.broadcast %218 : vector<1x128xf32> to vector<24x128xf32>
      %244 = arith.mulf %242, %243 : vector<24x128xf32>
      %245 = vector.broadcast %220 : vector<1x128xf32> to vector<24x128xf32>
      %246 = arith.addf %244, %245 : vector<24x128xf32>
      %c0_95 = arith.constant 0 : index
      %c0_96 = arith.constant 0 : index
      %c0_97 = arith.constant 0 : index
      %247 = vector.load %arg17[%c0_95, %c0_96, %c0_97] : memref<1x24x128xf32, #tpu.memory_space<vmem>>, vector<1x24x128xf32>
      %248 = vector.shape_cast %247 : vector<1x24x128xf32> to vector<24x128xf32>
      %249 = vector.shape_cast %246 : vector<24x128xf32> to vector<1x24x128xf32>
      tpu.vector_store %arg17[%c0_95, %c0_96, %c0_97], %249 {strides = array<i32>} : memref<1x24x128xf32, #tpu.memory_space<vmem>>, vector<1x24x128xf32>,
    } else {
    }
    return
  }
  func.func @transform_0(%arg0: i32, %arg1: i32) -> (i32, i32, i32) {
    %c0_i32 = arith.constant 0 : i32
    %c0_i32_0 = arith.constant 0 : i32
    %c0_i32_1 = arith.constant 0 : i32
    return %arg0, %c0_i32, %c0_i32_0 : i32, i32, i32
  }
  func.func @transform_1(%arg0: i32, %arg1: i32) -> (i32, i32, i32) {
    %c0_i32 = arith.constant 0 : i32
    %c0_i32_0 = arith.constant 0 : i32
    %c0_i32_1 = arith.constant 0 : i32
    return %arg1, %c0_i32, %c0_i32_0 : i32, i32, i32
  }
  func.func @transform_2(%arg0: i32, %arg1: i32) -> (i32, i32, i32) {
    %c0_i32 = arith.constant 0 : i32
    %c0_i32_0 = arith.constant 0 : i32
    %c0_i32_1 = arith.constant 0 : i32
    return %arg1, %c0_i32, %c0_i32_0 : i32, i32, i32
  }
  func.func @transform_3(%arg0: i32, %arg1: i32) -> (i32, i32, i32) {
    %c0_i32 = arith.constant 0 : i32
    %c0_i32_0 = arith.constant 0 : i32
    %c0_i32_1 = arith.constant 0 : i32
    return %arg1, %c0_i32, %c0_i32_0 : i32, i32, i32
  }
  func.func @transform_4(%arg0: i32, %arg1: i32) -> (i32, i32, i32) {
    %c0_i32 = arith.constant 0 : i32
    %c0_i32_0 = arith.constant 0 : i32
    %c0_i32_1 = arith.constant 0 : i32
    return %arg1, %c0_i32, %c0_i32_0 : i32, i32, i32
  }
  func.func @transform_5(%arg0: i32, %arg1: i32) -> (i32, i32, i32) {
    %c0_i32 = arith.constant 0 : i32
    %c0_i32_0 = arith.constant 0 : i32
    %c0_i32_1 = arith.constant 0 : i32
    return %arg1, %c0_i32, %c0_i32_0 : i32, i32, i32
  }
  func.func @transform_6(%arg0: i32, %arg1: i32) -> (i32, i32, i32) {
    %c0_i32 = arith.constant 0 : i32
    %c0_i32_0 = arith.constant 0 : i32
    %c0_i32_1 = arith.constant 0 : i32
    return %arg1, %c0_i32, %c0_i32_0 : i32, i32, i32
  }
  func.func @transform_7(%arg0: i32, %arg1: i32) -> (i32, i32, i32) {
    %c0_i32 = arith.constant 0 : i32
    %c0_i32_0 = arith.constant 0 : i32
    %c0_i32_1 = arith.constant 0 : i32
    return %arg1, %c0_i32, %c0_i32_0 : i32, i32, i32
  }
  func.func @transform_8(%arg0: i32, %arg1: i32) -> (i32, i32, i32) {
    %c0_i32 = arith.constant 0 : i32
    %c0_i32_0 = arith.constant 0 : i32
    %c0_i32_1 = arith.constant 0 : i32
    return %arg1, %c0_i32, %c0_i32_0 : i32, i32, i32
  }
  func.func @transform_9(%arg0: i32, %arg1: i32) -> (i32, i32, i32) {
    %c0_i32 = arith.constant 0 : i32
    %c0_i32_0 = arith.constant 0 : i32
    %c0_i32_1 = arith.constant 0 : i32
    return %arg1, %c0_i32, %c0_i32_0 : i32, i32, i32
  }
  func.func @transform_10(%arg0: i32, %arg1: i32) -> (i32, i32, i32) {
    %c0_i32 = arith.constant 0 : i32
    %c0_i32_0 = arith.constant 0 : i32
    %c0_i32_1 = arith.constant 0 : i32
    return %arg1, %c0_i32, %c0_i32_0 : i32, i32, i32
  }
  func.func @transform_11(%arg0: i32, %arg1: i32) -> (i32, i32, i32) {
    %c0_i32 = arith.constant 0 : i32
    %c0_i32_0 = arith.constant 0 : i32
    %c0_i32_1 = arith.constant 0 : i32
    return %arg1, %c0_i32, %c0_i32_0 : i32, i32, i32
  }
  func.func @transform_12(%arg0: i32, %arg1: i32) -> (i32, i32, i32) {
    %c0_i32 = arith.constant 0 : i32
    %c0_i32_0 = arith.constant 0 : i32
    %c0_i32_1 = arith.constant 0 : i32
    return %arg1, %c0_i32, %c0_i32_0 : i32, i32, i32
  }
  func.func @transform_13(%arg0: i32, %arg1: i32) -> (i32, i32, i32) {
    %c0_i32 = arith.constant 0 : i32
    %c0_i32_0 = arith.constant 0 : i32
    %c0_i32_1 = arith.constant 0 : i32
    %c0_i32_2 = arith.constant 0 : i32
    return %c0_i32, %c0_i32_0, %c0_i32_1 : i32, i32, i32
  }
  func.func @transform_14(%arg0: i32, %arg1: i32) -> (i32, i32, i32) {
    %c0_i32 = arith.constant 0 : i32
    %c0_i32_0 = arith.constant 0 : i32
    %c0_i32_1 = arith.constant 0 : i32
    %c0_i32_2 = arith.constant 0 : i32
    return %c0_i32, %c0_i32_0, %c0_i32_1 : i32, i32, i32
  }
  func.func @transform_15(%arg0: i32, %arg1: i32) -> (i32, i32, i32) {
    %c0_i32 = arith.constant 0 : i32
    %c0_i32_0 = arith.constant 0 : i32
    %c0_i32_1 = arith.constant 0 : i32
    return %arg0, %c0_i32, %c0_i32_0 : i32, i32, i32
  }
}

</mosaic_0001>

<llo_original>
// kernel: detr_encoder_forward.2
$region0: #{detr_encoder_forward.2}
  #allocation0 [shape = 'u32[]', space=smem, size = 0x4, offset = 0x4, fixed_abs, tag = 'smem constant byte address 0x4 - core index']
  #allocation1 [shape = 'u32[144,128]{1,0:T(1,128)}', space=vmem, size = 0x12000, scoped, tag = 'internal scratch']
  %s0 = inlined_call_operand.vmem [shape: f32[32,192], index: 0, kind: input, shape index: {}]
  %s1 = inlined_call_operand.vmem [shape: bf16[192,128], index: 1, kind: input, shape index: {}]
  %s2 = inlined_call_operand.vmem [shape: f32[1,128], index: 2, kind: input, shape index: {}]
  %s3 = inlined_call_operand.vmem [shape: f32[32,128], index: 3, kind: output, shape index: {}]
  %s4 = sld [smem:[#allocation0]]
  $region45: #{detr_encoder_forward.2} parent=0
    _
  %s6 = ssub.s32 1, %s4
  %s7 = scalar_select 0, %s6, %s4
  loop: start=0, step=1, limit=4
  $region2: #{detr_encoder_forward.2} parent=0 // loop_pre_header
    _
  $region3: #{detr_encoder_forward.2} parent=0 // loop_header
    %s9 = sphi 0, %s13
    %p10 = scmp.ge.s32.totalorder %s9, 4
    %s19 = sphi 0, %s21
    %s22 = sphi 0, %s19
    %s23 = sphi 0, %s22
    %s39 = sphi 0, %s23
    %s43 = sphi 0, %s43
    %s45 = sphi 0, %s43
    %s46 = sphi 0, %s45
    %s60 = sphi 0, %s46
    %s64 = sphi 0, %s64
    %s66 = sphi 0, %s64
    %s67 = sphi 0, %s66
    %s81 = sphi 0, %s67
    %s87 = sphi 0, %s89
    %s90 = sphi 0, %s87
    %s91 = sphi 0, %s90
    %s107 = sphi 0, %s91
  $region4: #{detr_encoder_forward.2} parent=0 // loop_header_branch
    %12 = sbr.rel (%p10) target = $region8
  $region5: #{detr_encoder_forward.2} parent=0 // loop_body
    %s14 = ssub.s32 %s9, 1
    %s15 = ssub.s32 %s9, 2
    %s16 = sadd.s32 %s9, 1
    %s17 = ssub.s32 %s9, %s16
    %p18 = scmp.eq.s32.totalorder %s17, 0
    %s20 = sadd.s32 %s19, 1
    %s21 = scalar_select %p18, %s19, %s20
    %p24 = pneg %p18
    %p25 = scmp.eq.s32.totalorder %s9, 1
    %p26 = por %p24, %p25
    %p27 = scmp.ne.s32.totalorder %s19, %s22
    %p28 = scmp.eq.s32.totalorder %s9, 0
    %p29 = por %p27, %p28
    %p30 = scmp.ne.s32.totalorder %s19, %s22
    %p31 = scmp.eq.s32.totalorder %s14, 1
    %p32 = por %p30, %p31
    %p33 = scmp.ne.s32.totalorder %s22, %s23
    %p34 = scmp.eq.s32.totalorder %s14, 0
    %p35 = por %p33, %p34
    %p36 = scmp.ne.s32.totalorder %s22, %s23
    %p37 = scmp.eq.s32.totalorder %s15, 1
    %p38 = por %p36, %p37
    %p40 = scmp.ne.s32.totalorder %s23, %s39
    %p41 = scmp.eq.s32.totalorder %s15, 0
    %p42 = por %p40, %p41
    %s44 = sadd.s32 %s43, 1
    %p47 = scmp.eq.s32.totalorder %s9, 1
    %p48 = scmp.ne.s32.totalorder %s43, %s45
    %p49 = scmp.eq.s32.totalorder %s9, 0
    %p50 = por %p48, %p49
    %p51 = scmp.ne.s32.totalorder %s43, %s45
    %p52 = scmp.eq.s32.totalorder %s14, 1
    %p53 = por %p51, %p52
    %p54 = scmp.ne.s32.totalorder %s45, %s46
    %p55 = scmp.eq.s32.totalorder %s14, 0
    %p56 = por %p54, %p55
    %p57 = scmp.ne.s32.totalorder %s45, %s46
    %p58 = scmp.eq.s32.totalorder %s15, 1
    %p59 = por %p57, %p58
    %p61 = scmp.ne.s32.totalorder %s46, %s60
    %p62 = scmp.eq.s32.totalorder %s15, 0
    %p63 = por %p61, %p62
    %s65 = sadd.s32 %s64, 1
    %p68 = scmp.eq.s32.totalorder %s9, 1
    %p69 = scmp.ne.s32.totalorder %s64, %s66
    %p70 = scmp.eq.s32.totalorder %s9, 0
    %p71 = por %p69, %p70
    %p72 = scmp.ne.s32.totalorder %s64, %s66
    %p73 = scmp.eq.s32.totalorder %s14, 1
    %p74 = por %p72, %p73
    %p75 = scmp.ne.s32.totalorder %s66, %s67
    %p76 = scmp.eq.s32.totalorder %s14, 0
    %p77 = por %p75, %p76
    %p78 = scmp.ne.s32.totalorder %s66, %s67
    %p79 = scmp.eq.s32.totalorder %s15, 1
    %p80 = por %p78, %p79
    %p82 = scmp.ne.s32.totalorder %s67, %s81
    %p83 = scmp.eq.s32.totalorder %s15, 0
    %p84 = por %p82, %p83
    %s85 = ssub.s32 %s9, %s16
    %p86 = scmp.eq.s32.totalorder %s85, 0
    %s88 = sadd.s32 %s87, 1
    %s89 = scalar_select %p86, %s87, %s88
    %p92 = pneg %p86
    %p93 = scmp.eq.s32.totalorder %s9, 1
    %p94 = por %p92, %p93
    %p95 = scmp.ne.s32.totalorder %s87, %s90
    %p96 = scmp.eq.s32.totalorder %s9, 0
    %p97 = por %p95, %p96
    %p98 = scmp.ne.s32.totalorder %s87, %s90
    %p99 = scmp.eq.s32.totalorder %s14, 1
    %p100 = por %p98, %p99
    %p101 = scmp.ne.s32.totalorder %s90, %s91
    %p102 = scmp.eq.s32.totalorder %s14, 0
    %p103 = por %p101, %p102
    %p104 = scmp.ne.s32.totalorder %s90, %s91
    %p105 = scmp.eq.s32.totalorder %s15, 1
    %p106 = por %p104, %p105
    %p108 = scmp.ne.s32.totalorder %s91, %s107
    %p109 = scmp.eq.s32.totalorder %s15, 0
    %p110 = por %p108, %p109
    %p111 = scmp.le.s32.totalorder 1, %s9
    %p112 = scmp.lt.s32.totalorder %s9, 3
    %p113 = pnand %p111, %p112
    %p114 = pneg %p113
    // Predicated region
    $region9: #{detr_encoder_forward.2} parent=5 // pred_check
      _
    $region10: #{detr_encoder_forward.2} parent=5 // pred_check_branch
      %116 = sbr.rel (%p113) target = $region12
    $region11: #{detr_encoder_forward.2} parent=5 // pred_region
      %s117 = ssub.s32 %s9, 1
      // Predicated region
      $region13: #{detr_encoder_forward.2} parent=11 // pred_check
        %p118 = pneg %p56
      $region14: #{detr_encoder_forward.2} parent=11 // pred_check_branch
        %120 = sbr.rel (%p118) target = $region16
      $region15: #{detr_encoder_forward.2} parent=11 // pred_region
        _
      $region16: #{detr_encoder_forward.2} parent=11 // pred_fallthru
        _
      // Predicated region
      $region17: #{detr_encoder_forward.2} parent=11 // pred_check
        %p121 = pneg %p77
      $region18: #{detr_encoder_forward.2} parent=11 // pred_check_branch
        %123 = sbr.rel (%p121) target = $region20
      $region19: #{detr_encoder_forward.2} parent=11 // pred_region
        _
      $region20: #{detr_encoder_forward.2} parent=11 // pred_fallthru
        _
    $region12: #{detr_encoder_forward.2} parent=5 // pred_fallthru
      _
    %p124 = scmp.lt.s32.totalorder %s9, 2
    // Predicated region
    $region21: #{detr_encoder_forward.2} parent=5 // pred_check
      %p125 = pneg %p124
    $region22: #{detr_encoder_forward.2} parent=5 // pred_check_branch
      %127 = sbr.rel (%p125) target = $region24
    $region23: #{detr_encoder_forward.2} parent=5 // pred_region
      // Predicated region
      $region25: #{detr_encoder_forward.2} parent=23 // pred_check
        %p128 = pneg %p29
      $region26: #{detr_encoder_forward.2} parent=23 // pred_check_branch
        %130 = sbr.rel (%p128) target = $region28
      $region27: #{detr_encoder_forward.2} parent=23 // pred_region
        %s131 = smul.u32 2, %s9
        %p132 = scmp.lt.s32.totalorder %s131, 3
        %s133 = scalar_select %p132, %s131, 3
        %s134 = smul.addr %s133, 2
        %s135 = smul.addr %s134, 8
        %s136 = scalar_lea.vmem %s0, %s135
        %s137 = smul.u32 2, %s9
      $region28: #{detr_encoder_forward.2} parent=23 // pred_fallthru
        _
    $region24: #{detr_encoder_forward.2} parent=5 // pred_fallthru
      _
    %p138 = scmp.le.s32.totalorder 1, %s9
    %p139 = scmp.lt.s32.totalorder %s9, 3
    %p140 = pnand %p138, %p139
    %p141 = pneg %p140
    // Predicated region
    $region29: #{detr_encoder_forward.2} parent=5 // pred_check
      _
    $region30: #{detr_encoder_forward.2} parent=5 // pred_check_branch
      %143 = sbr.rel (%p140) target = $region32
    $region31: #{detr_encoder_forward.2} parent=5 // pred_region
      %s144 = ssub.s32 %s9, 1
      %s145 = smul.u32 2, %s14
      %p146 = scmp.lt.s32.totalorder %s145, 3
      %s147 = scalar_select %p146, %s145, 3
      %s148 = smul.addr %s147, 2
      %s149 = smul.addr %s148, 8
      %s150 = scalar_lea.vmem %s0, %s149
      %p151 = pneg %p35
      %p152 = pneg %p32
      %p153 = pneg %p56
      %p154 = pneg %p53
      %p155 = pneg %p77
      %p156 = pneg %p74
      %p157 = pneg %p103
      %p158 = pneg %p100
      %s159 = smul.u32 2, %s14
      %p160 = scmp.lt.s32.totalorder %s159, 3
      %s161 = scalar_select %p160, %s159, 3
      %s162 = smul.addr %s161, 8
      %s163 = scalar_lea.vmem %s3, %s162
      %s164 = smul.u32 2, %s14
      %p165 = scmp.lt.s32.totalorder %s164, 3
      %s166 = scalar_select %p165, %s164, 3
      %s167 = smul.addr %s166, 2
      %s168 = smul.addr %s167, 8
      %s169 = scalar_lea.vmem %s0, %s168
      %s170 = smul.u32 2, %s14
      %s171 = smul.u32 2, %s14
      %p172 = scmp.lt.s32.totalorder %s171, 3
      %s173 = scalar_select %p172, %s171, 3
      %s174 = smul.addr %s173, 8
      %s175 = scalar_lea.vmem %s3, %s174
      %s176 = smul.u32 2, %s14
      %v178 = vld [vmem:[%s169] sm:$0xff]
      %v179 = vld [vmem:[%s169 + $0x8] sm:$0xff]
      %v180 = vld [vmem:[%s169 + $0x10] sm:$0xff]
      %v181 = vld [vmem:[%s169 + $0x18] sm:$0xff]
      %v182 = vpack.c.bf16 %v180, %v178
      %v183 = vpack.c.bf16 %v181, %v179
      %v184 = vld [vmem:[%s1] sm:$0xf]
      %v185 = vld [vmem:[%s1 + $0x4] sm:$0xf]
      %v186 = vld [vmem:[%s1 + $0x8] sm:$0xf]
      %v187 = vld [vmem:[%s1 + $0xc] sm:$0xf]
      %v188 = vld [vmem:[%s1 + $0x10] sm:$0xf]
      %v189 = vld [vmem:[%s1 + $0x14] sm:$0xf]
      %v190 = vld [vmem:[%s1 + $0x18] sm:$0xf]
      %v191 = vld [vmem:[%s1 + $0x1c] sm:$0xf]
      %v192 = vld [vmem:[%s1 + $0x20] sm:$0xf]
      %v193 = vld [vmem:[%s1 + $0x24] sm:$0xf]
      %v194 = vld [vmem:[%s1 + $0x28] sm:$0xf]
      %v195 = vld [vmem:[%s1 + $0x2c] sm:$0xf]
      %v196 = vld [vmem:[%s1 + $0x30] sm:$0xf]
      %v197 = vld [vmem:[%s1 + $0x34] sm:$0xf]
      %v198 = vld [vmem:[%s1 + $0x38] sm:$0xf]
      %v199 = vld [vmem:[%s1 + $0x3c] sm:$0xf]
      %v200 = vld [vmem:[%s1 + $0x40] sm:$0xf]
      %v201 = vld [vmem:[%s1 + $0x44] sm:$0xf]
      %v202 = vld [vmem:[%s1 + $0x48] sm:$0xf]
      %v203 = vld [vmem:[%s1 + $0x4c] sm:$0xf]
      %v204 = vld [vmem:[%s1 + $0x50] sm:$0xf]
      %v205 = vld [vmem:[%s1 + $0x54] sm:$0xf]
      %v206 = vld [vmem:[%s1 + $0x58] sm:$0xf]
      %v207 = vld [vmem:[%s1 + $0x5c] sm:$0xf]
      %v208 = vld [vmem:[%s2] sm:$0x1]
      %v210 = vlaneseq
      %v211 = vshrl.u32 %v210, 7
      %v212 = vsub.s32 0, %v211
      %v213 = vrot.slane %v208, %v212
      %v239 = vunpack.c.l.b16 %v184
      %v240 = vunpack.c.l.b16 %v185
      %v241 = vunpack.c.l.b16 %v186
      %v242 = vunpack.c.l.b16 %v187
      %v243 = vunpack.c.l.b16 %v188
      %v244 = vunpack.c.l.b16 %v189
      %v245 = vunpack.c.l.b16 %v190
      %v246 = vunpack.c.l.b16 %v191
      %v247 = vunpack.c.l.b16 %v192
      %v248 = vunpack.c.l.b16 %v193
      %v249 = vunpack.c.l.b16 %v194
      %v250 = vunpack.c.l.b16 %v195
      %v251 = vunpack.c.l.b16 %v196
      %v252 = vunpack.c.l.b16 %v197
      %v253 = vunpack.c.l.b16 %v198
      %v254 = vunpack.c.l.b16 %v199
      %v255 = vunpack.c.l.b16 %v200
      %v256 = vunpack.c.l.b16 %v201
      %v257 = vunpack.c.l.b16 %v202
      %v258 = vunpack.c.l.b16 %v203
      %v259 = vunpack.c.l.b16 %v204
      %v260 = vunpack.c.l.b16 %v205
      %v261 = vunpack.c.l.b16 %v206
      %v262 = vunpack.c.l.b16 %v207
      %v263 = vpack.c.b16 %v240, %v239
      %v264 = vpack.c.b16 %v242, %v241
      %v265 = vpack.c.b16 %v244, %v243
      %v266 = vpack.c.b16 %v246, %v245
      %v267 = vpack.c.b16 %v248, %v247
      %v268 = vpack.c.b16 %v250, %v249
      %v269 = vpack.c.b16 %v252, %v251
      %v270 = vpack.c.b16 %v254, %v253
      %v271 = vpack.c.b16 %v256, %v255
      %v272 = vpack.c.b16 %v258, %v257
      %v273 = vpack.c.b16 %v260, %v259
      %v274 = vpack.c.b16 %v262, %v261
      %vm287 = vcmask 523264
      %v289 = vsel %vm287, %v183, 0
      %291 = vmatprep.subr.bf16.mxu0 0
      %292 = vmatpush1.bf16.msra.mxu0 %v263
      %293 = vmatprep.subr.bf16.mxu0 0
      %294 = vmatpush1.bf16.msra.mxu0 %v264
      %295 = vmatprep.subr.bf16.mxu0 0
      %296 = vmatpush1.bf16.msra.mxu0 %v265
      %297 = vmatprep.subr.bf16.mxu0 0
      %298 = vmatpush1.bf16.msra.mxu0 %v266
      %299 = vmatprep.subr.bf16.mxu0 0
      %300 = vmatpush1.bf16.msra.mxu0 %v267
      %301 = vmatprep.subr.bf16.mxu0 0
      %302 = vmatpush1.bf16.msra.mxu0 %v268
      %303 = vmatprep.subr.bf16.mxu0 0
      %304 = vmatpush1.bf16.msra.mxu0 %v269
      %305 = vmatprep.subr.bf16.mxu0 0
      %306 = vmatpush1.bf16.msra.mxu0 %v270
      %307 = vmatprep.subr.bf16.mxu0 0
      %308 = vmatpush1.bf16.msra.mxu0 %v271
      %309 = vmatprep.subr.bf16.mxu0 0
      %310 = vmatpush1.bf16.msra.mxu0 %v272
      %311 = vmatprep.subr.bf16.mxu0 0
      %312 = vmatpush1.bf16.msra.mxu0 %v273
      %313 = vmatprep.subr.bf16.mxu0 0
      %314 = vmatpush1.bf16.msra.mxu0 %v274
      %315 = vmatprep.subr.bf16.mxu0 0
      %316 = vmatpush1.bf16.msra.mxu0 0
      %317 = vmatprep.subr.bf16.mxu0 0
      %318 = vmatpush1.bf16.msra.mxu0 0
      %319 = vmatprep.subr.bf16.mxu0 0
      %320 = vmatpush1.bf16.msra.mxu0 0
      %321 = vmatprep.subr.bf16.mxu0 0
      %322 = vmatpush1.bf16.msra.mxu0 0
      %323 = vmatprep.mubr.bf16.mxu0 %v289
      %324 = vmatmul.mubr.bf16.gmra.mrb[0].mxu0 %v182
      %v325 = vpop.f32.mrb[0].mxu0
      %v326 = vadd.f32 %v213, %v325
      %v327 = vpop.f32.mrb[0].mxu0
      %v328 = vpop.f32.mrb[0].mxu0
      %v329 = vadd.f32 %v213, %v328
      %v330 = vpop.f32.mrb[0].mxu0
      %331 = vdwg.mxu0
      %332 = vst [vmem:[%s175] sm:$0xff] %v326
      %333 = vst [vmem:[%s175 + $0x8] sm:$0xff] %v329
      %s334 = smul.u32 2, %s14
      %p335 = scmp.lt.s32.totalorder %s334, 3
      %s336 = scalar_select %p335, %s334, 3
      %s337 = smul.addr %s336, 8
      %s338 = scalar_lea.vmem %s3, %s337
      // Predicated region
      $region33: #{detr_encoder_forward.2} parent=31 // pred_check
        %p339 = pneg %p100
      $region34: #{detr_encoder_forward.2} parent=31 // pred_check_branch
        %341 = sbr.rel (%p339) target = $region36
      $region35: #{detr_encoder_forward.2} parent=31 // pred_region
        %s342 = smul.u32 2, %s14
      $region36: #{detr_encoder_forward.2} parent=31 // pred_fallthru
        _
    $region32: #{detr_encoder_forward.2} parent=5 // pred_fallthru
      _
    %p343 = scmp.le.s32.totalorder 2, %s9
    // Predicated region
    $region37: #{detr_encoder_forward.2} parent=5 // pred_check
      %p344 = pneg %p343
    $region38: #{detr_encoder_forward.2} parent=5 // pred_check_branch
      %346 = sbr.rel (%p344) target = $region40
    $region39: #{detr_encoder_forward.2} parent=5 // pred_region
      %s347 = ssub.s32 %s9, 2
      // Predicated region
      $region41: #{detr_encoder_forward.2} parent=39 // pred_check
        %p348 = pneg %p106
      $region42: #{detr_encoder_forward.2} parent=39 // pred_check_branch
        %350 = sbr.rel (%p348) target = $region44
      $region43: #{detr_encoder_forward.2} parent=39 // pred_region
        %s351 = smul.u32 2, %s15
        %p352 = scmp.lt.s32.totalorder %s351, 3
        %s353 = scalar_select %p352, %s351, 3
        %s354 = smul.addr %s353, 8
        %s355 = scalar_lea.vmem %s3, %s354
      $region44: #{detr_encoder_forward.2} parent=39 // pred_fallthru
        _
    $region40: #{detr_encoder_forward.2} parent=5 // pred_fallthru
      _
  $region6: #{detr_encoder_forward.2} parent=0 // loop_footer
    %s13 = sadd.s32 1, %s9
  $region7: #{detr_encoder_forward.2} parent=0 // loop_footer_branch
    %8 = sbr.rel target = $region3
  $region8: #{detr_encoder_forward.2} parent=0 // loop_exit
    _

// kernel: detr_encoder_forward.3
$region0: #{detr_encoder_forward.3}
  #allocation0 [shape = 'u32[]', space=smem, size = 0x4, offset = 0x4, fixed_abs, tag = 'smem constant byte address 0x4 - core index']
  #allocation1 [shape = 'u32[144,128]{1,0:T(1,128)}', space=vmem, size = 0x12000, scoped, tag = 'internal scratch']
  %s0 = inlined_call_operand.vmem [shape: f32[2,24,128], index: 0, kind: input, shape index: {}]
  %s1 = inlined_call_operand.vmem [shape: f32[2,1,128], index: 1, kind: input, shape index: {}]
  %s2 = inlined_call_operand.vmem [shape: f32[2,1,128], index: 2, kind: input, shape index: {}]
  %s3 = inlined_call_operand.vmem [shape: bf16[2,128,384], index: 3, kind: input, shape index: {}]
  %s4 = inlined_call_operand.vmem [shape: f32[2,1,384], index: 4, kind: input, shape index: {}]
  %s5 = inlined_call_operand.vmem [shape: bf16[2,128,128], index: 5, kind: input, shape index: {}]
  %s6 = inlined_call_operand.vmem [shape: f32[2,1,128], index: 6, kind: input, shape index: {}]
  %s7 = inlined_call_operand.vmem [shape: f32[2,1,128], index: 7, kind: input, shape index: {}]
  %s8 = inlined_call_operand.vmem [shape: f32[2,1,128], index: 8, kind: input, shape index: {}]
  %s9 = inlined_call_operand.vmem [shape: bf16[2,128,128], index: 9, kind: input, shape index: {}]
  %s10 = inlined_call_operand.vmem [shape: f32[2,1,128], index: 10, kind: input, shape index: {}]
  %s11 = inlined_call_operand.vmem [shape: bf16[2,128,128], index: 11, kind: input, shape index: {}]
  %s12 = inlined_call_operand.vmem [shape: f32[2,1,128], index: 12, kind: input, shape index: {}]
  %s13 = inlined_call_operand.vmem [shape: f32[1,1,128], index: 13, kind: input, shape index: {}]
  %s14 = inlined_call_operand.vmem [shape: f32[1,1,128], index: 14, kind: input, shape index: {}]
  %s15 = inlined_call_operand.vmem [shape: f32[2,24,128], index: 15, kind: output, shape index: {}]
  %s16 = sld [smem:[#allocation0]]
  $region101: #{detr_encoder_forward.3} parent=0
    _
  %s18 = ssub.s32 1, %s16
  %s19 = scalar_select 0, %s18, %s16
  loop: start=0, step=1, limit=6
  $region2: #{detr_encoder_forward.3} parent=0 // loop_pre_header
    _
  $region3: #{detr_encoder_forward.3} parent=0 // loop_header
    %s21 = sphi 0, %s25
    %p22 = scmp.ge.s32.totalorder %s21, 6
    %s28 = sphi 0, %s40
    %s29 = sphi 0, %s36
    %s30 = sphi 0, %s28
    %s31 = sphi 0, %s29
    %s32 = sphi 0, %s30
    %s33 = sphi 0, %s31
    %s43 = sphi 0, %s45
    %s46 = sphi 0, %s43
    %s47 = sphi 0, %s46
    %s63 = sphi 0, %s47
    %s69 = sphi 0, %s71
    %s72 = sphi 0, %s69
    %s73 = sphi 0, %s72
    %s89 = sphi 0, %s73
    %s95 = sphi 0, %s97
    %s98 = sphi 0, %s95
    %s99 = sphi 0, %s98
    %s115 = sphi 0, %s99
    %s121 = sphi 0, %s123
    %s124 = sphi 0, %s121
    %s125 = sphi 0, %s124
    %s141 = sphi 0, %s125
    %s147 = sphi 0, %s149
    %s150 = sphi 0, %s147
    %s151 = sphi 0, %s150
    %s167 = sphi 0, %s151
    %s173 = sphi 0, %s175
    %s176 = sphi 0, %s173
    %s177 = sphi 0, %s176
    %s193 = sphi 0, %s177
    %s199 = sphi 0, %s201
    %s202 = sphi 0, %s199
    %s203 = sphi 0, %s202
    %s219 = sphi 0, %s203
    %s225 = sphi 0, %s227
    %s228 = sphi 0, %s225
    %s229 = sphi 0, %s228
    %s245 = sphi 0, %s229
    %s251 = sphi 0, %s253
    %s254 = sphi 0, %s251
    %s255 = sphi 0, %s254
    %s271 = sphi 0, %s255
    %s277 = sphi 0, %s279
    %s280 = sphi 0, %s277
    %s281 = sphi 0, %s280
    %s297 = sphi 0, %s281
    %s303 = sphi 0, %s305
    %s306 = sphi 0, %s303
    %s307 = sphi 0, %s306
    %s323 = sphi 0, %s307
    %s329 = sphi 0, %s331
    %s332 = sphi 0, %s329
    %s333 = sphi 0, %s332
    %s349 = sphi 0, %s333
    %s355 = sphi 0, %s357
    %s358 = sphi 0, %s355
    %s359 = sphi 0, %s358
    %s375 = sphi 0, %s359
    %s379 = sphi 0, %s379
    %s381 = sphi 0, %s379
    %s382 = sphi 0, %s381
    %s396 = sphi 0, %s382
    %s400 = sphi 0, %s400
    %s402 = sphi 0, %s400
    %s403 = sphi 0, %s402
    %s417 = sphi 0, %s403
    %s423 = sphi 0, %s425
    %s426 = sphi 0, %s423
    %s427 = sphi 0, %s426
    %s443 = sphi 0, %s427
  $region4: #{detr_encoder_forward.3} parent=0 // loop_header_branch
    %24 = sbr.rel (%p22) target = $region8
  $region5: #{detr_encoder_forward.3} parent=0 // loop_body
    %s26 = ssub.s32 %s21, 1
    %s27 = ssub.s32 %s21, 2
    %s34 = sadd.s32 1, %s29
    %p35 = scmp.ge.s32.totalorder %s34, 2
    %s36 = scalar_select %p35, 0, %s34
    %s37 = sadd.s32 1, %s28
    %s38 = scalar_select %p35, %s37, %s28
    %p39 = scmp.ge.s32.totalorder %s38, 2
    %s40 = scalar_select %p39, 0, %s38
    %s41 = ssub.s32 %s28, %s40
    %p42 = scmp.eq.s32.totalorder %s41, 0
    %s44 = sadd.s32 %s43, 1
    %s45 = scalar_select %p42, %s43, %s44
    %p48 = pneg %p42
    %p49 = scmp.eq.s32.totalorder %s21, 3
    %p50 = por %p48, %p49
    %p51 = scmp.ne.s32.totalorder %s43, %s46
    %p52 = scmp.eq.s32.totalorder %s21, 0
    %p53 = por %p51, %p52
    %p54 = scmp.ne.s32.totalorder %s43, %s46
    %p55 = scmp.eq.s32.totalorder %s26, 3
    %p56 = por %p54, %p55
    %p57 = scmp.ne.s32.totalorder %s46, %s47
    %p58 = scmp.eq.s32.totalorder %s26, 0
    %p59 = por %p57, %p58
    %p60 = scmp.ne.s32.totalorder %s46, %s47
    %p61 = scmp.eq.s32.totalorder %s27, 3
    %p62 = por %p60, %p61
    %p64 = scmp.ne.s32.totalorder %s47, %s63
    %p65 = scmp.eq.s32.totalorder %s27, 0
    %p66 = por %p64, %p65
    %s67 = ssub.s32 %s29, %s36
    %p68 = scmp.eq.s32.totalorder %s67, 0
    %s70 = sadd.s32 %s69, 1
    %s71 = scalar_select %p68, %s69, %s70
    %p74 = pneg %p68
    %p75 = scmp.eq.s32.totalorder %s21, 3
    %p76 = por %p74, %p75
    %p77 = scmp.ne.s32.totalorder %s69, %s72
    %p78 = scmp.eq.s32.totalorder %s21, 0
    %p79 = por %p77, %p78
    %p80 = scmp.ne.s32.totalorder %s69, %s72
    %p81 = scmp.eq.s32.totalorder %s26, 3
    %p82 = por %p80, %p81
    %p83 = scmp.ne.s32.totalorder %s72, %s73
    %p84 = scmp.eq.s32.totalorder %s26, 0
    %p85 = por %p83, %p84
    %p86 = scmp.ne.s32.totalorder %s72, %s73
    %p87 = scmp.eq.s32.totalorder %s27, 3
    %p88 = por %p86, %p87
    %p90 = scmp.ne.s32.totalorder %s73, %s89
    %p91 = scmp.eq.s32.totalorder %s27, 0
    %p92 = por %p90, %p91
    %s93 = ssub.s32 %s29, %s36
    %p94 = scmp.eq.s32.totalorder %s93, 0
    %s96 = sadd.s32 %s95, 1
    %s97 = scalar_select %p94, %s95, %s96
    %p100 = pneg %p94
    %p101 = scmp.eq.s32.totalorder %s21, 3
    %p102 = por %p100, %p101
    %p103 = scmp.ne.s32.totalorder %s95, %s98
    %p104 = scmp.eq.s32.totalorder %s21, 0
    %p105 = por %p103, %p104
    %p106 = scmp.ne.s32.totalorder %s95, %s98
    %p107 = scmp.eq.s32.totalorder %s26, 3
    %p108 = por %p106, %p107
    %p109 = scmp.ne.s32.totalorder %s98, %s99
    %p110 = scmp.eq.s32.totalorder %s26, 0
    %p111 = por %p109, %p110
    %p112 = scmp.ne.s32.totalorder %s98, %s99
    %p113 = scmp.eq.s32.totalorder %s27, 3
    %p114 = por %p112, %p113
    %p116 = scmp.ne.s32.totalorder %s99, %s115
    %p117 = scmp.eq.s32.totalorder %s27, 0
    %p118 = por %p116, %p117
    %s119 = ssub.s32 %s29, %s36
    %p120 = scmp.eq.s32.totalorder %s119, 0
    %s122 = sadd.s32 %s121, 1
    %s123 = scalar_select %p120, %s121, %s122
    %p126 = pneg %p120
    %p127 = scmp.eq.s32.totalorder %s21, 3
    %p128 = por %p126, %p127
    %p129 = scmp.ne.s32.totalorder %s121, %s124
    %p130 = scmp.eq.s32.totalorder %s21, 0
    %p131 = por %p129, %p130
    %p132 = scmp.ne.s32.totalorder %s121, %s124
    %p133 = scmp.eq.s32.totalorder %s26, 3
    %p134 = por %p132, %p133
    %p135 = scmp.ne.s32.totalorder %s124, %s125
    %p136 = scmp.eq.s32.totalorder %s26, 0
    %p137 = por %p135, %p136
    %p138 = scmp.ne.s32.totalorder %s124, %s125
    %p139 = scmp.eq.s32.totalorder %s27, 3
    %p140 = por %p138, %p139
    %p142 = scmp.ne.s32.totalorder %s125, %s141
    %p143 = scmp.eq.s32.totalorder %s27, 0
    %p144 = por %p142, %p143
    %s145 = ssub.s32 %s29, %s36
    %p146 = scmp.eq.s32.totalorder %s145, 0
    %s148 = sadd.s32 %s147, 1
    %s149 = scalar_select %p146, %s147, %s148
    %p152 = pneg %p146
    %p153 = scmp.eq.s32.totalorder %s21, 3
    %p154 = por %p152, %p153
    %p155 = scmp.ne.s32.totalorder %s147, %s150
    %p156 = scmp.eq.s32.totalorder %s21, 0
    %p157 = por %p155, %p156
    %p158 = scmp.ne.s32.totalorder %s147, %s150
    %p159 = scmp.eq.s32.totalorder %s26, 3
    %p160 = por %p158, %p159
    %p161 = scmp.ne.s32.totalorder %s150, %s151
    %p162 = scmp.eq.s32.totalorder %s26, 0
    %p163 = por %p161, %p162
    %p164 = scmp.ne.s32.totalorder %s150, %s151
    %p165 = scmp.eq.s32.totalorder %s27, 3
    %p166 = por %p164, %p165
    %p168 = scmp.ne.s32.totalorder %s151, %s167
    %p169 = scmp.eq.s32.totalorder %s27, 0
    %p170 = por %p168, %p169
    %s171 = ssub.s32 %s29, %s36
    %p172 = scmp.eq.s32.totalorder %s171, 0
    %s174 = sadd.s32 %s173, 1
    %s175 = scalar_select %p172, %s173, %s174
    %p178 = pneg %p172
    %p179 = scmp.eq.s32.totalorder %s21, 3
    %p180 = por %p178, %p179
    %p181 = scmp.ne.s32.totalorder %s173, %s176
    %p182 = scmp.eq.s32.totalorder %s21, 0
    %p183 = por %p181, %p182
    %p184 = scmp.ne.s32.totalorder %s173, %s176
    %p185 = scmp.eq.s32.totalorder %s26, 3
    %p186 = por %p184, %p185
    %p187 = scmp.ne.s32.totalorder %s176, %s177
    %p188 = scmp.eq.s32.totalorder %s26, 0
    %p189 = por %p187, %p188
    %p190 = scmp.ne.s32.totalorder %s176, %s177
    %p191 = scmp.eq.s32.totalorder %s27, 3
    %p192 = por %p190, %p191
    %p194 = scmp.ne.s32.totalorder %s177, %s193
    %p195 = scmp.eq.s32.totalorder %s27, 0
    %p196 = por %p194, %p195
    %s197 = ssub.s32 %s29, %s36
    %p198 = scmp.eq.s32.totalorder %s197, 0
    %s200 = sadd.s32 %s199, 1
    %s201 = scalar_select %p198, %s199, %s200
    %p204 = pneg %p198
    %p205 = scmp.eq.s32.totalorder %s21, 3
    %p206 = por %p204, %p205
    %p207 = scmp.ne.s32.totalorder %s199, %s202
    %p208 = scmp.eq.s32.totalorder %s21, 0
    %p209 = por %p207, %p208
    %p210 = scmp.ne.s32.totalorder %s199, %s202
    %p211 = scmp.eq.s32.totalorder %s26, 3
    %p212 = por %p210, %p211
    %p213 = scmp.ne.s32.totalorder %s202, %s203
    %p214 = scmp.eq.s32.totalorder %s26, 0
    %p215 = por %p213, %p214
    %p216 = scmp.ne.s32.totalorder %s202, %s203
    %p217 = scmp.eq.s32.totalorder %s27, 3
    %p218 = por %p216, %p217
    %p220 = scmp.ne.s32.totalorder %s203, %s219
    %p221 = scmp.eq.s32.totalorder %s27, 0
    %p222 = por %p220, %p221
    %s223 = ssub.s32 %s29, %s36
    %p224 = scmp.eq.s32.totalorder %s223, 0
    %s226 = sadd.s32 %s225, 1
    %s227 = scalar_select %p224, %s225, %s226
    %p230 = pneg %p224
    %p231 = scmp.eq.s32.totalorder %s21, 3
    %p232 = por %p230, %p231
    %p233 = scmp.ne.s32.totalorder %s225, %s228
    %p234 = scmp.eq.s32.totalorder %s21, 0
    %p235 = por %p233, %p234
    %p236 = scmp.ne.s32.totalorder %s225, %s228
    %p237 = scmp.eq.s32.totalorder %s26, 3
    %p238 = por %p236, %p237
    %p239 = scmp.ne.s32.totalorder %s228, %s229
    %p240 = scmp.eq.s32.totalorder %s26, 0
    %p241 = por %p239, %p240
    %p242 = scmp.ne.s32.totalorder %s228, %s229
    %p243 = scmp.eq.s32.totalorder %s27, 3
    %p244 = por %p242, %p243
    %p246 = scmp.ne.s32.totalorder %s229, %s245
    %p247 = scmp.eq.s32.totalorder %s27, 0
    %p248 = por %p246, %p247
    %s249 = ssub.s32 %s29, %s36
    %p250 = scmp.eq.s32.totalorder %s249, 0
    %s252 = sadd.s32 %s251, 1
    %s253 = scalar_select %p250, %s251, %s252
    %p256 = pneg %p250
    %p257 = scmp.eq.s32.totalorder %s21, 3
    %p258 = por %p256, %p257
    %p259 = scmp.ne.s32.totalorder %s251, %s254
    %p260 = scmp.eq.s32.totalorder %s21, 0
    %p261 = por %p259, %p260
    %p262 = scmp.ne.s32.totalorder %s251, %s254
    %p263 = scmp.eq.s32.totalorder %s26, 3
    %p264 = por %p262, %p263
    %p265 = scmp.ne.s32.totalorder %s254, %s255
    %p266 = scmp.eq.s32.totalorder %s26, 0
    %p267 = por %p265, %p266
    %p268 = scmp.ne.s32.totalorder %s254, %s255
    %p269 = scmp.eq.s32.totalorder %s27, 3
    %p270 = por %p268, %p269
    %p272 = scmp.ne.s32.totalorder %s255, %s271
    %p273 = scmp.eq.s32.totalorder %s27, 0
    %p274 = por %p272, %p273
    %s275 = ssub.s32 %s29, %s36
    %p276 = scmp.eq.s32.totalorder %s275, 0
    %s278 = sadd.s32 %s277, 1
    %s279 = scalar_select %p276, %s277, %s278
    %p282 = pneg %p276
    %p283 = scmp.eq.s32.totalorder %s21, 3
    %p284 = por %p282, %p283
    %p285 = scmp.ne.s32.totalorder %s277, %s280
    %p286 = scmp.eq.s32.totalorder %s21, 0
    %p287 = por %p285, %p286
    %p288 = scmp.ne.s32.totalorder %s277, %s280
    %p289 = scmp.eq.s32.totalorder %s26, 3
    %p290 = por %p288, %p289
    %p291 = scmp.ne.s32.totalorder %s280, %s281
    %p292 = scmp.eq.s32.totalorder %s26, 0
    %p293 = por %p291, %p292
    %p294 = scmp.ne.s32.totalorder %s280, %s281
    %p295 = scmp.eq.s32.totalorder %s27, 3
    %p296 = por %p294, %p295
    %p298 = scmp.ne.s32.totalorder %s281, %s297
    %p299 = scmp.eq.s32.totalorder %s27, 0
    %p300 = por %p298, %p299
    %s301 = ssub.s32 %s29, %s36
    %p302 = scmp.eq.s32.totalorder %s301, 0
    %s304 = sadd.s32 %s303, 1
    %s305 = scalar_select %p302, %s303, %s304
    %p308 = pneg %p302
    %p309 = scmp.eq.s32.totalorder %s21, 3
    %p310 = por %p308, %p309
    %p311 = scmp.ne.s32.totalorder %s303, %s306
    %p312 = scmp.eq.s32.totalorder %s21, 0
    %p313 = por %p311, %p312
    %p314 = scmp.ne.s32.totalorder %s303, %s306
    %p315 = scmp.eq.s32.totalorder %s26, 3
    %p316 = por %p314, %p315
    %p317 = scmp.ne.s32.totalorder %s306, %s307
    %p318 = scmp.eq.s32.totalorder %s26, 0
    %p319 = por %p317, %p318
    %p320 = scmp.ne.s32.totalorder %s306, %s307
    %p321 = scmp.eq.s32.totalorder %s27, 3
    %p322 = por %p320, %p321
    %p324 = scmp.ne.s32.totalorder %s307, %s323
    %p325 = scmp.eq.s32.totalorder %s27, 0
    %p326 = por %p324, %p325
    %s327 = ssub.s32 %s29, %s36
    %p328 = scmp.eq.s32.totalorder %s327, 0
    %s330 = sadd.s32 %s329, 1
    %s331 = scalar_select %p328, %s329, %s330
    %p334 = pneg %p328
    %p335 = scmp.eq.s32.totalorder %s21, 3
    %p336 = por %p334, %p335
    %p337 = scmp.ne.s32.totalorder %s329, %s332
    %p338 = scmp.eq.s32.totalorder %s21, 0
    %p339 = por %p337, %p338
    %p340 = scmp.ne.s32.totalorder %s329, %s332
    %p341 = scmp.eq.s32.totalorder %s26, 3
    %p342 = por %p340, %p341
    %p343 = scmp.ne.s32.totalorder %s332, %s333
    %p344 = scmp.eq.s32.totalorder %s26, 0
    %p345 = por %p343, %p344
    %p346 = scmp.ne.s32.totalorder %s332, %s333
    %p347 = scmp.eq.s32.totalorder %s27, 3
    %p348 = por %p346, %p347
    %p350 = scmp.ne.s32.totalorder %s333, %s349
    %p351 = scmp.eq.s32.totalorder %s27, 0
    %p352 = por %p350, %p351
    %s353 = ssub.s32 %s29, %s36
    %p354 = scmp.eq.s32.totalorder %s353, 0
    %s356 = sadd.s32 %s355, 1
    %s357 = scalar_select %p354, %s355, %s356
    %p360 = pneg %p354
    %p361 = scmp.eq.s32.totalorder %s21, 3
    %p362 = por %p360, %p361
    %p363 = scmp.ne.s32.totalorder %s355, %s358
    %p364 = scmp.eq.s32.totalorder %s21, 0
    %p365 = por %p363, %p364
    %p366 = scmp.ne.s32.totalorder %s355, %s358
    %p367 = scmp.eq.s32.totalorder %s26, 3
    %p368 = por %p366, %p367
    %p369 = scmp.ne.s32.totalorder %s358, %s359
    %p370 = scmp.eq.s32.totalorder %s26, 0
    %p371 = por %p369, %p370
    %p372 = scmp.ne.s32.totalorder %s358, %s359
    %p373 = scmp.eq.s32.totalorder %s27, 3
    %p374 = por %p372, %p373
    %p376 = scmp.ne.s32.totalorder %s359, %s375
    %p377 = scmp.eq.s32.totalorder %s27, 0
    %p378 = por %p376, %p377
    %s380 = sadd.s32 %s379, 1
    %p383 = scmp.eq.s32.totalorder %s21, 3
    %p384 = scmp.ne.s32.totalorder %s379, %s381
    %p385 = scmp.eq.s32.totalorder %s21, 0
    %p386 = por %p384, %p385
    %p387 = scmp.ne.s32.totalorder %s379, %s381
    %p388 = scmp.eq.s32.totalorder %s26, 3
    %p389 = por %p387, %p388
    %p390 = scmp.ne.s32.totalorder %s381, %s382
    %p391 = scmp.eq.s32.totalorder %s26, 0
    %p392 = por %p390, %p391
    %p393 = scmp.ne.s32.totalorder %s381, %s382
    %p394 = scmp.eq.s32.totalorder %s27, 3
    %p395 = por %p393, %p394
    %p397 = scmp.ne.s32.totalorder %s382, %s396
    %p398 = scmp.eq.s32.totalorder %s27, 0
    %p399 = por %p397, %p398
    %s401 = sadd.s32 %s400, 1
    %p404 = scmp.eq.s32.totalorder %s21, 3
    %p405 = scmp.ne.s32.totalorder %s400, %s402
    %p406 = scmp.eq.s32.totalorder %s21, 0
    %p407 = por %p405, %p406
    %p408 = scmp.ne.s32.totalorder %s400, %s402
    %p409 = scmp.eq.s32.totalorder %s26, 3
    %p410 = por %p408, %p409
    %p411 = scmp.ne.s32.totalorder %s402, %s403
    %p412 = scmp.eq.s32.totalorder %s26, 0
    %p413 = por %p411, %p412
    %p414 = scmp.ne.s32.totalorder %s402, %s403
    %p415 = scmp.eq.s32.totalorder %s27, 3
    %p416 = por %p414, %p415
    %p418 = scmp.ne.s32.totalorder %s403, %s417
    %p419 = scmp.eq.s32.totalorder %s27, 0
    %p420 = por %p418, %p419
    %s421 = ssub.s32 %s28, %s40
    %p422 = scmp.eq.s32.totalorder %s421, 0
    %s424 = sadd.s32 %s423, 1
    %s425 = scalar_select %p422, %s423, %s424
    %p428 = pneg %p422
    %p429 = scmp.eq.s32.totalorder %s21, 3
    %p430 = por %p428, %p429
    %p431 = scmp.ne.s32.totalorder %s423, %s426
    %p432 = scmp.eq.s32.totalorder %s21, 0
    %p433 = por %p431, %p432
    %p434 = scmp.ne.s32.totalorder %s423, %s426
    %p435 = scmp.eq.s32.totalorder %s26, 3
    %p436 = por %p434, %p435
    %p437 = scmp.ne.s32.totalorder %s426, %s427
    %p438 = scmp.eq.s32.totalorder %s26, 0
    %p439 = por %p437, %p438
    %p440 = scmp.ne.s32.totalorder %s426, %s427
    %p441 = scmp.eq.s32.totalorder %s27, 3
    %p442 = por %p440, %p441
    %p444 = scmp.ne.s32.totalorder %s427, %s443
    %p445 = scmp.eq.s32.totalorder %s27, 0
    %p446 = por %p444, %p445
    %p447 = scmp.le.s32.totalorder 1, %s21
    %p448 = scmp.lt.s32.totalorder %s21, 5
    %p449 = pnand %p447, %p448
    %p450 = pneg %p449
    // Predicated region
    $region9: #{detr_encoder_forward.3} parent=5 // pred_check
      _
    $region10: #{detr_encoder_forward.3} parent=5 // pred_check_branch
      %452 = sbr.rel (%p449) target = $region12
    $region11: #{detr_encoder_forward.3} parent=5 // pred_region
      %s453 = ssub.s32 %s21, 1
      // Predicated region
      $region13: #{detr_encoder_forward.3} parent=11 // pred_check
        %p454 = pneg %p392
      $region14: #{detr_encoder_forward.3} parent=11 // pred_check_branch
        %456 = sbr.rel (%p454) target = $region16
      $region15: #{detr_encoder_forward.3} parent=11 // pred_region
        _
      $region16: #{detr_encoder_forward.3} parent=11 // pred_fallthru
        _
      // Predicated region
      $region17: #{detr_encoder_forward.3} parent=11 // pred_check
        %p457 = pneg %p413
      $region18: #{detr_encoder_forward.3} parent=11 // pred_check_branch
        %459 = sbr.rel (%p457) target = $region20
      $region19: #{detr_encoder_forward.3} parent=11 // pred_region
        _
      $region20: #{detr_encoder_forward.3} parent=11 // pred_fallthru
        _
    $region12: #{detr_encoder_forward.3} parent=5 // pred_fallthru
      _
    %p460 = scmp.lt.s32.totalorder %s21, 4
    // Predicated region
    $region21: #{detr_encoder_forward.3} parent=5 // pred_check
      %p461 = pneg %p460
    $region22: #{detr_encoder_forward.3} parent=5 // pred_check_branch
      %463 = sbr.rel (%p461) target = $region24
    $region23: #{detr_encoder_forward.3} parent=5 // pred_region
      // Predicated region
      $region25: #{detr_encoder_forward.3} parent=23 // pred_check
        %p464 = pneg %p53
      $region26: #{detr_encoder_forward.3} parent=23 // pred_check_branch
        %466 = sbr.rel (%p464) target = $region28
      $region27: #{detr_encoder_forward.3} parent=23 // pred_region
        %p467 = scmp.lt.s32.totalorder %s28, 1
        %s468 = scalar_select %p467, %s28, 1
        %s469 = smul.addr %s468, 3
        %s470 = smul.addr %s469, 8
        %s471 = scalar_lea.vmem %s0, %s470
      $region28: #{detr_encoder_forward.3} parent=23 // pred_fallthru
        _
      // Predicated region
      $region29: #{detr_encoder_forward.3} parent=23 // pred_check
        %p472 = pneg %p79
      $region30: #{detr_encoder_forward.3} parent=23 // pred_check_branch
        %474 = sbr.rel (%p472) target = $region32
      $region31: #{detr_encoder_forward.3} parent=23 // pred_region
        %p475 = scmp.lt.s32.totalorder %s29, 1
        %s476 = scalar_select %p475, %s29, 1
        %s477 = scalar_lea.vmem %s1, %s476
      $region32: #{detr_encoder_forward.3} parent=23 // pred_fallthru
        _
      // Predicated region
      $region33: #{detr_encoder_forward.3} parent=23 // pred_check
        %p478 = pneg %p105
      $region34: #{detr_encoder_forward.3} parent=23 // pred_check_branch
        %480 = sbr.rel (%p478) target = $region36
      $region35: #{detr_encoder_forward.3} parent=23 // pred_region
        %p481 = scmp.lt.s32.totalorder %s29, 1
        %s482 = scalar_select %p481, %s29, 1
        %s483 = scalar_lea.vmem %s2, %s482
      $region36: #{detr_encoder_forward.3} parent=23 // pred_fallthru
        _
      // Predicated region
      $region37: #{detr_encoder_forward.3} parent=23 // pred_check
        %p484 = pneg %p131
      $region38: #{detr_encoder_forward.3} parent=23 // pred_check_branch
        %486 = sbr.rel (%p484) target = $region40
      $region39: #{detr_encoder_forward.3} parent=23 // pred_region
        %p487 = scmp.lt.s32.totalorder %s29, 1
        %s488 = scalar_select %p487, %s29, 1
        %s489 = smul.addr %s488, 48
        %s490 = smul.addr %s489, 4
        %s491 = scalar_lea.vmem %s3, %s490
      $region40: #{detr_encoder_forward.3} parent=23 // pred_fallthru
        _
      // Predicated region
      $region41: #{detr_encoder_forward.3} parent=23 // pred_check
        %p492 = pneg %p157
      $region42: #{detr_encoder_forward.3} parent=23 // pred_check_branch
        %494 = sbr.rel (%p492) target = $region44
      $region43: #{detr_encoder_forward.3} parent=23 // pred_region
        %p495 = scmp.lt.s32.totalorder %s29, 1
        %s496 = scalar_select %p495, %s29, 1
        %s497 = smul.addr %s496, 3
        %s498 = scalar_lea.vmem %s4, %s497
      $region44: #{detr_encoder_forward.3} parent=23 // pred_fallthru
        _
      // Predicated region
      $region45: #{detr_encoder_forward.3} parent=23 // pred_check
        %p499 = pneg %p183
      $region46: #{detr_encoder_forward.3} parent=23 // pred_check_branch
        %501 = sbr.rel (%p499) target = $region48
      $region47: #{detr_encoder_forward.3} parent=23 // pred_region
        %p502 = scmp.lt.s32.totalorder %s29, 1
        %s503 = scalar_select %p502, %s29, 1
        %s504 = smul.addr %s503, 16
        %s505 = smul.addr %s504, 4
        %s506 = scalar_lea.vmem %s5, %s505
      $region48: #{detr_encoder_forward.3} parent=23 // pred_fallthru
        _
      // Predicated region
      $region49: #{detr_encoder_forward.3} parent=23 // pred_check
        %p507 = pneg %p209
      $region50: #{detr_encoder_forward.3} parent=23 // pred_check_branch
        %509 = sbr.rel (%p507) target = $region52
      $region51: #{detr_encoder_forward.3} parent=23 // pred_region
        %p510 = scmp.lt.s32.totalorder %s29, 1
        %s511 = scalar_select %p510, %s29, 1
        %s512 = scalar_lea.vmem %s6, %s511
      $region52: #{detr_encoder_forward.3} parent=23 // pred_fallthru
        _
      // Predicated region
      $region53: #{detr_encoder_forward.3} parent=23 // pred_check
        %p513 = pneg %p235
      $region54: #{detr_encoder_forward.3} parent=23 // pred_check_branch
        %515 = sbr.rel (%p513) target = $region56
      $region55: #{detr_encoder_forward.3} parent=23 // pred_region
        %p516 = scmp.lt.s32.totalorder %s29, 1
        %s517 = scalar_select %p516, %s29, 1
        %s518 = scalar_lea.vmem %s7, %s517
      $region56: #{detr_encoder_forward.3} parent=23 // pred_fallthru
        _
      // Predicated region
      $region57: #{detr_encoder_forward.3} parent=23 // pred_check
        %p519 = pneg %p261
      $region58: #{detr_encoder_forward.3} parent=23 // pred_check_branch
        %521 = sbr.rel (%p519) target = $region60
      $region59: #{detr_encoder_forward.3} parent=23 // pred_region
        %p522 = scmp.lt.s32.totalorder %s29, 1
        %s523 = scalar_select %p522, %s29, 1
        %s524 = scalar_lea.vmem %s8, %s523
      $region60: #{detr_encoder_forward.3} parent=23 // pred_fallthru
        _
      // Predicated region
      $region61: #{detr_encoder_forward.3} parent=23 // pred_check
        %p525 = pneg %p287
      $region62: #{detr_encoder_forward.3} parent=23 // pred_check_branch
        %527 = sbr.rel (%p525) target = $region64
      $region63: #{detr_encoder_forward.3} parent=23 // pred_region
        %p528 = scmp.lt.s32.totalorder %s29, 1
        %s529 = scalar_select %p528, %s29, 1
        %s530 = smul.addr %s529, 16
        %s531 = smul.addr %s530, 4
        %s532 = scalar_lea.vmem %s9, %s531
      $region64: #{detr_encoder_forward.3} parent=23 // pred_fallthru
        _
      // Predicated region
      $region65: #{detr_encoder_forward.3} parent=23 // pred_check
        %p533 = pneg %p313
      $region66: #{detr_encoder_forward.3} parent=23 // pred_check_branch
        %535 = sbr.rel (%p533) target = $region68
      $region67: #{detr_encoder_forward.3} parent=23 // pred_region
        %p536 = scmp.lt.s32.totalorder %s29, 1
        %s537 = scalar_select %p536, %s29, 1
        %s538 = scalar_lea.vmem %s10, %s537
      $region68: #{detr_encoder_forward.3} parent=23 // pred_fallthru
        _
      // Predicated region
      $region69: #{detr_encoder_forward.3} parent=23 // pred_check
        %p539 = pneg %p339
      $region70: #{detr_encoder_forward.3} parent=23 // pred_check_branch
        %541 = sbr.rel (%p539) target = $region72
      $region71: #{detr_encoder_forward.3} parent=23 // pred_region
        %p542 = scmp.lt.s32.totalorder %s29, 1
        %s543 = scalar_select %p542, %s29, 1
        %s544 = smul.addr %s543, 16
        %s545 = smul.addr %s544, 4
        %s546 = scalar_lea.vmem %s11, %s545
      $region72: #{detr_encoder_forward.3} parent=23 // pred_fallthru
        _
      // Predicated region
      $region73: #{detr_encoder_forward.3} parent=23 // pred_check
        %p547 = pneg %p365
      $region74: #{detr_encoder_forward.3} parent=23 // pred_check_branch
        %549 = sbr.rel (%p547) target = $region76
      $region75: #{detr_encoder_forward.3} parent=23 // pred_region
        %p550 = scmp.lt.s32.totalorder %s29, 1
        %s551 = scalar_select %p550, %s29, 1
        %s552 = scalar_lea.vmem %s12, %s551
      $region76: #{detr_encoder_forward.3} parent=23 // pred_fallthru
        _
    $region24: #{detr_encoder_forward.3} parent=5 // pred_fallthru
      _
    %p553 = scmp.le.s32.totalorder 1, %s21
    %p554 = scmp.lt.s32.totalorder %s21, 5
    %p555 = pnand %p553, %p554
    %p556 = pneg %p555
    // Predicated region
    $region77: #{detr_encoder_forward.3} parent=5 // pred_check
      _
    $region78: #{detr_encoder_forward.3} parent=5 // pred_check_branch
      %558 = sbr.rel (%p555) target = $region80
    $region79: #{detr_encoder_forward.3} parent=5 // pred_region
      %s559 = ssub.s32 %s21, 1
      %p560 = scmp.lt.s32.totalorder %s30, 1
      %s561 = scalar_select %p560, %s30, 1
      %s562 = smul.addr %s561, 3
      %s563 = smul.addr %s562, 8
      %s564 = scalar_lea.vmem %s0, %s563
      %p565 = pneg %p59
      %p566 = pneg %p56
      %p567 = scmp.lt.s32.totalorder %s31, 1
      %s568 = scalar_select %p567, %s31, 1
      %s569 = scalar_lea.vmem %s1, %s568
      %p570 = pneg %p85
      %p571 = pneg %p82
      %p572 = scmp.lt.s32.totalorder %s31, 1
      %s573 = scalar_select %p572, %s31, 1
      %s574 = scalar_lea.vmem %s2, %s573
      %p575 = pneg %p111
      %p576 = pneg %p108
      %p577 = scmp.lt.s32.totalorder %s31, 1
      %s578 = scalar_select %p577, %s31, 1
      %s579 = smul.addr %s578, 48
      %s580 = smul.addr %s579, 4
      %s581 = scalar_lea.vmem %s3, %s580
      %p582 = pneg %p137
      %p583 = pneg %p134
      %p584 = scmp.lt.s32.totalorder %s31, 1
      %s585 = scalar_select %p584, %s31, 1
      %s586 = smul.addr %s585, 3
      %s587 = scalar_lea.vmem %s4, %s586
      %p588 = pneg %p163
      %p589 = pneg %p160
      %p590 = scmp.lt.s32.totalorder %s31, 1
      %s591 = scalar_select %p590, %s31, 1
      %s592 = smul.addr %s591, 16
      %s593 = smul.addr %s592, 4
      %s594 = scalar_lea.vmem %s5, %s593
      %p595 = pneg %p189
      %p596 = pneg %p186
      %p597 = scmp.lt.s32.totalorder %s31, 1
      %s598 = scalar_select %p597, %s31, 1
      %s599 = scalar_lea.vmem %s6, %s598
      %p600 = pneg %p215
      %p601 = pneg %p212
      %p602 = scmp.lt.s32.totalorder %s31, 1
      %s603 = scalar_select %p602, %s31, 1
      %s604 = scalar_lea.vmem %s7, %s603
      %p605 = pneg %p241
      %p606 = pneg %p238
      %p607 = scmp.lt.s32.totalorder %s31, 1
      %s608 = scalar_select %p607, %s31, 1
      %s609 = scalar_lea.vmem %s8, %s608
      %p610 = pneg %p267
      %p611 = pneg %p264
      %p612 = scmp.lt.s32.totalorder %s31, 1
      %s613 = scalar_select %p612, %s31, 1
      %s614 = smul.addr %s613, 16
      %s615 = smul.addr %s614, 4
      %s616 = scalar_lea.vmem %s9, %s615
      %p617 = pneg %p293
      %p618 = pneg %p290
      %p619 = scmp.lt.s32.totalorder %s31, 1
      %s620 = scalar_select %p619, %s31, 1
      %s621 = scalar_lea.vmem %s10, %s620
      %p622 = pneg %p319
      %p623 = pneg %p316
      %p624 = scmp.lt.s32.totalorder %s31, 1
      %s625 = scalar_select %p624, %s31, 1
      %s626 = smul.addr %s625, 16
      %s627 = smul.addr %s626, 4
      %s628 = scalar_lea.vmem %s11, %s627
      %p629 = pneg %p345
      %p630 = pneg %p342
      %p631 = scmp.lt.s32.totalorder %s31, 1
      %s632 = scalar_select %p631, %s31, 1
      %s633 = scalar_lea.vmem %s12, %s632
      %p634 = pneg %p371
      %p635 = pneg %p368
      %p636 = pneg %p392
      %p637 = pneg %p389
      %p638 = pneg %p413
      %p639 = pneg %p410
      %p640 = pneg %p439
      %p641 = pneg %p436
      %p642 = scmp.lt.s32.totalorder %s30, 1
      %s643 = scalar_select %p642, %s30, 1
      %s644 = smul.addr %s643, 3
      %s645 = smul.addr %s644, 8
      %s646 = scalar_lea.vmem %s15, %s645
      %p647 = scmp.lt.s32.totalorder %s30, 1
      %s648 = scalar_select %p647, %s30, 1
      %s649 = smul.addr %s648, 3
      %s650 = smul.addr %s649, 8
      %s651 = scalar_lea.vmem %s0, %s650
      %p652 = scmp.lt.s32.totalorder %s31, 1
      %s653 = scalar_select %p652, %s31, 1
      %s654 = scalar_lea.vmem %s1, %s653
      %p655 = scmp.lt.s32.totalorder %s31, 1
      %s656 = scalar_select %p655, %s31, 1
      %s657 = scalar_lea.vmem %s2, %s656
      %p658 = scmp.lt.s32.totalorder %s31, 1
      %s659 = scalar_select %p658, %s31, 1
      %s660 = smul.addr %s659, 48
      %s661 = smul.addr %s660, 4
      %s662 = scalar_lea.vmem %s3, %s661
      %p663 = scmp.lt.s32.totalorder %s31, 1
      %s664 = scalar_select %p663, %s31, 1
      %s665 = smul.addr %s664, 3
      %s666 = scalar_lea.vmem %s4, %s665
      %p667 = scmp.lt.s32.totalorder %s31, 1
      %s668 = scalar_select %p667, %s31, 1
      %s669 = smul.addr %s668, 16
      %s670 = smul.addr %s669, 4
      %s671 = scalar_lea.vmem %s5, %s670
      %p672 = scmp.lt.s32.totalorder %s31, 1
      %s673 = scalar_select %p672, %s31, 1
      %s674 = scalar_lea.vmem %s6, %s673
      %p675 = scmp.lt.s32.totalorder %s31, 1
      %s676 = scalar_select %p675, %s31, 1
      %s677 = scalar_lea.vmem %s7, %s676
      %p678 = scmp.lt.s32.totalorder %s31, 1
      %s679 = scalar_select %p678, %s31, 1
      %s680 = scalar_lea.vmem %s8, %s679
      %p681 = scmp.lt.s32.totalorder %s31, 1
      %s682 = scalar_select %p681, %s31, 1
      %s683 = smul.addr %s682, 16
      %s684 = smul.addr %s683, 4
      %s685 = scalar_lea.vmem %s9, %s684
      %p686 = scmp.lt.s32.totalorder %s31, 1
      %s687 = scalar_select %p686, %s31, 1
      %s688 = scalar_lea.vmem %s10, %s687
      %p689 = scmp.lt.s32.totalorder %s31, 1
      %s690 = scalar_select %p689, %s31, 1
      %s691 = smul.addr %s690, 16
      %s692 = smul.addr %s691, 4
      %s693 = scalar_lea.vmem %s11, %s692
      %p694 = scmp.lt.s32.totalorder %s31, 1
      %s695 = scalar_select %p694, %s31, 1
      %s696 = scalar_lea.vmem %s12, %s695
      %p697 = scmp.lt.s32.totalorder %s30, 1
      %s698 = scalar_select %p697, %s30, 1
      %s699 = smul.addr %s698, 3
      %s700 = smul.addr %s699, 8
      %s701 = scalar_lea.vmem %s15, %s700
      %p703 = scmp.eq.s32.totalorder %s31, 0
      // Predicated region
      $region81: #{detr_encoder_forward.3} parent=79 // pred_check
        %p704 = pneg %p703
      $region82: #{detr_encoder_forward.3} parent=79 // pred_check_branch
        %706 = sbr.rel (%p704) target = $region84
      $region83: #{detr_encoder_forward.3} parent=79 // pred_region
        %v707 = vld [vmem:[%s651] sm:$0xff]
        %v708 = vld [vmem:[%s651 + $0x8] sm:$0xff]
        %v709 = vld [vmem:[%s651 + $0x10] sm:$0xff]
        %710 = vst [vmem:[%s701] sm:$0xff] %v707
        %711 = vst [vmem:[%s701 + $0x8] sm:$0xff] %v708
        %712 = vst [vmem:[%s701 + $0x10] sm:$0xff] %v709
      $region84: #{detr_encoder_forward.3} parent=79 // pred_fallthru
        _
      %v713 = vld [vmem:[%s701] sm:$0xff]
      %v714 = vld [vmem:[%s701 + $0x8] sm:$0xff]
      %v715 = vld [vmem:[%s701 + $0x10] sm:$0xff]
      %v716 = vld [vmem:[%s654] sm:$0x1]
      %v717 = vld [vmem:[%s657] sm:$0x1]
      %v718 = vlaneseq
      %v719 = vand.u32 %v718, 127
      %vm720 = vcmp.lt.s32.totalorder %v719, 32
      %v721 = vsel %vm720, 1, 0
      %v722 = vcvt.s32.f32 %v721
      %723 = vadd.xlane.f32.xlu0 %v713
      %v724 = vpop.xlane.xlu0 %723
      %725 = vadd.xlane.f32.xlu0 %v714
      %v726 = vpop.xlane.xlu0 %725
      %727 = vadd.xlane.f32.xlu0 %v715
      %v728 = vpop.xlane.xlu0 %727
      %v729 = vmul.f32 %v724, 0.03125
      %v730 = vmul.f32 %v726, 0.03125
      %v731 = vmul.f32 %v728, 0.03125
      %v732 = vsub.f32 %v713, %v729
      %v733 = vsub.f32 %v714, %v730
      %v734 = vsub.f32 %v715, %v731
      %v735 = vmul.f32 %v732, %v722
      %v736 = vmul.f32 %v733, %v722
      %v737 = vmul.f32 %v734, %v722
      %v738 = vmul.f32 %v735, %v735
      %v739 = vmul.f32 %v736, %v736
      %v740 = vmul.f32 %v737, %v737
      %741 = vadd.xlane.f32.xlu0 %v738
      %v742 = vpop.xlane.xlu0 %741
      %743 = vadd.xlane.f32.xlu0 %v739
      %v744 = vpop.xlane.xlu0 %743
      %745 = vadd.xlane.f32.xlu0 %v740
      %v746 = vpop.xlane.xlu0 %745
      %v747 = vmul.f32 %v742, 0.03125
      %v748 = vmul.f32 %v744, 0.03125
      %v749 = vmul.f32 %v746, 0.03125
      %v750 = vadd.f32 %v747, 1e-06
      %v751 = vadd.f32 %v748, 1e-06
      %v752 = vadd.f32 %v749, 1e-06
      %v753 = vrsqrt.pop %v750
      %v754 = vrsqrt.pop %v751
      %v755 = vrsqrt.pop %v752
      %v756 = vmul.f32 %v735, %v753
      %v757 = vmul.f32 %v736, %v754
      %v758 = vmul.f32 %v737, %v755
      %v760 = vlaneseq
      %v761 = vshrl.u32 %v760, 7
      %v762 = vsub.s32 0, %v761
      %v763 = vrot.slane %v716, %v762
      %v765 = vmul.f32 %v756, %v763
      %v766 = vmul.f32 %v757, %v763
      %v767 = vmul.f32 %v758, %v763
      %v769 = vlaneseq
      %v770 = vshrl.u32 %v769, 7
      %v771 = vsub.s32 0, %v770
      %v772 = vrot.slane %v717, %v771
      %v774 = vadd.f32 %v765, %v772
      %v775 = vadd.f32 %v766, %v772
      %v776 = vadd.f32 %v767, %v772
      %v777 = vpack.c.bf16 %v775, %v774
      %v778 = vpack.c.bf16 %v776, %v776
      %v779 = vld [vmem:[%s662] sm:$0xff]
      %v780 = vld [vmem:[%s662 + $0x8] sm:$0xf]
      %v781 = vld [vmem:[%s662 + $0xc] sm:$0xff]
      %v782 = vld [vmem:[%s662 + $0x14] sm:$0xf]
      %v783 = vld [vmem:[%s662 + $0x18] sm:$0xff]
      %v784 = vld [vmem:[%s662 + $0x20] sm:$0xf]
      %v785 = vld [vmem:[%s662 + $0x24] sm:$0xff]
      %v786 = vld [vmem:[%s662 + $0x2c] sm:$0xf]
      %v787 = vld [vmem:[%s662 + $0x30] sm:$0xff]
      %v788 = vld [vmem:[%s662 + $0x38] sm:$0xf]
      %v789 = vld [vmem:[%s662 + $0x3c] sm:$0xff]
      %v790 = vld [vmem:[%s662 + $0x44] sm:$0xf]
      %v791 = vld [vmem:[%s662 + $0x48] sm:$0xff]
      %v792 = vld [vmem:[%s662 + $0x50] sm:$0xf]
      %v793 = vld [vmem:[%s662 + $0x54] sm:$0xff]
      %v794 = vld [vmem:[%s662 + $0x5c] sm:$0xf]
      %v795 = vld [vmem:[%s662 + $0x60] sm:$0xff]
      %v796 = vld [vmem:[%s662 + $0x68] sm:$0xf]
      %v797 = vld [vmem:[%s662 + $0x6c] sm:$0xff]
      %v798 = vld [vmem:[%s662 + $0x74] sm:$0xf]
      %v799 = vld [vmem:[%s662 + $0x78] sm:$0xff]
      %v800 = vld [vmem:[%s662 + $0x80] sm:$0xf]
      %v801 = vld [vmem:[%s662 + $0x84] sm:$0xff]
      %v802 = vld [vmem:[%s662 + $0x8c] sm:$0xf]
      %v803 = vld [vmem:[%s662 + $0x90] sm:$0xff]
      %v804 = vld [vmem:[%s662 + $0x98] sm:$0xf]
      %v805 = vld [vmem:[%s662 + $0x9c] sm:$0xff]
      %v806 = vld [vmem:[%s662 + $0xa4] sm:$0xf]
      %v807 = vld [vmem:[%s662 + $0xa8] sm:$0xff]
      %v808 = vld [vmem:[%s662 + $0xb0] sm:$0xf]
      %v809 = vld [vmem:[%s662 + $0xb4] sm:$0xff]
      %v810 = vld [vmem:[%s662 + $0xbc] sm:$0xf]
      %v811 = vld [vmem:[%s666] sm:$0x7]
      %v813 = vlaneseq
      %v814 = vshrl.u32 %v813, 7
      %v815 = vsub.s32 0, %v814
      %v816 = vrot.slane %v811, %v815
      %v817 = vlaneseq
      %v818 = vshrl.u32 %v817, 7
      %v819 = vsub.s32 1, %v818
      %v820 = vrot.slane %v811, %v819
      %v821 = vlaneseq
      %v822 = vshrl.u32 %v821, 7
      %v823 = vsub.s32 2, %v822
      %v824 = vrot.slane %v811, %v823
      %v860 = vunpack.c.l.b16 %v779
      %v861 = vunpack.c.h.b16 %v779
      %v862 = vunpack.c.l.b16 %v780
      %v863 = vunpack.c.l.b16 %v781
      %v864 = vunpack.c.h.b16 %v781
      %v865 = vunpack.c.l.b16 %v782
      %v866 = vunpack.c.l.b16 %v783
      %v867 = vunpack.c.h.b16 %v783
      %v868 = vunpack.c.l.b16 %v784
      %v869 = vunpack.c.l.b16 %v785
      %v870 = vunpack.c.h.b16 %v785
      %v871 = vunpack.c.l.b16 %v786
      %v872 = vunpack.c.l.b16 %v787
      %v873 = vunpack.c.h.b16 %v787
      %v874 = vunpack.c.l.b16 %v788
      %v875 = vunpack.c.l.b16 %v789
      %v876 = vunpack.c.h.b16 %v789
      %v877 = vunpack.c.l.b16 %v790
      %v878 = vunpack.c.l.b16 %v791
      %v879 = vunpack.c.h.b16 %v791
      %v880 = vunpack.c.l.b16 %v792
      %v881 = vunpack.c.l.b16 %v793
      %v882 = vunpack.c.h.b16 %v793
      %v883 = vunpack.c.l.b16 %v794
      %v884 = vunpack.c.l.b16 %v795
      %v885 = vunpack.c.h.b16 %v795
      %v886 = vunpack.c.l.b16 %v796
      %v887 = vunpack.c.l.b16 %v797
      %v888 = vunpack.c.h.b16 %v797
      %v889 = vunpack.c.l.b16 %v798
      %v890 = vunpack.c.l.b16 %v799
      %v891 = vunpack.c.h.b16 %v799
      %v892 = vunpack.c.l.b16 %v800
      %v893 = vunpack.c.l.b16 %v801
      %v894 = vunpack.c.h.b16 %v801
      %v895 = vunpack.c.l.b16 %v802
      %v896 = vunpack.c.l.b16 %v803
      %v897 = vunpack.c.h.b16 %v803
      %v898 = vunpack.c.l.b16 %v804
      %v899 = vunpack.c.l.b16 %v805
      %v900 = vunpack.c.h.b16 %v805
      %v901 = vunpack.c.l.b16 %v806
      %v902 = vunpack.c.l.b16 %v807
      %v903 = vunpack.c.h.b16 %v807
      %v904 = vunpack.c.l.b16 %v808
      %v905 = vunpack.c.l.b16 %v809
      %v906 = vunpack.c.h.b16 %v809
      %v907 = vunpack.c.l.b16 %v810
      %v908 = vpack.c.b16 %v863, %v860
      %v909 = vpack.c.b16 %v864, %v861
      %v910 = vpack.c.b16 %v865, %v862
      %v911 = vpack.c.b16 %v869, %v866
      %v912 = vpack.c.b16 %v870, %v867
      %v913 = vpack.c.b16 %v871, %v868
      %v914 = vpack.c.b16 %v875, %v872
      %v915 = vpack.c.b16 %v876, %v873
      %v916 = vpack.c.b16 %v877, %v874
      %v917 = vpack.c.b16 %v881, %v878
      %v918 = vpack.c.b16 %v882, %v879
      %v919 = vpack.c.b16 %v883, %v880
      %v920 = vpack.c.b16 %v887, %v884
      %v921 = vpack.c.b16 %v888, %v885
      %v922 = vpack.c.b16 %v889, %v886
      %v923 = vpack.c.b16 %v893, %v890
      %v924 = vpack.c.b16 %v894, %v891
      %v925 = vpack.c.b16 %v895, %v892
      %v926 = vpack.c.b16 %v899, %v896
      %v927 = vpack.c.b16 %v900, %v897
      %v928 = vpack.c.b16 %v901, %v898
      %v929 = vpack.c.b16 %v905, %v902
      %v930 = vpack.c.b16 %v906, %v903
      %v931 = vpack.c.b16 %v907, %v904
      %956 = vmatprep.subr.bf16.mxu0 %v909
      %957 = vmatpush1.bf16.msra.mxu0 %v908
      %958 = vmatprep.subr.bf16.mxu0 %v912
      %959 = vmatpush1.bf16.msra.mxu0 %v911
      %960 = vmatprep.subr.bf16.mxu0 %v915
      %961 = vmatpush1.bf16.msra.mxu0 %v914
      %962 = vmatprep.subr.bf16.mxu0 %v918
      %963 = vmatpush1.bf16.msra.mxu0 %v917
      %964 = vmatprep.subr.bf16.mxu0 %v921
      %965 = vmatpush1.bf16.msra.mxu0 %v920
      %966 = vmatprep.subr.bf16.mxu0 %v924
      %967 = vmatpush1.bf16.msra.mxu0 %v923
      %968 = vmatprep.subr.bf16.mxu0 %v927
      %969 = vmatpush1.bf16.msra.mxu0 %v926
      %970 = vmatprep.subr.bf16.mxu0 %v930
      %971 = vmatpush1.bf16.msra.mxu0 %v929
      %972 = vmatprep.subr.bf16.mxu0 0
      %973 = vmatpush1.bf16.msra.mxu0 0
      %974 = vmatprep.subr.bf16.mxu0 0
      %975 = vmatpush1.bf16.msra.mxu0 0
      %976 = vmatprep.subr.bf16.mxu0 0
      %977 = vmatpush1.bf16.msra.mxu0 0
      %978 = vmatprep.subr.bf16.mxu0 0
      %979 = vmatpush1.bf16.msra.mxu0 0
      %980 = vmatprep.subr.bf16.mxu0 0
      %981 = vmatpush1.bf16.msra.mxu0 0
      %982 = vmatprep.subr.bf16.mxu0 0
      %983 = vmatpush1.bf16.msra.mxu0 0
      %984 = vmatprep.subr.bf16.mxu0 0
      %985 = vmatpush1.bf16.msra.mxu0 0
      %986 = vmatprep.subr.bf16.mxu0 0
      %987 = vmatpush1.bf16.msra.mxu0 0
      %988 = vmatprep.mubr.bf16.mxu0 0
      %989 = vmatmul.mubr.bf16.gmra.mrb[0].mxu0 %v777
      %v990 = vpop.f32.mrb[0].mxu0
      %v991 = vadd.f32 %v816, %v990
      %v992 = vpop.f32.mrb[0].mxu0
      %v993 = vadd.f32 %v820, %v992
      %v994 = vpop.f32.mrb[0].mxu0
      %v995 = vadd.f32 %v816, %v994
      %v996 = vpop.f32.mrb[0].mxu0
      %v997 = vadd.f32 %v820, %v996
      %998 = vmatprep.mubr.bf16.mxu0 0
      %999 = vmatmul.mubr.bf16.gmra.mrb[0].mxu0 %v778
      %v1000 = vpop.f32.mrb[0].mxu0
      %v1001 = vadd.f32 %v816, %v1000
      %v1002 = vpop.f32.mrb[0].mxu0
      %v1003 = vadd.f32 %v820, %v1002
      %v1004 = vpop.f32.mrb[0].mxu0
      %v1005 = vpop.f32.mrb[0].mxu0
      %1006 = vdwg.mxu0
      %1007 = vmatprep.subr.bf16.mxu0 0
      %1008 = vmatpush1.bf16.msra.mxu0 %v910
      %1009 = vmatprep.subr.bf16.mxu0 0
      %1010 = vmatpush1.bf16.msra.mxu0 %v913
      %1011 = vmatprep.subr.bf16.mxu0 0
      %1012 = vmatpush1.bf16.msra.mxu0 %v916
      %1013 = vmatprep.subr.bf16.mxu0 0
      %1014 = vmatpush1.bf16.msra.mxu0 %v919
      %1015 = vmatprep.subr.bf16.mxu0 0
      %1016 = vmatpush1.bf16.msra.mxu0 %v922
      %1017 = vmatprep.subr.bf16.mxu0 0
      %1018 = vmatpush1.bf16.msra.mxu0 %v925
      %1019 = vmatprep.subr.bf16.mxu0 0
      %1020 = vmatpush1.bf16.msra.mxu0 %v928
      %1021 = vmatprep.subr.bf16.mxu0 0
      %1022 = vmatpush1.bf16.msra.mxu0 %v931
      %1023 = vmatprep.subr.bf16.mxu0 0
      %1024 = vmatpush1.bf16.msra.mxu0 0
      %1025 = vmatprep.subr.bf16.mxu0 0
      %1026 = vmatpush1.bf16.msra.mxu0 0
      %1027 = vmatprep.subr.bf16.mxu0 0
      %1028 = vmatpush1.bf16.msra.mxu0 0
      %1029 = vmatprep.subr.bf16.mxu0 0
      %1030 = vmatpush1.bf16.msra.mxu0 0
      %1031 = vmatprep.subr.bf16.mxu0 0
      %1032 = vmatpush1.bf16.msra.mxu0 0
      %1033 = vmatprep.subr.bf16.mxu0 0
      %1034 = vmatpush1.bf16.msra.mxu0 0
      %1035 = vmatprep.subr.bf16.mxu0 0
      %1036 = vmatpush1.bf16.msra.mxu0 0
      %1037 = vmatprep.subr.bf16.mxu0 0
      %1038 = vmatpush1.bf16.msra.mxu0 0
      %1039 = vmatprep.mubr.bf16.mxu0 0
      %1040 = vmatmul.mubr.bf16.gmra.mrb[0].mxu0 %v777
      %v1041 = vpop.f32.mrb[0].mxu0
      %v1042 = vadd.f32 %v824, %v1041
      %v1043 = vpop.f32.mrb[0].mxu0
      %v1044 = vpop.f32.mrb[0].mxu0
      %v1045 = vadd.f32 %v824, %v1044
      %v1046 = vpop.f32.mrb[0].mxu0
      %1047 = vmatprep.mubr.bf16.mxu0 0
      %1048 = vmatmul.mubr.bf16.gmra.mrb[0].mxu0 %v778
      %v1049 = vpop.f32.mrb[0].mxu0
      %v1050 = vadd.f32 %v824, %v1049
      %v1051 = vpop.f32.mrb[0].mxu0
      %v1052 = vpop.f32.mrb[0].mxu0
      %v1053 = vpop.f32.mrb[0].mxu0
      %1054 = vdwg.mxu0
      %vm1055 = vcmp.lt.s32.totalorder %v719, 17
      %v1056 = vsel %vm1055, 0.0, -1e+30
      %v1057 = vpack.c.bf16 %v995, %v991
      %v1058 = vpack.c.bf16 %v1001, %v1001
      %v1059 = vpack.c.bf16 %v997, %v993
      %v1060 = vpack.c.bf16 %v1003, %v1003
      %vm1061 = vcmask 261120
      %v1063 = vsel %vm1061, %v1057, 0
      %v1066 = vsel %vm1061, %v1058, 0
      %v1069 = vsel %vm1061, %v1059, 0
      %v1072 = vsel %vm1061, %v1060, 0
      %1074 = vmatprep.subr.bf16.mxu0 0
      %1075 = vmatpush1.bf16.xpose.msra.mxu0 %v1069
      %1076 = vmatprep.subr.bf16.mxu0 0
      %1077 = vmatpush1.bf16.xpose.msra.mxu0 %v1072
      %1078 = vmatprep.subr.bf16.mxu0 0
      %1079 = vmatpush1.bf16.xpose.msra.mxu0 0
      %1080 = vmatprep.subr.bf16.mxu0 0
      %1081 = vmatpush1.bf16.xpose.msra.mxu0 0
      %1082 = vmatprep.subr.bf16.mxu0 0
      %1083 = vmatpush1.bf16.xpose.msra.mxu0 0
      %1084 = vmatprep.subr.bf16.mxu0 0
      %1085 = vmatpush1.bf16.xpose.msra.mxu0 0
      %1086 = vmatprep.subr.bf16.mxu0 0
      %1087 = vmatpush1.bf16.xpose.msra.mxu0 0
      %1088 = vmatprep.subr.bf16.mxu0 0
      %1089 = vmatpush1.bf16.xpose.msra.mxu0 0
      %1090 = vmatprep.subr.bf16.mxu0 0
      %1091 = vmatpush1.bf16.xpose.msra.mxu0 0
      %1092 = vmatprep.subr.bf16.mxu0 0
      %1093 = vmatpush1.bf16.xpose.msra.mxu0 0
      %1094 = vmatprep.subr.bf16.mxu0 0
      %1095 = vmatpush1.bf16.xpose.msra.mxu0 0
      %1096 = vmatprep.subr.bf16.mxu0 0
      %1097 = vmatpush1.bf16.xpose.msra.mxu0 0
      %1098 = vmatprep.subr.bf16.mxu0 0
      %1099 = vmatpush1.bf16.xpose.msra.mxu0 0
      %1100 = vmatprep.subr.bf16.mxu0 0
      %1101 = vmatpush1.bf16.xpose.msra.mxu0 0
      %1102 = vmatprep.subr.bf16.mxu0 0
      %1103 = vmatpush1.bf16.xpose.msra.mxu0 0
      %1104 = vmatprep.subr.bf16.mxu0 0
      %1105 = vmatpush1.bf16.xpose.msra.mxu0 0
      %1106 = vmatprep.mubr.bf16.mxu0 0
      %1107 = vmatmul.mubr.bf16.gmra.mrb[0].mxu0 %v1063
      %v1108 = vpop.f32.mrb[0].mxu0
      %v1109 = vadd.f32 0.0, %v1108
      %v1110 = vpop.f32.mrb[0].mxu0
      %v1111 = vpop.f32.mrb[0].mxu0
      %v1112 = vadd.f32 0.0, %v1111
      %v1113 = vpop.f32.mrb[0].mxu0
      %1114 = vmatprep.mubr.bf16.mxu0 0
      %1115 = vmatmul.mubr.bf16.gmra.mrb[0].mxu0 %v1066
      %v1116 = vpop.f32.mrb[0].mxu0
      %v1117 = vadd.f32 0.0, %v1116
      %v1118 = vpop.f32.mrb[0].mxu0
      %v1119 = vpop.f32.mrb[0].mxu0
      %v1120 = vpop.f32.mrb[0].mxu0
      %1121 = vdwg.mxu0
      %v1122 = vmul.f32 %v1109, 0.35355338
      %v1123 = vmul.f32 %v1112, 0.35355338
      %v1124 = vmul.f32 %v1117, 0.35355338
      %v1125 = vadd.f32 %v1122, %v1056
      %v1126 = vadd.f32 %v1123, %v1056
      %v1127 = vadd.f32 %v1124, %v1056
      %vm1128 = vcmask 195584
      %v1129 = vsel %vm1128, %v1125, -inf
      %1130 = vmax.xlane.f32.xlu0 %v1129
      %v1131 = vpop.xlane.xlu0 %1130
      %v1132 = vsel %vm1128, %v1126, -inf
      %1133 = vmax.xlane.f32.xlu0 %v1132
      %v1134 = vpop.xlane.xlu0 %1133
      %v1135 = vsel %vm1128, %v1127, -inf
      %1136 = vmax.xlane.f32.xlu0 %v1135
      %v1137 = vpop.xlane.xlu0 %1136
      %v1138 = vsub.f32 %v1125, %v1131
      %v1139 = vsub.f32 %v1126, %v1134
      %v1140 = vsub.f32 %v1127, %v1137
      %v1141 = vmul.f32 %v1138, 1.442695
      %v1142 = vpow.pop %v1141
      %v1143 = vmul.f32 %v1139, 1.442695
      %v1144 = vpow.pop %v1143
      %v1145 = vmul.f32 %v1140, 1.442695
      %v1146 = vpow.pop %v1145
      %v1147 = vsel %vm1128, %v1142, 0.0
      %1148 = vadd.xlane.f32.xlu0 %v1147
      %v1149 = vpop.xlane.xlu0 %1148
      %v1150 = vsel %vm1128, %v1144, 0.0
      %1151 = vadd.xlane.f32.xlu0 %v1150
      %v1152 = vpop.xlane.xlu0 %1151
      %v1153 = vsel %vm1128, %v1146, 0.0
      %1154 = vadd.xlane.f32.xlu0 %v1153
      %v1155 = vpop.xlane.xlu0 %1154
      %v1156 = vrcp.pop %v1149
      %v1157 = vrcp.pop %v1152
      %v1158 = vrcp.pop %v1155
      %v1159 = vmul.f32 %v1142, %v1156
      %v1160 = vmul.f32 %v1144, %v1157
      %v1161 = vmul.f32 %v1146, %v1158
      %v1162 = vpack.c.bf16 %v1160, %v1159
      %v1163 = vpack.c.bf16 %v1161, %v1161
      %v1164 = vpack.c.bf16 %v1045, %v1042
      %v1165 = vpack.c.bf16 %v1050, %v1050
      %v1167 = vsel %vm1128, %v1162, 0
      %v1170 = vsel %vm1128, %v1163, 0
      %vm1172 = vcmask 1043456
      %v1174 = vsel %vm1172, %v1165, 0
      %1176 = vmatprep.subr.bf16.mxu0 0
      %1177 = vmatpush1.bf16.msra.mxu0 %v1164
      %1178 = vmatprep.subr.bf16.mxu0 0
      %1179 = vmatpush1.bf16.msra.mxu0 %v1174
      %1180 = vmatprep.subr.bf16.mxu0 0
      %1181 = vmatpush1.bf16.msra.mxu0 0
      %1182 = vmatprep.subr.bf16.mxu0 0
      %1183 = vmatpush1.bf16.msra.mxu0 0
      %1184 = vmatprep.subr.bf16.mxu0 0
      %1185 = vmatpush1.bf16.msra.mxu0 0
      %1186 = vmatprep.subr.bf16.mxu0 0
      %1187 = vmatpush1.bf16.msra.mxu0 0
      %1188 = vmatprep.subr.bf16.mxu0 0
      %1189 = vmatpush1.bf16.msra.mxu0 0
      %1190 = vmatprep.subr.bf16.mxu0 0
      %1191 = vmatpush1.bf16.msra.mxu0 0
      %1192 = vmatprep.subr.bf16.mxu0 0
      %1193 = vmatpush1.bf16.msra.mxu0 0
      %1194 = vmatprep.subr.bf16.mxu0 0
      %1195 = vmatpush1.bf16.msra.mxu0 0
      %1196 = vmatprep.subr.bf16.mxu0 0
      %1197 = vmatpush1.bf16.msra.mxu0 0
      %1198 = vmatprep.subr.bf16.mxu0 0
      %1199 = vmatpush1.bf16.msra.mxu0 0
      %1200 = vmatprep.subr.bf16.mxu0 0
      %1201 = vmatpush1.bf16.msra.mxu0 0
      %1202 = vmatprep.subr.bf16.mxu0 0
      %1203 = vmatpush1.bf16.msra.mxu0 0
      %1204 = vmatprep.subr.bf16.mxu0 0
      %1205 = vmatpush1.bf16.msra.mxu0 0
      %1206 = vmatprep.subr.bf16.mxu0 0
      %1207 = vmatpush1.bf16.msra.mxu0 0
      %1208 = vmatprep.mubr.bf16.mxu0 0
      %1209 = vmatmul.mubr.bf16.gmra.mrb[0].mxu0 %v1167
      %v1210 = vpop.f32.mrb[0].mxu0
      %v1211 = vadd.f32 0.0, %v1210
      %v1212 = vpop.f32.mrb[0].mxu0
      %v1213 = vpop.f32.mrb[0].mxu0
      %v1214 = vadd.f32 0.0, %v1213
      %v1215 = vpop.f32.mrb[0].mxu0
      %1216 = vmatprep.mubr.bf16.mxu0 0
      %1217 = vmatmul.mubr.bf16.gmra.mrb[0].mxu0 %v1170
      %v1218 = vpop.f32.mrb[0].mxu0
      %v1219 = vadd.f32 0.0, %v1218
      %v1220 = vpop.f32.mrb[0].mxu0
      %v1221 = vpop.f32.mrb[0].mxu0
      %v1222 = vpop.f32.mrb[0].mxu0
      %1223 = vdwg.mxu0
      %1226 = vrot.lane.b32.xlu0 %v1057, 96
      %v1227 = vpop.permute.xlu0 %1226
      %1228 = vrot.lane.b32.xlu0 %v1058, 96
      %v1229 = vpop.permute.xlu0 %1228
      %1232 = vrot.lane.b32.xlu0 %v1059, 96
      %v1233 = vpop.permute.xlu0 %1232
      %1234 = vrot.lane.b32.xlu0 %v1060, 96
      %v1235 = vpop.permute.xlu0 %1234
      %v1237 = vsel %vm1061, %v1227, 0
      %v1240 = vsel %vm1061, %v1229, 0
      %v1243 = vsel %vm1061, %v1233, 0
      %v1246 = vsel %vm1061, %v1235, 0
      %1248 = vmatprep.subr.bf16.mxu0 0
      %1249 = vmatpush1.bf16.xpose.msra.mxu0 %v1243
      %1250 = vmatprep.subr.bf16.mxu0 0
      %1251 = vmatpush1.bf16.xpose.msra.mxu0 %v1246
      %1252 = vmatprep.subr.bf16.mxu0 0
      %1253 = vmatpush1.bf16.xpose.msra.mxu0 0
      %1254 = vmatprep.subr.bf16.mxu0 0
      %1255 = vmatpush1.bf16.xpose.msra.mxu0 0
      %1256 = vmatprep.subr.bf16.mxu0 0
      %1257 = vmatpush1.bf16.xpose.msra.mxu0 0
      %1258 = vmatprep.subr.bf16.mxu0 0
      %1259 = vmatpush1.bf16.xpose.msra.mxu0 0
      %1260 = vmatprep.subr.bf16.mxu0 0
      %1261 = vmatpush1.bf16.xpose.msra.mxu0 0
      %1262 = vmatprep.subr.bf16.mxu0 0
      %1263 = vmatpush1.bf16.xpose.msra.mxu0 0
      %1264 = vmatprep.subr.bf16.mxu0 0
      %1265 = vmatpush1.bf16.xpose.msra.mxu0 0
      %1266 = vmatprep.subr.bf16.mxu0 0
      %1267 = vmatpush1.bf16.xpose.msra.mxu0 0
      %1268 = vmatprep.subr.bf16.mxu0 0
      %1269 = vmatpush1.bf16.xpose.msra.mxu0 0
      %1270 = vmatprep.subr.bf16.mxu0 0
      %1271 = vmatpush1.bf16.xpose.msra.mxu0 0
      %1272 = vmatprep.subr.bf16.mxu0 0
      %1273 = vmatpush1.bf16.xpose.msra.mxu0 0
      %1274 = vmatprep.subr.bf16.mxu0 0
      %1275 = vmatpush1.bf16.xpose.msra.mxu0 0
      %1276 = vmatprep.subr.bf16.mxu0 0
      %1277 = vmatpush1.bf16.xpose.msra.mxu0 0
      %1278 = vmatprep.subr.bf16.mxu0 0
      %1279 = vmatpush1.bf16.xpose.msra.mxu0 0
      %1280 = vmatprep.mubr.bf16.mxu0 0
      %1281 = vmatmul.mubr.bf16.gmra.mrb[0].mxu0 %v1237
      %v1282 = vpop.f32.mrb[0].mxu0
      %v1283 = vadd.f32 0.0, %v1282
      %v1284 = vpop.f32.mrb[0].mxu0
      %v1285 = vpop.f32.mrb[0].mxu0
      %v1286 = vadd.f32 0.0, %v1285
      %v1287 = vpop.f32.mrb[0].mxu0
      %1288 = vmatprep.mubr.bf16.mxu0 0
      %1289 = vmatmul.mubr.bf16.gmra.mrb[0].mxu0 %v1240
      %v1290 = vpop.f32.mrb[0].mxu0
      %v1291 = vadd.f32 0.0, %v1290
      %v1292 = vpop.f32.mrb[0].mxu0
      %v1293 = vpop.f32.mrb[0].mxu0
      %v1294 = vpop.f32.mrb[0].mxu0
      %1295 = vdwg.mxu0
      %v1296 = vmul.f32 %v1283, 0.35355338
      %v1297 = vmul.f32 %v1286, 0.35355338
      %v1298 = vmul.f32 %v1291, 0.35355338
      %v1299 = vadd.f32 %v1296, %v1056
      %v1300 = vadd.f32 %v1297, %v1056
      %v1301 = vadd.f32 %v1298, %v1056
      %v1302 = vsel %vm1128, %v1299, -inf
      %1303 = vmax.xlane.f32.xlu0 %v1302
      %v1304 = vpop.xlane.xlu0 %1303
      %v1305 = vsel %vm1128, %v1300, -inf
      %1306 = vmax.xlane.f32.xlu0 %v1305
      %v1307 = vpop.xlane.xlu0 %1306
      %v1308 = vsel %vm1128, %v1301, -inf
      %1309 = vmax.xlane.f32.xlu0 %v1308
      %v1310 = vpop.xlane.xlu0 %1309
      %v1311 = vsub.f32 %v1299, %v1304
      %v1312 = vsub.f32 %v1300, %v1307
      %v1313 = vsub.f32 %v1301, %v1310
      %v1314 = vmul.f32 %v1311, 1.442695
      %v1315 = vpow.pop %v1314
      %v1316 = vmul.f32 %v1312, 1.442695
      %v1317 = vpow.pop %v1316
      %v1318 = vmul.f32 %v1313, 1.442695
      %v1319 = vpow.pop %v1318
      %v1320 = vsel %vm1128, %v1315, 0.0
      %1321 = vadd.xlane.f32.xlu0 %v1320
      %v1322 = vpop.xlane.xlu0 %1321
      %v1323 = vsel %vm1128, %v1317, 0.0
      %1324 = vadd.xlane.f32.xlu0 %v1323
      %v1325 = vpop.xlane.xlu0 %1324
      %v1326 = vsel %vm1128, %v1319, 0.0
      %1327 = vadd.xlane.f32.xlu0 %v1326
      %v1328 = vpop.xlane.xlu0 %1327
      %v1329 = vrcp.pop %v1322
      %v1330 = vrcp.pop %v1325
      %v1331 = vrcp.pop %v1328
      %v1332 = vmul.f32 %v1315, %v1329
      %v1333 = vmul.f32 %v1317, %v1330
      %v1334 = vmul.f32 %v1319, %v1331
      %v1335 = vpack.c.bf16 %v1333, %v1332
      %v1336 = vpack.c.bf16 %v1334, %v1334
      %1339 = vrot.lane.b32.xlu0 %v1164, 96
      %v1340 = vpop.permute.xlu0 %1339
      %1341 = vrot.lane.b32.xlu0 %v1165, 96
      %v1342 = vpop.permute.xlu0 %1341
      %v1345 = vsel %vm1128, %v1335, 0
      %v1348 = vsel %vm1128, %v1336, 0
      %v1351 = vsel %vm1172, %v1342, 0
      %1353 = vmatprep.subr.bf16.mxu0 0
      %1354 = vmatpush1.bf16.msra.mxu0 %v1340
      %1355 = vmatprep.subr.bf16.mxu0 0
      %1356 = vmatpush1.bf16.msra.mxu0 %v1351
      %1357 = vmatprep.subr.bf16.mxu0 0
      %1358 = vmatpush1.bf16.msra.mxu0 0
      %1359 = vmatprep.subr.bf16.mxu0 0
      %1360 = vmatpush1.bf16.msra.mxu0 0
      %1361 = vmatprep.subr.bf16.mxu0 0
      %1362 = vmatpush1.bf16.msra.mxu0 0
      %1363 = vmatprep.subr.bf16.mxu0 0
      %1364 = vmatpush1.bf16.msra.mxu0 0
      %1365 = vmatprep.subr.bf16.mxu0 0
      %1366 = vmatpush1.bf16.msra.mxu0 0
      %1367 = vmatprep.subr.bf16.mxu0 0
      %1368 = vmatpush1.bf16.msra.mxu0 0
      %1369 = vmatprep.subr.bf16.mxu0 0
      %1370 = vmatpush1.bf16.msra.mxu0 0
      %1371 = vmatprep.subr.bf16.mxu0 0
      %1372 = vmatpush1.bf16.msra.mxu0 0
      %1373 = vmatprep.subr.bf16.mxu0 0
      %1374 = vmatpush1.bf16.msra.mxu0 0
      %1375 = vmatprep.subr.bf16.mxu0 0
      %1376 = vmatpush1.bf16.msra.mxu0 0
      %1377 = vmatprep.subr.bf16.mxu0 0
      %1378 = vmatpush1.bf16.msra.mxu0 0
      %1379 = vmatprep.subr.bf16.mxu0 0
      %1380 = vmatpush1.bf16.msra.mxu0 0
      %1381 = vmatprep.subr.bf16.mxu0 0
      %1382 = vmatpush1.bf16.msra.mxu0 0
      %1383 = vmatprep.subr.bf16.mxu0 0
      %1384 = vmatpush1.bf16.msra.mxu0 0
      %1385 = vmatprep.mubr.bf16.mxu0 0
      %1386 = vmatmul.mubr.bf16.gmra.mrb[0].mxu0 %v1345
      %v1387 = vpop.f32.mrb[0].mxu0
      %v1388 = vadd.f32 0.0, %v1387
      %v1389 = vpop.f32.mrb[0].mxu0
      %v1390 = vpop.f32.mrb[0].mxu0
      %v1391 = vadd.f32 0.0, %v1390
      %v1392 = vpop.f32.mrb[0].mxu0
      %1393 = vmatprep.mubr.bf16.mxu0 0
      %1394 = vmatmul.mubr.bf16.gmra.mrb[0].mxu0 %v1348
      %v1395 = vpop.f32.mrb[0].mxu0
      %v1396 = vadd.f32 0.0, %v1395
      %v1397 = vpop.f32.mrb[0].mxu0
      %v1398 = vpop.f32.mrb[0].mxu0
      %v1399 = vpop.f32.mrb[0].mxu0
      %1400 = vdwg.mxu0
      %1401 = vrot.lane.b32.xlu0 %v1057, 64
      %v1402 = vpop.permute.xlu0 %1401
      %1403 = vrot.lane.b32.xlu0 %v1058, 64
      %v1404 = vpop.permute.xlu0 %1403
      %1405 = vrot.lane.b32.xlu0 %v1059, 64
      %v1406 = vpop.permute.xlu0 %1405
      %1407 = vrot.lane.b32.xlu0 %v1060, 64
      %v1408 = vpop.permute.xlu0 %1407
      %v1410 = vsel %vm1061, %v1402, 0
      %v1413 = vsel %vm1061, %v1404, 0
      %v1416 = vsel %vm1061, %v1406, 0
      %v1419 = vsel %vm1061, %v1408, 0
      %1421 = vmatprep.subr.bf16.mxu0 0
      %1422 = vmatpush1.bf16.xpose.msra.mxu0 %v1416
      %1423 = vmatprep.subr.bf16.mxu0 0
      %1424 = vmatpush1.bf16.xpose.msra.mxu0 %v1419
      %1425 = vmatprep.subr.bf16.mxu0 0
      %1426 = vmatpush1.bf16.xpose.msra.mxu0 0
      %1427 = vmatprep.subr.bf16.mxu0 0
      %1428 = vmatpush1.bf16.xpose.msra.mxu0 0
      %1429 = vmatprep.subr.bf16.mxu0 0
      %1430 = vmatpush1.bf16.xpose.msra.mxu0 0
      %1431 = vmatprep.subr.bf16.mxu0 0
      %1432 = vmatpush1.bf16.xpose.msra.mxu0 0
      %1433 = vmatprep.subr.bf16.mxu0 0
      %1434 = vmatpush1.bf16.xpose.msra.mxu0 0
      %1435 = vmatprep.subr.bf16.mxu0 0
      %1436 = vmatpush1.bf16.xpose.msra.mxu0 0
      %1437 = vmatprep.subr.bf16.mxu0 0
      %1438 = vmatpush1.bf16.xpose.msra.mxu0 0
      %1439 = vmatprep.subr.bf16.mxu0 0
      %1440 = vmatpush1.bf16.xpose.msra.mxu0 0
      %1441 = vmatprep.subr.bf16.mxu0 0
      %1442 = vmatpush1.bf16.xpose.msra.mxu0 0
      %1443 = vmatprep.subr.bf16.mxu0 0
      %1444 = vmatpush1.bf16.xpose.msra.mxu0 0
      %1445 = vmatprep.subr.bf16.mxu0 0
      %1446 = vmatpush1.bf16.xpose.msra.mxu0 0
      %1447 = vmatprep.subr.bf16.mxu0 0
      %1448 = vmatpush1.bf16.xpose.msra.mxu0 0
      %1449 = vmatprep.subr.bf16.mxu0 0
      %1450 = vmatpush1.bf16.xpose.msra.mxu0 0
      %1451 = vmatprep.subr.bf16.mxu0 0
      %1452 = vmatpush1.bf16.xpose.msra.mxu0 0
      %1453 = vmatprep.mubr.bf16.mxu0 0
      %1454 = vmatmul.mubr.bf16.gmra.mrb[0].mxu0 %v1410
      %v1455 = vpop.f32.mrb[0].mxu0
      %v1456 = vadd.f32 0.0, %v1455
      %v1457 = vpop.f32.mrb[0].mxu0
      %v1458 = vpop.f32.mrb[0].mxu0
      %v1459 = vadd.f32 0.0, %v1458
      %v1460 = vpop.f32.mrb[0].mxu0
      %1461 = vmatprep.mubr.bf16.mxu0 0
      %1462 = vmatmul.mubr.bf16.gmra.mrb[0].mxu0 %v1413
      %v1463 = vpop.f32.mrb[0].mxu0
      %v1464 = vadd.f32 0.0, %v1463
      %v1465 = vpop.f32.mrb[0].mxu0
      %v1466 = vpop.f32.mrb[0].mxu0
      %v1467 = vpop.f32.mrb[0].mxu0
      %1468 = vdwg.mxu0
      %v1469 = vmul.f32 %v1456, 0.35355338
      %v1470 = vmul.f32 %v1459, 0.35355338
      %v1471 = vmul.f32 %v1464, 0.35355338
      %v1472 = vadd.f32 %v1469, %v1056
      %v1473 = vadd.f32 %v1470, %v1056
      %v1474 = vadd.f32 %v1471, %v1056
      %v1475 = vsel %vm1128, %v1472, -inf
      %1476 = vmax.xlane.f32.xlu0 %v1475
      %v1477 = vpop.xlane.xlu0 %1476
      %v1478 = vsel %vm1128, %v1473, -inf
      %1479 = vmax.xlane.f32.xlu0 %v1478
      %v1480 = vpop.xlane.xlu0 %1479
      %v1481 = vsel %vm1128, %v1474, -inf
      %1482 = vmax.xlane.f32.xlu0 %v1481
      %v1483 = vpop.xlane.xlu0 %1482
      %v1484 = vsub.f32 %v1472, %v1477
      %v1485 = vsub.f32 %v1473, %v1480
      %v1486 = vsub.f32 %v1474, %v1483
      %v1487 = vmul.f32 %v1484, 1.442695
      %v1488 = vpow.pop %v1487
      %v1489 = vmul.f32 %v1485, 1.442695
      %v1490 = vpow.pop %v1489
      %v1491 = vmul.f32 %v1486, 1.442695
      %v1492 = vpow.pop %v1491
      %v1493 = vsel %vm1128, %v1488, 0.0
      %1494 = vadd.xlane.f32.xlu0 %v1493
      %v1495 = vpop.xlane.xlu0 %1494
      %v1496 = vsel %vm1128, %v1490, 0.0
      %1497 = vadd.xlane.f32.xlu0 %v1496
      %v1498 = vpop.xlane.xlu0 %1497
      %v1499 = vsel %vm1128, %v1492, 0.0
      %1500 = vadd.xlane.f32.xlu0 %v1499
      %v1501 = vpop.xlane.xlu0 %1500
      %v1502 = vrcp.pop %v1495
      %v1503 = vrcp.pop %v1498
      %v1504 = vrcp.pop %v1501
      %v1505 = vmul.f32 %v1488, %v1502
      %v1506 = vmul.f32 %v1490, %v1503
      %v1507 = vmul.f32 %v1492, %v1504
      %v1508 = vpack.c.bf16 %v1506, %v1505
      %v1509 = vpack.c.bf16 %v1507, %v1507
      %1510 = vrot.lane.b32.xlu0 %v1164, 64
      %v1511 = vpop.permute.xlu0 %1510
      %1512 = vrot.lane.b32.xlu0 %v1165, 64
      %v1513 = vpop.permute.xlu0 %1512
      %v1516 = vsel %vm1128, %v1508, 0
      %v1519 = vsel %vm1128, %v1509, 0
      %v1522 = vsel %vm1172, %v1513, 0
      %1524 = vmatprep.subr.bf16.mxu0 0
      %1525 = vmatpush1.bf16.msra.mxu0 %v1511
      %1526 = vmatprep.subr.bf16.mxu0 0
      %1527 = vmatpush1.bf16.msra.mxu0 %v1522
      %1528 = vmatprep.subr.bf16.mxu0 0
      %1529 = vmatpush1.bf16.msra.mxu0 0
      %1530 = vmatprep.subr.bf16.mxu0 0
      %1531 = vmatpush1.bf16.msra.mxu0 0
      %1532 = vmatprep.subr.bf16.mxu0 0
      %1533 = vmatpush1.bf16.msra.mxu0 0
      %1534 = vmatprep.subr.bf16.mxu0 0
      %1535 = vmatpush1.bf16.msra.mxu0 0
      %1536 = vmatprep.subr.bf16.mxu0 0
      %1537 = vmatpush1.bf16.msra.mxu0 0
      %1538 = vmatprep.subr.bf16.mxu0 0
      %1539 = vmatpush1.bf16.msra.mxu0 0
      %1540 = vmatprep.subr.bf16.mxu0 0
      %1541 = vmatpush1.bf16.msra.mxu0 0
      %1542 = vmatprep.subr.bf16.mxu0 0
      %1543 = vmatpush1.bf16.msra.mxu0 0
      %1544 = vmatprep.subr.bf16.mxu0 0
      %1545 = vmatpush1.bf16.msra.mxu0 0
      %1546 = vmatprep.subr.bf16.mxu0 0
      %1547 = vmatpush1.bf16.msra.mxu0 0
      %1548 = vmatprep.subr.bf16.mxu0 0
      %1549 = vmatpush1.bf16.msra.mxu0 0
      %1550 = vmatprep.subr.bf16.mxu0 0
      %1551 = vmatpush1.bf16.msra.mxu0 0
      %1552 = vmatprep.subr.bf16.mxu0 0
      %1553 = vmatpush1.bf16.msra.mxu0 0
      %1554 = vmatprep.subr.bf16.mxu0 0
      %1555 = vmatpush1.bf16.msra.mxu0 0
      %1556 = vmatprep.mubr.bf16.mxu0 0
      %1557 = vmatmul.mubr.bf16.gmra.mrb[0].mxu0 %v1516
      %v1558 = vpop.f32.mrb[0].mxu0
      %v1559 = vadd.f32 0.0, %v1558
      %v1560 = vpop.f32.mrb[0].mxu0
      %v1561 = vpop.f32.mrb[0].mxu0
      %v1562 = vadd.f32 0.0, %v1561
      %v1563 = vpop.f32.mrb[0].mxu0
      %1564 = vmatprep.mubr.bf16.mxu0 0
      %1565 = vmatmul.mubr.bf16.gmra.mrb[0].mxu0 %v1519
      %v1566 = vpop.f32.mrb[0].mxu0
      %v1567 = vadd.f32 0.0, %v1566
      %v1568 = vpop.f32.mrb[0].mxu0
      %v1569 = vpop.f32.mrb[0].mxu0
      %v1570 = vpop.f32.mrb[0].mxu0
      %1571 = vdwg.mxu0
      %1572 = vrot.lane.b32.xlu0 %v1057, 32
      %v1573 = vpop.permute.xlu0 %1572
      %1574 = vrot.lane.b32.xlu0 %v1058, 32
      %v1575 = vpop.permute.xlu0 %1574
      %1576 = vrot.lane.b32.xlu0 %v1059, 32
      %v1577 = vpop.permute.xlu0 %1576
      %1578 = vrot.lane.b32.xlu0 %v1060, 32
      %v1579 = vpop.permute.xlu0 %1578
      %v1581 = vsel %vm1061, %v1573, 0
      %v1584 = vsel %vm1061, %v1575, 0
      %v1587 = vsel %vm1061, %v1577, 0
      %v1590 = vsel %vm1061, %v1579, 0
      %1592 = vmatprep.subr.bf16.mxu0 0
      %1593 = vmatpush1.bf16.xpose.msra.mxu0 %v1587
      %1594 = vmatprep.subr.bf16.mxu0 0
      %1595 = vmatpush1.bf16.xpose.msra.mxu0 %v1590
      %1596 = vmatprep.subr.bf16.mxu0 0
      %1597 = vmatpush1.bf16.xpose.msra.mxu0 0
      %1598 = vmatprep.subr.bf16.mxu0 0
      %1599 = vmatpush1.bf16.xpose.msra.mxu0 0
      %1600 = vmatprep.subr.bf16.mxu0 0
      %1601 = vmatpush1.bf16.xpose.msra.mxu0 0
      %1602 = vmatprep.subr.bf16.mxu0 0
      %1603 = vmatpush1.bf16.xpose.msra.mxu0 0
      %1604 = vmatprep.subr.bf16.mxu0 0
      %1605 = vmatpush1.bf16.xpose.msra.mxu0 0
      %1606 = vmatprep.subr.bf16.mxu0 0
      %1607 = vmatpush1.bf16.xpose.msra.mxu0 0
      %1608 = vmatprep.subr.bf16.mxu0 0
      %1609 = vmatpush1.bf16.xpose.msra.mxu0 0
      %1610 = vmatprep.subr.bf16.mxu0 0
      %1611 = vmatpush1.bf16.xpose.msra.mxu0 0
      %1612 = vmatprep.subr.bf16.mxu0 0
      %1613 = vmatpush1.bf16.xpose.msra.mxu0 0
      %1614 = vmatprep.subr.bf16.mxu0 0
      %1615 = vmatpush1.bf16.xpose.msra.mxu0 0
      %1616 = vmatprep.subr.bf16.mxu0 0
      %1617 = vmatpush1.bf16.xpose.msra.mxu0 0
      %1618 = vmatprep.subr.bf16.mxu0 0
      %1619 = vmatpush1.bf16.xpose.msra.mxu0 0
      %1620 = vmatprep.subr.bf16.mxu0 0
      %1621 = vmatpush1.bf16.xpose.msra.mxu0 0
      %1622 = vmatprep.subr.bf16.mxu0 0
      %1623 = vmatpush1.bf16.xpose.msra.mxu0 0
      %1624 = vmatprep.mubr.bf16.mxu0 0
      %1625 = vmatmul.mubr.bf16.gmra.mrb[0].mxu0 %v1581
      %v1626 = vpop.f32.mrb[0].mxu0
      %v1627 = vadd.f32 0.0, %v1626
      %v1628 = vpop.f32.mrb[0].mxu0
      %v1629 = vpop.f32.mrb[0].mxu0
      %v1630 = vadd.f32 0.0, %v1629
      %v1631 = vpop.f32.mrb[0].mxu0
      %1632 = vmatprep.mubr.bf16.mxu0 0
      %1633 = vmatmul.mubr.bf16.gmra.mrb[0].mxu0 %v1584
      %v1634 = vpop.f32.mrb[0].mxu0
      %v1635 = vadd.f32 0.0, %v1634
      %v1636 = vpop.f32.mrb[0].mxu0
      %v1637 = vpop.f32.mrb[0].mxu0
      %v1638 = vpop.f32.mrb[0].mxu0
      %1639 = vdwg.mxu0
      %v1640 = vmul.f32 %v1627, 0.35355338
      %v1641 = vmul.f32 %v1630, 0.35355338
      %v1642 = vmul.f32 %v1635, 0.35355338
      %v1643 = vadd.f32 %v1640, %v1056
      %v1644 = vadd.f32 %v1641, %v1056
      %v1645 = vadd.f32 %v1642, %v1056
      %v1646 = vsel %vm1128, %v1643, -inf
      %1647 = vmax.xlane.f32.xlu0 %v1646
      %v1648 = vpop.xlane.xlu0 %1647
      %v1649 = vsel %vm1128, %v1644, -inf
      %1650 = vmax.xlane.f32.xlu0 %v1649
      %v1651 = vpop.xlane.xlu0 %1650
      %v1652 = vsel %vm1128, %v1645, -inf
      %1653 = vmax.xlane.f32.xlu0 %v1652
      %v1654 = vpop.xlane.xlu0 %1653
      %v1655 = vsub.f32 %v1643, %v1648
      %v1656 = vsub.f32 %v1644, %v1651
      %v1657 = vsub.f32 %v1645, %v1654
      %v1658 = vmul.f32 %v1655, 1.442695
      %v1659 = vpow.pop %v1658
      %v1660 = vmul.f32 %v1656, 1.442695
      %v1661 = vpow.pop %v1660
      %v1662 = vmul.f32 %v1657, 1.442695
      %v1663 = vpow.pop %v1662
      %v1664 = vsel %vm1128, %v1659, 0.0
      %1665 = vadd.xlane.f32.xlu0 %v1664
      %v1666 = vpop.xlane.xlu0 %1665
      %v1667 = vsel %vm1128, %v1661, 0.0
      %1668 = vadd.xlane.f32.xlu0 %v1667
      %v1669 = vpop.xlane.xlu0 %1668
      %v1670 = vsel %vm1128, %v1663, 0.0
      %1671 = vadd.xlane.f32.xlu0 %v1670
      %v1672 = vpop.xlane.xlu0 %1671
      %v1673 = vrcp.pop %v1666
      %v1674 = vrcp.pop %v1669
      %v1675 = vrcp.pop %v1672
      %v1676 = vmul.f32 %v1659, %v1673
      %v1677 = vmul.f32 %v1661, %v1674
      %v1678 = vmul.f32 %v1663, %v1675
      %v1679 = vpack.c.bf16 %v1677, %v1676
      %v1680 = vpack.c.bf16 %v1678, %v1678
      %1681 = vrot.lane.b32.xlu0 %v1164, 32
      %v1682 = vpop.permute.xlu0 %1681
      %1683 = vrot.lane.b32.xlu0 %v1165, 32
      %v1684 = vpop.permute.xlu0 %1683
      %v1687 = vsel %vm1128, %v1679, 0
      %v1690 = vsel %vm1128, %v1680, 0
      %v1693 = vsel %vm1172, %v1684, 0
      %1695 = vmatprep.subr.bf16.mxu0 0
      %1696 = vmatpush1.bf16.msra.mxu0 %v1682
      %1697 = vmatprep.subr.bf16.mxu0 0
      %1698 = vmatpush1.bf16.msra.mxu0 %v1693
      %1699 = vmatprep.subr.bf16.mxu0 0
      %1700 = vmatpush1.bf16.msra.mxu0 0
      %1701 = vmatprep.subr.bf16.mxu0 0
      %1702 = vmatpush1.bf16.msra.mxu0 0
      %1703 = vmatprep.subr.bf16.mxu0 0
      %1704 = vmatpush1.bf16.msra.mxu0 0
      %1705 = vmatprep.subr.bf16.mxu0 0
      %1706 = vmatpush1.bf16.msra.mxu0 0
      %1707 = vmatprep.subr.bf16.mxu0 0
      %1708 = vmatpush1.bf16.msra.mxu0 0
      %1709 = vmatprep.subr.bf16.mxu0 0
      %1710 = vmatpush1.bf16.msra.mxu0 0
      %1711 = vmatprep.subr.bf16.mxu0 0
      %1712 = vmatpush1.bf16.msra.mxu0 0
      %1713 = vmatprep.subr.bf16.mxu0 0
      %1714 = vmatpush1.bf16.msra.mxu0 0
      %1715 = vmatprep.subr.bf16.mxu0 0
      %1716 = vmatpush1.bf16.msra.mxu0 0
      %1717 = vmatprep.subr.bf16.mxu0 0
      %1718 = vmatpush1.bf16.msra.mxu0 0
      %1719 = vmatprep.subr.bf16.mxu0 0
      %1720 = vmatpush1.bf16.msra.mxu0 0
      %1721 = vmatprep.subr.bf16.mxu0 0
      %1722 = vmatpush1.bf16.msra.mxu0 0
      %1723 = vmatprep.subr.bf16.mxu0 0
      %1724 = vmatpush1.bf16.msra.mxu0 0
      %1725 = vmatprep.subr.bf16.mxu0 0
      %1726 = vmatpush1.bf16.msra.mxu0 0
      %1727 = vmatprep.mubr.bf16.mxu0 0
      %1728 = vmatmul.mubr.bf16.gmra.mrb[0].mxu0 %v1687
      %v1729 = vpop.f32.mrb[0].mxu0
      %v1730 = vadd.f32 0.0, %v1729
      %v1731 = vpop.f32.mrb[0].mxu0
      %v1732 = vpop.f32.mrb[0].mxu0
      %v1733 = vadd.f32 0.0, %v1732
      %v1734 = vpop.f32.mrb[0].mxu0
      %1735 = vmatprep.mubr.bf16.mxu0 0
      %1736 = vmatmul.mubr.bf16.gmra.mrb[0].mxu0 %v1690
      %v1737 = vpop.f32.mrb[0].mxu0
      %v1738 = vadd.f32 0.0, %v1737
      %v1739 = vpop.f32.mrb[0].mxu0
      %v1740 = vpop.f32.mrb[0].mxu0
      %v1741 = vpop.f32.mrb[0].mxu0
      %1742 = vdwg.mxu0
      %1746 = vrot.lane.b32.xlu0 %v1388, 32
      %v1747 = vpop.permute.xlu0 %1746
      %1748 = vrot.lane.b32.xlu0 %v1391, 32
      %v1749 = vpop.permute.xlu0 %1748
      %1750 = vrot.lane.b32.xlu0 %v1396, 32
      %v1751 = vpop.permute.xlu0 %1750
      %1758 = vrot.lane.b32.xlu0 %v1559, 64
      %v1759 = vpop.permute.xlu0 %1758
      %1760 = vrot.lane.b32.xlu0 %v1562, 64
      %v1761 = vpop.permute.xlu0 %1760
      %1762 = vrot.lane.b32.xlu0 %v1567, 64
      %v1763 = vpop.permute.xlu0 %1762
      %1770 = vrot.lane.b32.xlu0 %v1730, 96
      %v1771 = vpop.permute.xlu0 %1770
      %1772 = vrot.lane.b32.xlu0 %v1733, 96
      %v1773 = vpop.permute.xlu0 %1772
      %1774 = vrot.lane.b32.xlu0 %v1738, 96
      %v1775 = vpop.permute.xlu0 %1774
      %v1779 = vsel %vm1061, %v1211, %v1747
      %v1780 = vsel %vm1061, %v1214, %v1749
      %v1781 = vsel %vm1061, %v1219, %v1751
      %vm1782 = vcmask 523264
      %v1783 = vsel %vm1782, %v1779, %v1759
      %v1784 = vsel %vm1782, %v1780, %v1761
      %v1785 = vsel %vm1782, %v1781, %v1763
      %vm1786 = vcmask 785408
      %v1787 = vsel %vm1786, %v1783, %v1771
      %v1788 = vsel %vm1786, %v1784, %v1773
      %v1789 = vsel %vm1786, %v1785, %v1775
      %v1790 = vpack.c.bf16 %v1788, %v1787
      %v1791 = vpack.c.bf16 %v1789, %v1789
      %v1792 = vld [vmem:[%s671] sm:$0xf]
      %v1793 = vld [vmem:[%s671 + $0x4] sm:$0xf]
      %v1794 = vld [vmem:[%s671 + $0x8] sm:$0xf]
      %v1795 = vld [vmem:[%s671 + $0xc] sm:$0xf]
      %v1796 = vld [vmem:[%s671 + $0x10] sm:$0xf]
      %v1797 = vld [vmem:[%s671 + $0x14] sm:$0xf]
      %v1798 = vld [vmem:[%s671 + $0x18] sm:$0xf]
      %v1799 = vld [vmem:[%s671 + $0x1c] sm:$0xf]
      %v1800 = vld [vmem:[%s671 + $0x20] sm:$0xf]
      %v1801 = vld [vmem:[%s671 + $0x24] sm:$0xf]
      %v1802 = vld [vmem:[%s671 + $0x28] sm:$0xf]
      %v1803 = vld [vmem:[%s671 + $0x2c] sm:$0xf]
      %v1804 = vld [vmem:[%s671 + $0x30] sm:$0xf]
      %v1805 = vld [vmem:[%s671 + $0x34] sm:$0xf]
      %v1806 = vld [vmem:[%s671 + $0x38] sm:$0xf]
      %v1807 = vld [vmem:[%s671 + $0x3c] sm:$0xf]
      %v1808 = vld [vmem:[%s674] sm:$0x1]
      %v1810 = vlaneseq
      %v1811 = vshrl.u32 %v1810, 7
      %v1812 = vsub.s32 0, %v1811
      %v1813 = vrot.slane %v1808, %v1812
      %v1831 = vunpack.c.l.b16 %v1792
      %v1832 = vunpack.c.l.b16 %v1793
      %v1833 = vunpack.c.l.b16 %v1794
      %v1834 = vunpack.c.l.b16 %v1795
      %v1835 = vunpack.c.l.b16 %v1796
      %v1836 = vunpack.c.l.b16 %v1797
      %v1837 = vunpack.c.l.b16 %v1798
      %v1838 = vunpack.c.l.b16 %v1799
      %v1839 = vunpack.c.l.b16 %v1800
      %v1840 = vunpack.c.l.b16 %v1801
      %v1841 = vunpack.c.l.b16 %v1802
      %v1842 = vunpack.c.l.b16 %v1803
      %v1843 = vunpack.c.l.b16 %v1804
      %v1844 = vunpack.c.l.b16 %v1805
      %v1845 = vunpack.c.l.b16 %v1806
      %v1846 = vunpack.c.l.b16 %v1807
      %v1847 = vpack.c.b16 %v1832, %v1831
      %v1848 = vpack.c.b16 %v1834, %v1833
      %v1849 = vpack.c.b16 %v1836, %v1835
      %v1850 = vpack.c.b16 %v1838, %v1837
      %v1851 = vpack.c.b16 %v1840, %v1839
      %v1852 = vpack.c.b16 %v1842, %v1841
      %v1853 = vpack.c.b16 %v1844, %v1843
      %v1854 = vpack.c.b16 %v1846, %v1845
      %1863 = vmatprep.subr.bf16.mxu0 0
      %1864 = vmatpush1.bf16.msra.mxu0 %v1847
      %1865 = vmatprep.subr.bf16.mxu0 0
      %1866 = vmatpush1.bf16.msra.mxu0 %v1848
      %1867 = vmatprep.subr.bf16.mxu0 0
      %1868 = vmatpush1.bf16.msra.mxu0 %v1849
      %1869 = vmatprep.subr.bf16.mxu0 0
      %1870 = vmatpush1.bf16.msra.mxu0 %v1850
      %1871 = vmatprep.subr.bf16.mxu0 0
      %1872 = vmatpush1.bf16.msra.mxu0 %v1851
      %1873 = vmatprep.subr.bf16.mxu0 0
      %1874 = vmatpush1.bf16.msra.mxu0 %v1852
      %1875 = vmatprep.subr.bf16.mxu0 0
      %1876 = vmatpush1.bf16.msra.mxu0 %v1853
      %1877 = vmatprep.subr.bf16.mxu0 0
      %1878 = vmatpush1.bf16.msra.mxu0 %v1854
      %1879 = vmatprep.subr.bf16.mxu0 0
      %1880 = vmatpush1.bf16.msra.mxu0 0
      %1881 = vmatprep.subr.bf16.mxu0 0
      %1882 = vmatpush1.bf16.msra.mxu0 0
      %1883 = vmatprep.subr.bf16.mxu0 0
      %1884 = vmatpush1.bf16.msra.mxu0 0
      %1885 = vmatprep.subr.bf16.mxu0 0
      %1886 = vmatpush1.bf16.msra.mxu0 0
      %1887 = vmatprep.subr.bf16.mxu0 0
      %1888 = vmatpush1.bf16.msra.mxu0 0
      %1889 = vmatprep.subr.bf16.mxu0 0
      %1890 = vmatpush1.bf16.msra.mxu0 0
      %1891 = vmatprep.subr.bf16.mxu0 0
      %1892 = vmatpush1.bf16.msra.mxu0 0
      %1893 = vmatprep.subr.bf16.mxu0 0
      %1894 = vmatpush1.bf16.msra.mxu0 0
      %1895 = vmatprep.mubr.bf16.mxu0 0
      %1896 = vmatmul.mubr.bf16.gmra.mrb[0].mxu0 %v1790
      %v1897 = vpop.f32.mrb[0].mxu0
      %v1898 = vadd.f32 %v1813, %v1897
      %v1899 = vpop.f32.mrb[0].mxu0
      %v1900 = vpop.f32.mrb[0].mxu0
      %v1901 = vadd.f32 %v1813, %v1900
      %v1902 = vpop.f32.mrb[0].mxu0
      %1903 = vmatprep.mubr.bf16.mxu0 0
      %1904 = vmatmul.mubr.bf16.gmra.mrb[0].mxu0 %v1791
      %v1905 = vpop.f32.mrb[0].mxu0
      %v1906 = vadd.f32 %v1813, %v1905
      %v1907 = vpop.f32.mrb[0].mxu0
      %v1908 = vpop.f32.mrb[0].mxu0
      %v1909 = vpop.f32.mrb[0].mxu0
      %1910 = vdwg.mxu0
      %v1911 = vadd.f32 %v713, %v1898
      %v1912 = vadd.f32 %v714, %v1901
      %v1913 = vadd.f32 %v715, %v1906
      %v1914 = vld [vmem:[%s677] sm:$0x1]
      %v1915 = vld [vmem:[%s680] sm:$0x1]
      %1916 = vadd.xlane.f32.xlu0 %v1911
      %v1917 = vpop.xlane.xlu0 %1916
      %1918 = vadd.xlane.f32.xlu0 %v1912
      %v1919 = vpop.xlane.xlu0 %1918
      %1920 = vadd.xlane.f32.xlu0 %v1913
      %v1921 = vpop.xlane.xlu0 %1920
      %v1922 = vmul.f32 %v1917, 0.03125
      %v1923 = vmul.f32 %v1919, 0.03125
      %v1924 = vmul.f32 %v1921, 0.03125
      %v1925 = vsub.f32 %v1911, %v1922
      %v1926 = vsub.f32 %v1912, %v1923
      %v1927 = vsub.f32 %v1913, %v1924
      %v1928 = vmul.f32 %v1925, %v722
      %v1929 = vmul.f32 %v1926, %v722
      %v1930 = vmul.f32 %v1927, %v722
      %v1931 = vmul.f32 %v1928, %v1928
      %v1932 = vmul.f32 %v1929, %v1929
      %v1933 = vmul.f32 %v1930, %v1930
      %1934 = vadd.xlane.f32.xlu0 %v1931
      %v1935 = vpop.xlane.xlu0 %1934
      %1936 = vadd.xlane.f32.xlu0 %v1932
      %v1937 = vpop.xlane.xlu0 %1936
      %1938 = vadd.xlane.f32.xlu0 %v1933
      %v1939 = vpop.xlane.xlu0 %1938
      %v1940 = vmul.f32 %v1935, 0.03125
      %v1941 = vmul.f32 %v1937, 0.03125
      %v1942 = vmul.f32 %v1939, 0.03125
      %v1943 = vadd.f32 %v1940, 1e-06
      %v1944 = vadd.f32 %v1941, 1e-06
      %v1945 = vadd.f32 %v1942, 1e-06
      %v1946 = vrsqrt.pop %v1943
      %v1947 = vrsqrt.pop %v1944
      %v1948 = vrsqrt.pop %v1945
      %v1949 = vmul.f32 %v1928, %v1946
      %v1950 = vmul.f32 %v1929, %v1947
      %v1951 = vmul.f32 %v1930, %v1948
      %v1953 = vlaneseq
      %v1954 = vshrl.u32 %v1953, 7
      %v1955 = vsub.s32 0, %v1954
      %v1956 = vrot.slane %v1914, %v1955
      %v1958 = vmul.f32 %v1949, %v1956
      %v1959 = vmul.f32 %v1950, %v1956
      %v1960 = vmul.f32 %v1951, %v1956
      %v1962 = vlaneseq
      %v1963 = vshrl.u32 %v1962, 7
      %v1964 = vsub.s32 0, %v1963
      %v1965 = vrot.slane %v1915, %v1964
      %v1967 = vadd.f32 %v1958, %v1965
      %v1968 = vadd.f32 %v1959, %v1965
      %v1969 = vadd.f32 %v1960, %v1965
      %v1970 = vpack.c.bf16 %v1968, %v1967
      %v1971 = vpack.c.bf16 %v1969, %v1969
      %v1972 = vld [vmem:[%s685] sm:$0xf]
      %v1973 = vld [vmem:[%s685 + $0x4] sm:$0xf]
      %v1974 = vld [vmem:[%s685 + $0x8] sm:$0xf]
      %v1975 = vld [vmem:[%s685 + $0xc] sm:$0xf]
      %v1976 = vld [vmem:[%s685 + $0x10] sm:$0xf]
      %v1977 = vld [vmem:[%s685 + $0x14] sm:$0xf]
      %v1978 = vld [vmem:[%s685 + $0x18] sm:$0xf]
      %v1979 = vld [vmem:[%s685 + $0x1c] sm:$0xf]
      %v1980 = vld [vmem:[%s685 + $0x20] sm:$0xf]
      %v1981 = vld [vmem:[%s685 + $0x24] sm:$0xf]
      %v1982 = vld [vmem:[%s685 + $0x28] sm:$0xf]
      %v1983 = vld [vmem:[%s685 + $0x2c] sm:$0xf]
      %v1984 = vld [vmem:[%s685 + $0x30] sm:$0xf]
      %v1985 = vld [vmem:[%s685 + $0x34] sm:$0xf]
      %v1986 = vld [vmem:[%s685 + $0x38] sm:$0xf]
      %v1987 = vld [vmem:[%s685 + $0x3c] sm:$0xf]
      %v1988 = vld [vmem:[%s688] sm:$0x1]
      %v1990 = vlaneseq
      %v1991 = vshrl.u32 %v1990, 7
      %v1992 = vsub.s32 0, %v1991
      %v1993 = vrot.slane %v1988, %v1992
      %v2011 = vunpack.c.l.b16 %v1972
      %v2012 = vunpack.c.l.b16 %v1973
      %v2013 = vunpack.c.l.b16 %v1974
      %v2014 = vunpack.c.l.b16 %v1975
      %v2015 = vunpack.c.l.b16 %v1976
      %v2016 = vunpack.c.l.b16 %v1977
      %v2017 = vunpack.c.l.b16 %v1978
      %v2018 = vunpack.c.l.b16 %v1979
      %v2019 = vunpack.c.l.b16 %v1980
      %v2020 = vunpack.c.l.b16 %v1981
      %v2021 = vunpack.c.l.b16 %v1982
      %v2022 = vunpack.c.l.b16 %v1983
      %v2023 = vunpack.c.l.b16 %v1984
      %v2024 = vunpack.c.l.b16 %v1985
      %v2025 = vunpack.c.l.b16 %v1986
      %v2026 = vunpack.c.l.b16 %v1987
      %v2027 = vpack.c.b16 %v2012, %v2011
      %v2028 = vpack.c.b16 %v2014, %v2013
      %v2029 = vpack.c.b16 %v2016, %v2015
      %v2030 = vpack.c.b16 %v2018, %v2017
      %v2031 = vpack.c.b16 %v2020, %v2019
      %v2032 = vpack.c.b16 %v2022, %v2021
      %v2033 = vpack.c.b16 %v2024, %v2023
      %v2034 = vpack.c.b16 %v2026, %v2025
      %2043 = vmatprep.subr.bf16.mxu0 0
      %2044 = vmatpush1.bf16.msra.mxu0 %v2027
      %2045 = vmatprep.subr.bf16.mxu0 0
      %2046 = vmatpush1.bf16.msra.mxu0 %v2028
      %2047 = vmatprep.subr.bf16.mxu0 0
      %2048 = vmatpush1.bf16.msra.mxu0 %v2029
      %2049 = vmatprep.subr.bf16.mxu0 0
      %2050 = vmatpush1.bf16.msra.mxu0 %v2030
      %2051 = vmatprep.subr.bf16.mxu0 0
      %2052 = vmatpush1.bf16.msra.mxu0 %v2031
      %2053 = vmatprep.subr.bf16.mxu0 0
      %2054 = vmatpush1.bf16.msra.mxu0 %v2032
      %2055 = vmatprep.subr.bf16.mxu0 0
      %2056 = vmatpush1.bf16.msra.mxu0 %v2033
      %2057 = vmatprep.subr.bf16.mxu0 0
      %2058 = vmatpush1.bf16.msra.mxu0 %v2034
      %2059 = vmatprep.subr.bf16.mxu0 0
      %2060 = vmatpush1.bf16.msra.mxu0 0
      %2061 = vmatprep.subr.bf16.mxu0 0
      %2062 = vmatpush1.bf16.msra.mxu0 0
      %2063 = vmatprep.subr.bf16.mxu0 0
      %2064 = vmatpush1.bf16.msra.mxu0 0
      %2065 = vmatprep.subr.bf16.mxu0 0
      %2066 = vmatpush1.bf16.msra.mxu0 0
      %2067 = vmatprep.subr.bf16.mxu0 0
      %2068 = vmatpush1.bf16.msra.mxu0 0
      %2069 = vmatprep.subr.bf16.mxu0 0
      %2070 = vmatpush1.bf16.msra.mxu0 0
      %2071 = vmatprep.subr.bf16.mxu0 0
      %2072 = vmatpush1.bf16.msra.mxu0 0
      %2073 = vmatprep.subr.bf16.mxu0 0
      %2074 = vmatpush1.bf16.msra.mxu0 0
      %2075 = vmatprep.mubr.bf16.mxu0 0
      %2076 = vmatmul.mubr.bf16.gmra.mrb[0].mxu0 %v1970
      %v2077 = vpop.f32.mrb[0].mxu0
      %v2078 = vadd.f32 %v1993, %v2077
      %v2079 = vpop.f32.mrb[0].mxu0
      %v2080 = vpop.f32.mrb[0].mxu0
      %v2081 = vadd.f32 %v1993, %v2080
      %v2082 = vpop.f32.mrb[0].mxu0
      %2083 = vmatprep.mubr.bf16.mxu0 0
      %2084 = vmatmul.mubr.bf16.gmra.mrb[0].mxu0 %v1971
      %v2085 = vpop.f32.mrb[0].mxu0
      %v2086 = vadd.f32 %v1993, %v2085
      %v2087 = vpop.f32.mrb[0].mxu0
      %v2088 = vpop.f32.mrb[0].mxu0
      %v2089 = vpop.f32.mrb[0].mxu0
      %2090 = vdwg.mxu0
      %v2091 = vmul.f32 %v2078, %v2078
      %v2092 = vmul.f32 %v2081, %v2081
      %v2093 = vmul.f32 %v2086, %v2086
      %v2094 = vmul.f32 %v2078, %v2091
      %v2095 = vmul.f32 %v2081, %v2092
      %v2096 = vmul.f32 %v2086, %v2093
      %v2097 = vmul.f32 %v2094, 0.044715
      %v2098 = vmul.f32 %v2095, 0.044715
      %v2099 = vmul.f32 %v2096, 0.044715
      %v2100 = vadd.f32 %v2078, %v2097
      %v2101 = vadd.f32 %v2081, %v2098
      %v2102 = vadd.f32 %v2086, %v2099
      %v2103 = vmul.f32 %v2100, 0.7978846
      %v2104 = vmul.f32 %v2101, 0.7978846
      %v2105 = vmul.f32 %v2102, 0.7978846
      %v2106 = vtanh.pop %v2103
      %v2107 = vtanh.pop %v2104
      %v2108 = vtanh.pop %v2105
      %v2109 = vadd.f32 %v2106, 1.0
      %v2110 = vadd.f32 %v2107, 1.0
      %v2111 = vadd.f32 %v2108, 1.0
      %v2112 = vmul.f32 %v2109, 0.5
      %v2113 = vmul.f32 %v2110, 0.5
      %v2114 = vmul.f32 %v2111, 0.5
      %v2115 = vmul.f32 %v2078, %v2112
      %v2116 = vmul.f32 %v2081, %v2113
      %v2117 = vmul.f32 %v2086, %v2114
      %v2118 = vpack.c.bf16 %v2116, %v2115
      %v2119 = vpack.c.bf16 %v2117, %v2117
      %v2120 = vld [vmem:[%s693] sm:$0xf]
      %v2121 = vld [vmem:[%s693 + $0x4] sm:$0xf]
      %v2122 = vld [vmem:[%s693 + $0x8] sm:$0xf]
      %v2123 = vld [vmem:[%s693 + $0xc] sm:$0xf]
      %v2124 = vld [vmem:[%s693 + $0x10] sm:$0xf]
      %v2125 = vld [vmem:[%s693 + $0x14] sm:$0xf]
      %v2126 = vld [vmem:[%s693 + $0x18] sm:$0xf]
      %v2127 = vld [vmem:[%s693 + $0x1c] sm:$0xf]
      %v2128 = vld [vmem:[%s693 + $0x20] sm:$0xf]
      %v2129 = vld [vmem:[%s693 + $0x24] sm:$0xf]
      %v2130 = vld [vmem:[%s693 + $0x28] sm:$0xf]
      %v2131 = vld [vmem:[%s693 + $0x2c] sm:$0xf]
      %v2132 = vld [vmem:[%s693 + $0x30] sm:$0xf]
      %v2133 = vld [vmem:[%s693 + $0x34] sm:$0xf]
      %v2134 = vld [vmem:[%s693 + $0x38] sm:$0xf]
      %v2135 = vld [vmem:[%s693 + $0x3c] sm:$0xf]
      %v2136 = vld [vmem:[%s696] sm:$0x1]
      %v2138 = vlaneseq
      %v2139 = vshrl.u32 %v2138, 7
      %v2140 = vsub.s32 0, %v2139
      %v2141 = vrot.slane %v2136, %v2140
      %v2159 = vunpack.c.l.b16 %v2120
      %v2160 = vunpack.c.l.b16 %v2121
      %v2161 = vunpack.c.l.b16 %v2122
      %v2162 = vunpack.c.l.b16 %v2123
      %v2163 = vunpack.c.l.b16 %v2124
      %v2164 = vunpack.c.l.b16 %v2125
      %v2165 = vunpack.c.l.b16 %v2126
      %v2166 = vunpack.c.l.b16 %v2127
      %v2167 = vunpack.c.l.b16 %v2128
      %v2168 = vunpack.c.l.b16 %v2129
      %v2169 = vunpack.c.l.b16 %v2130
      %v2170 = vunpack.c.l.b16 %v2131
      %v2171 = vunpack.c.l.b16 %v2132
      %v2172 = vunpack.c.l.b16 %v2133
      %v2173 = vunpack.c.l.b16 %v2134
      %v2174 = vunpack.c.l.b16 %v2135
      %v2175 = vpack.c.b16 %v2160, %v2159
      %v2176 = vpack.c.b16 %v2162, %v2161
      %v2177 = vpack.c.b16 %v2164, %v2163
      %v2178 = vpack.c.b16 %v2166, %v2165
      %v2179 = vpack.c.b16 %v2168, %v2167
      %v2180 = vpack.c.b16 %v2170, %v2169
      %v2181 = vpack.c.b16 %v2172, %v2171
      %v2182 = vpack.c.b16 %v2174, %v2173
      %2191 = vmatprep.subr.bf16.mxu0 0
      %2192 = vmatpush1.bf16.msra.mxu0 %v2175
      %2193 = vmatprep.subr.bf16.mxu0 0
      %2194 = vmatpush1.bf16.msra.mxu0 %v2176
      %2195 = vmatprep.subr.bf16.mxu0 0
      %2196 = vmatpush1.bf16.msra.mxu0 %v2177
      %2197 = vmatprep.subr.bf16.mxu0 0
      %2198 = vmatpush1.bf16.msra.mxu0 %v2178
      %2199 = vmatprep.subr.bf16.mxu0 0
      %2200 = vmatpush1.bf16.msra.mxu0 %v2179
      %2201 = vmatprep.subr.bf16.mxu0 0
      %2202 = vmatpush1.bf16.msra.mxu0 %v2180
      %2203 = vmatprep.subr.bf16.mxu0 0
      %2204 = vmatpush1.bf16.msra.mxu0 %v2181
      %2205 = vmatprep.subr.bf16.mxu0 0
      %2206 = vmatpush1.bf16.msra.mxu0 %v2182
      %2207 = vmatprep.subr.bf16.mxu0 0
      %2208 = vmatpush1.bf16.msra.mxu0 0
      %2209 = vmatprep.subr.bf16.mxu0 0
      %2210 = vmatpush1.bf16.msra.mxu0 0
      %2211 = vmatprep.subr.bf16.mxu0 0
      %2212 = vmatpush1.bf16.msra.mxu0 0
      %2213 = vmatprep.subr.bf16.mxu0 0
      %2214 = vmatpush1.bf16.msra.mxu0 0
      %2215 = vmatprep.subr.bf16.mxu0 0
      %2216 = vmatpush1.bf16.msra.mxu0 0
      %2217 = vmatprep.subr.bf16.mxu0 0
      %2218 = vmatpush1.bf16.msra.mxu0 0
      %2219 = vmatprep.subr.bf16.mxu0 0
      %2220 = vmatpush1.bf16.msra.mxu0 0
      %2221 = vmatprep.subr.bf16.mxu0 0
      %2222 = vmatpush1.bf16.msra.mxu0 0
      %2223 = vmatprep.mubr.bf16.mxu0 0
      %2224 = vmatmul.mubr.bf16.gmra.mrb[0].mxu0 %v2118
      %v2225 = vpop.f32.mrb[0].mxu0
      %v2226 = vadd.f32 %v2141, %v2225
      %v2227 = vpop.f32.mrb[0].mxu0
      %v2228 = vpop.f32.mrb[0].mxu0
      %v2229 = vadd.f32 %v2141, %v2228
      %v2230 = vpop.f32.mrb[0].mxu0
      %2231 = vmatprep.mubr.bf16.mxu0 0
      %2232 = vmatmul.mubr.bf16.gmra.mrb[0].mxu0 %v2119
      %v2233 = vpop.f32.mrb[0].mxu0
      %v2234 = vadd.f32 %v2141, %v2233
      %v2235 = vpop.f32.mrb[0].mxu0
      %v2236 = vpop.f32.mrb[0].mxu0
      %v2237 = vpop.f32.mrb[0].mxu0
      %2238 = vdwg.mxu0
      %v2239 = vadd.f32 %v1911, %v2226
      %v2240 = vadd.f32 %v1912, %v2229
      %v2241 = vadd.f32 %v1913, %v2234
      %2242 = vst [vmem:[%s701] sm:$0xff] %v2239
      %2243 = vst [vmem:[%s701 + $0x8] sm:$0xff] %v2240
      %2244 = vst [vmem:[%s701 + $0x10] sm:$0xff] %v2241
      %p2245 = scmp.eq.s32.totalorder %s31, 1
      // Predicated region
      $region85: #{detr_encoder_forward.3} parent=79 // pred_check
        %p2246 = pneg %p2245
      $region86: #{detr_encoder_forward.3} parent=79 // pred_check_branch
        %2248 = sbr.rel (%p2246) target = $region88
      $region87: #{detr_encoder_forward.3} parent=79 // pred_region
        %v2249 = vld [vmem:[%s13] sm:$0x1]
        %v2250 = vld [vmem:[%s14] sm:$0x1]
        %2251 = vadd.xlane.f32.xlu0 %v2239
        %v2252 = vpop.xlane.xlu0 %2251
        %2253 = vadd.xlane.f32.xlu0 %v2240
        %v2254 = vpop.xlane.xlu0 %2253
        %2255 = vadd.xlane.f32.xlu0 %v2241
        %v2256 = vpop.xlane.xlu0 %2255
        %v2257 = vmul.f32 %v2252, 0.03125
        %v2258 = vmul.f32 %v2254, 0.03125
        %v2259 = vmul.f32 %v2256, 0.03125
        %v2260 = vsub.f32 %v2239, %v2257
        %v2261 = vsub.f32 %v2240, %v2258
        %v2262 = vsub.f32 %v2241, %v2259
        %v2263 = vmul.f32 %v2260, %v722
        %v2264 = vmul.f32 %v2261, %v722
        %v2265 = vmul.f32 %v2262, %v722
        %v2266 = vmul.f32 %v2263, %v2263
        %v2267 = vmul.f32 %v2264, %v2264
        %v2268 = vmul.f32 %v2265, %v2265
        %2269 = vadd.xlane.f32.xlu0 %v2266
        %v2270 = vpop.xlane.xlu0 %2269
        %2271 = vadd.xlane.f32.xlu0 %v2267
        %v2272 = vpop.xlane.xlu0 %2271
        %2273 = vadd.xlane.f32.xlu0 %v2268
        %v2274 = vpop.xlane.xlu0 %2273
        %v2275 = vmul.f32 %v2270, 0.03125
        %v2276 = vmul.f32 %v2272, 0.03125
        %v2277 = vmul.f32 %v2274, 0.03125
        %v2278 = vadd.f32 %v2275, 1e-06
        %v2279 = vadd.f32 %v2276, 1e-06
        %v2280 = vadd.f32 %v2277, 1e-06
        %v2281 = vrsqrt.pop %v2278
        %v2282 = vrsqrt.pop %v2279
        %v2283 = vrsqrt.pop %v2280
        %v2284 = vmul.f32 %v2263, %v2281
        %v2285 = vmul.f32 %v2264, %v2282
        %v2286 = vmul.f32 %v2265, %v2283
        %v2288 = vlaneseq
        %v2289 = vshrl.u32 %v2288, 7
        %v2290 = vsub.s32 0, %v2289
        %v2291 = vrot.slane %v2249, %v2290
        %v2293 = vmul.f32 %v2284, %v2291
        %v2294 = vmul.f32 %v2285, %v2291
        %v2295 = vmul.f32 %v2286, %v2291
        %v2297 = vlaneseq
        %v2298 = vshrl.u32 %v2297, 7
        %v2299 = vsub.s32 0, %v2298
        %v2300 = vrot.slane %v2250, %v2299
        %v2302 = vadd.f32 %v2293, %v2300
        %v2303 = vadd.f32 %v2294, %v2300
        %v2304 = vadd.f32 %v2295, %v2300
        %2305 = vst [vmem:[%s701] sm:$0xff] %v2302
        %2306 = vst [vmem:[%s701 + $0x8] sm:$0xff] %v2303
        %2307 = vst [vmem:[%s701 + $0x10] sm:$0xff] %v2304
      $region88: #{detr_encoder_forward.3} parent=79 // pred_fallthru
        _
      %p2308 = scmp.lt.s32.totalorder %s30, 1
      %s2309 = scalar_select %p2308, %s30, 1
      %s2310 = smul.addr %s2309, 3
      %s2311 = smul.addr %s2310, 8
      %s2312 = scalar_lea.vmem %s15, %s2311
      // Predicated region
      $region89: #{detr_encoder_forward.3} parent=79 // pred_check
        %p2313 = pneg %p436
      $region90: #{detr_encoder_forward.3} parent=79 // pred_check_branch
        %2315 = sbr.rel (%p2313) target = $region92
      $region91: #{detr_encoder_forward.3} parent=79 // pred_region
        _
      $region92: #{detr_encoder_forward.3} parent=79 // pred_fallthru
        _
    $region80: #{detr_encoder_forward.3} parent=5 // pred_fallthru
      _
    %p2316 = scmp.le.s32.totalorder 2, %s21
    // Predicated region
    $region93: #{detr_encoder_forward.3} parent=5 // pred_check
      %p2317 = pneg %p2316
    $region94: #{detr_encoder_forward.3} parent=5 // pred_check_branch
      %2319 = sbr.rel (%p2317) target = $region96
    $region95: #{detr_encoder_forward.3} parent=5 // pred_region
      %s2320 = ssub.s32 %s21, 2
      // Predicated region
      $region97: #{detr_encoder_forward.3} parent=95 // pred_check
        %p2321 = pneg %p442
      $region98: #{detr_encoder_forward.3} parent=95 // pred_check_branch
        %2323 = sbr.rel (%p2321) target = $region100
      $region99: #{detr_encoder_forward.3} parent=95 // pred_region
        %p2324 = scmp.lt.s32.totalorder %s32, 1
        %s2325 = scalar_select %p2324, %s32, 1
        %s2326 = smul.addr %s2325, 3
        %s2327 = smul.addr %s2326, 8
        %s2328 = scalar_lea.vmem %s15, %s2327
      $region100: #{detr_encoder_forward.3} parent=95 // pred_fallthru
        _
    $region96: #{detr_encoder_forward.3} parent=5 // pred_fallthru
      _
  $region6: #{detr_encoder_forward.3} parent=0 // loop_footer
    %s25 = sadd.s32 1, %s21
  $region7: #{detr_encoder_forward.3} parent=0 // loop_footer_branch
    %20 = sbr.rel target = $region3
  $region8: #{detr_encoder_forward.3} parent=0 // loop_exit
    _

</llo_original>
